<compile_context>
chip_gen: v7x
topology: tpu7x:2x2x1
jax: 0.10.0
libtpu: 0.0.40
codegen_flags: <defaults>
</compile_context>

<pallas_src>
import functools
import math

import jax
import jax.numpy as jnp
from jax.experimental import pallas as pl
from jax.experimental.pallas import tpu as pltpu

_LN_EPS = 1e-5
_VMEM_LIMIT = 64 * 1024 * 1024  # safe on v5e/v6e (128 MiB phys) and v7x (64 MiB phys)


def _round_up(a, m):
    return ((a + m - 1) // m) * m


def _layer_norm(z, gamma, beta):
    mean = jnp.mean(z, axis=-1, keepdims=True)
    cen = z - mean
    var = jnp.mean(cen * cen, axis=-1, keepdims=True)
    return cen * jax.lax.rsqrt(var + _LN_EPS) * gamma + beta


def _resident_spec(block_shape, *, single_buffer):
    """BlockSpec for an operand that never changes across the grid."""
    n = len(block_shape)
    index_map = lambda *args: (0,) * n          # constant block index
    if single_buffer:
        # Constant index_map -> double buffering buys nothing; save the VMEM.
        return pl.BlockSpec(block_shape, index_map, pipeline_mode=pl.Buffered(1))
    return pl.BlockSpec(block_shape, index_map)


# --------------------------------------------------------------------------
# Kernel 1: multi-head attention + AddNorm1   (one batch element per step)
# --------------------------------------------------------------------------
def _mha_addnorm_kernel(valid_ref, x_ref, wq_ref, wk_ref, wv_ref, wo_ref,
                        g_ref, b_ref, y_ref, *, num_heads):
    b = pl.program_id(0)
    x = x_ref[0]                                   # (seq, d) f32
    seq, d = x.shape
    hd = d // num_heads

    xb = x.astype(jnp.bfloat16)                    # bf16 MXU inputs, f32 accum
    q = jnp.dot(xb, wq_ref[...], preferred_element_type=jnp.float32)
    k = jnp.dot(xb, wk_ref[...], preferred_element_type=jnp.float32)
    v = jnp.dot(xb, wv_ref[...], preferred_element_type=jnp.float32)

    valid = valid_ref[b]                           # SMEM scalar (valid length)
    col = jax.lax.broadcasted_iota(jnp.int32, (seq, seq), 1)
    scale = jnp.float32(1.0 / math.sqrt(hd))

    proj = jnp.zeros((seq, d), jnp.float32)
    for h in range(num_heads):                     # static unroll (few heads)
        lo, hi = h * hd, (h + 1) * hd
        qh = q[:, lo:hi].astype(jnp.bfloat16)
        kh = k[:, lo:hi].astype(jnp.bfloat16)
        vh = v[:, lo:hi].astype(jnp.bfloat16)
        s = jax.lax.dot_general(qh, kh, (((1,), (1,)), ((), ())),
                                preferred_element_type=jnp.float32) * scale
        s = jnp.where(col < valid, s, jnp.float32(-1e6))   # masked_softmax mask
        m = jnp.max(s, axis=-1, keepdims=True)
        e = jnp.exp(s - m)
        p = e / jnp.sum(e, axis=-1, keepdims=True)
        o_h = jnp.dot(p.astype(jnp.bfloat16), vh,
                      preferred_element_type=jnp.float32)
        # concat_h(o_h) @ Wo  ==  sum_h  o_h @ Wo[h*hd:(h+1)*hd, :]
        proj = proj + jnp.dot(o_h.astype(jnp.bfloat16), wo_ref[lo:hi, :],
                              preferred_element_type=jnp.float32)

    y = _layer_norm(x + proj, g_ref[...], b_ref[...])      # AddNorm1
    y_ref[0] = y.astype(y_ref.dtype)


def _mha_addnorm(x, valid_lens, wq, wk, wv, wo, gamma, beta, *,
                 num_heads, single_buffer):
    batch, seq, d = x.shape
    res = functools.partial(_resident_spec, single_buffer=single_buffer)
    flops = batch * (8 * seq * d * d + 4 * seq * seq * d)
    cost = pl.CostEstimate(
        flops=int(flops),
        transcendentals=int(batch * num_heads * seq * seq),
        bytes_accessed=int(2 * batch * seq * d * 4 + 4 * d * d * 2 + 2 * d * 4))

    return pl.pallas_call(
        functools.partial(_mha_addnorm_kernel, num_heads=num_heads),
        out_shape=jax.ShapeDtypeStruct((batch, seq, d), x.dtype),
        grid_spec=pltpu.PrefetchScalarGridSpec(
            num_scalar_prefetch=1,                 # valid_lens lands in SMEM
            grid=(batch,),
            in_specs=[
                pl.BlockSpec((1, seq, d), lambda b, vl: (b, 0, 0)),
                res((d, d)), res((d, d)), res((d, d)), res((d, d)),
                res((1, d)), res((1, d)),
            ],
            out_specs=pl.BlockSpec((1, seq, d), lambda b, vl: (b, 0, 0)),
        ),
        compiler_params=pltpu.CompilerParams(
            dimension_semantics=("parallel",),
            vmem_limit_bytes=_VMEM_LIMIT),
        cost_estimate=cost,
    )(valid_lens, x, wq, wk, wv, wo, gamma, beta)


# --------------------------------------------------------------------------
# Kernel 2: position-wise FFN + AddNorm2   (row-tiled over batch*seq)
# --------------------------------------------------------------------------
def _ffn_addnorm_kernel(y_ref, w1_ref, b1_ref, w2_ref, b2_ref,
                        g_ref, bt_ref, o_ref):
    y = y_ref[...]                                 # (tm, d) f32
    h = jnp.dot(y.astype(jnp.bfloat16), w1_ref[...],
                preferred_element_type=jnp.float32) + b1_ref[...]
    h = jnp.maximum(h, 0.0)
    f = jnp.dot(h.astype(jnp.bfloat16), w2_ref[...],
                preferred_element_type=jnp.float32) + b2_ref[...]
    out = _layer_norm(y + f, g_ref[...], bt_ref[...])       # AddNorm2
    o_ref[...] = out.astype(o_ref.dtype)


def _ffn_addnorm(y2, w1, b1, w2, b2, gamma, beta, *, tm, single_buffer):
    rows, d = y2.shape
    d_ffn = w1.shape[1]

    # Largest sublane-aligned row tile <= tm that isn't mostly padding; if
    # everything fits in a single tile, split in two so v7x's second TC gets work.
    tm_eff = min(tm, _round_up(rows, 8))
    if rows > 8 and pl.cdiv(rows, tm_eff) == 1:
        tm_eff = _round_up(pl.cdiv(rows, 2), 8)
    rows_pad = _round_up(rows, tm_eff)
    if rows_pad != rows:
        y2 = jnp.pad(y2, ((0, rows_pad - rows), (0, 0)))

    res = functools.partial(_resident_spec, single_buffer=single_buffer)
    cost = pl.CostEstimate(
        flops=int(4 * rows_pad * d * d_ffn + 10 * rows_pad * d),
        transcendentals=int(rows_pad),
        bytes_accessed=int(2 * rows_pad * d * 4 + 2 * d * d_ffn * 2
                           + (d_ffn + 3 * d) * 4))

    out2 = pl.pallas_call(
        _ffn_addnorm_kernel,
        out_shape=jax.ShapeDtypeStruct((rows_pad, d), y2.dtype),
        grid_spec=pltpu.PrefetchScalarGridSpec(
            num_scalar_prefetch=0,
            grid=(rows_pad // tm_eff,),
            in_specs=[
                pl.BlockSpec((tm_eff, d), lambda i: (i, 0)),
                res((d, d_ffn)), res((1, d_ffn)),
                res((d_ffn, d)), res((1, d)),
                res((1, d)), res((1, d)),
            ],
            out_specs=pl.BlockSpec((tm_eff, d), lambda i: (i, 0)),
        ),
        compiler_params=pltpu.CompilerParams(
            dimension_semantics=("parallel",),
            vmem_limit_bytes=_VMEM_LIMIT),
        cost_estimate=cost,
    )(y2, w1, b1, w2, b2, gamma, beta)
    return out2[:rows]


# --------------------------------------------------------------------------
# EncoderBlock forward (inference mode; dropout == identity)
# --------------------------------------------------------------------------
def encoder_block(x, valid_lens, params, *, num_heads, tm=256):
    """x: (batch, seq, d) f32; valid_lens: (batch,) ints or None.
    Weights stored (in_features, out_features) (PyTorch Linear transposed)."""
    batch, seq, d = x.shape
    if valid_lens is None:
        valid_lens = jnp.full((batch,), seq, dtype=jnp.int32)
    valid_lens = valid_lens.astype(jnp.int32)

    bf = lambda a: a.astype(jnp.bfloat16)          # bf16 MXU inputs (glue-side cast)
    wq, wk, wv, wo = bf(params["wq"]), bf(params["wk"]), bf(params["wv"]), bf(params["wo"])
    w1, w2 = bf(params["w1"]), bf(params["w2"])
    b1 = params["b1"].reshape(1, -1)
    b2 = params["b2"].reshape(1, -1)
    g1 = params["gamma1"].reshape(1, d)
    be1 = params["beta1"].reshape(1, d)
    g2 = params["gamma2"].reshape(1, d)
    be2 = params["beta2"].reshape(1, d)

    def run(single_buffer):
        y = _mha_addnorm(x, valid_lens, wq, wk, wv, wo, g1, be1,
                         num_heads=num_heads, single_buffer=single_buffer)
        y2 = y.reshape(batch * seq, d)
        out2 = _ffn_addnorm(y2, w1, b1, w2, b2, g2, be2,
                            tm=tm, single_buffer=single_buffer)
        return out2.reshape(batch, seq, d)

    try:
        out = run(True)                            # single-buffered resident weights
        jax.block_until_ready(out)
        return out
    except Exception:
        # pl.Buffered(1) rejected by this jax build -> default double buffering.
        return run(False)


if __name__ == "__main__":
    batch, seq = 2, 8
    d_model, num_heads, d_ffn = 128, 4, 256        # lane-dense (multiples of 128)

    key = jax.random.PRNGKey(0)
    ks = jax.random.split(key, 14)
    rnd = lambda k, shape, s=0.1: s * jax.random.normal(k, shape, jnp.float32)

    x = jax.random.normal(ks[0], (batch, seq, d_model), jnp.float32)
    valid_lens = jnp.array([5, 8], dtype=jnp.int32)

    params = dict(
        wq=rnd(ks[1], (d_model, d_model)),
        wk=rnd(ks[2], (d_model, d_model)),
        wv=rnd(ks[3], (d_model, d_model)),
        wo=rnd(ks[4], (d_model, d_model)),
        gamma1=1.0 + rnd(ks[5], (d_model,)),
        beta1=rnd(ks[6], (d_model,)),
        w1=rnd(ks[7], (d_model, d_ffn)),
        b1=rnd(ks[8], (d_ffn,)),
        w2=rnd(ks[9], (d_ffn, d_model)),
        b2=rnd(ks[10], (d_model,)),
        gamma2=1.0 + rnd(ks[11], (d_model,)),
        beta2=rnd(ks[12], (d_model,)),
    )

    out = encoder_block(x, valid_lens, params, num_heads=num_heads)
    out = jax.block_until_ready(out)
    assert out.shape == (batch, seq, d_model)

    # ---- references -------------------------------------------------------
    def ln(z, g, b):
        m = z.mean(-1, keepdims=True)
        c = z - m
        v = (c * c).mean(-1, keepdims=True)
        return c * jax.lax.rsqrt(v + _LN_EPS) * g + b

    def reference(cast):
        """cast=identity -> pure f32; cast=bf16 -> mirrors the kernel's
        mixed precision (bf16 MXU inputs, f32 accumulation)."""
        hd = d_model // num_heads
        dot = lambda a, w: jnp.dot(cast(a), cast(w), preferred_element_type=jnp.float32)
        q, k, v = dot(x, params["wq"]), dot(x, params["wk"]), dot(x, params["wv"])
        split = lambda t: t.reshape(batch, seq, num_heads, hd).transpose(0, 2, 1, 3)
        qh, kh, vh = split(q), split(k), split(v)
        s = jnp.einsum("bhqd,bhkd->bhqk", cast(qh), cast(kh),
                       preferred_element_type=jnp.float32) / math.sqrt(hd)
        mask = jnp.arange(seq)[None, None, None, :] < valid_lens[:, None, None, None]
        s = jnp.where(mask, s, -1e6)
        p = jax.nn.softmax(s, axis=-1)
        o = jnp.einsum("bhqk,bhkd->bhqd", cast(p), cast(vh),
                       preferred_element_type=jnp.float32)
        o = o.transpose(0, 2, 1, 3).reshape(batch, seq, d_model)
        attn = dot(o, params["wo"])
        y = ln(x + attn, params["gamma1"], params["beta1"])
        h = jnp.maximum(dot(y, params["w1"]) + params["b1"], 0.0)
        f = dot(h, params["w2"]) + params["b2"]
        return ln(y + f, params["gamma2"], params["beta2"])

    ref_mixed = reference(lambda a: a.astype(jnp.bfloat16))   # same precision policy
    ref_f32 = reference(lambda a: a)                          # full f32 sanity check

    assert jnp.allclose(out, ref_mixed, atol=5e-3, rtol=5e-3), \
        "mismatch vs mixed-precision reference"
    assert jnp.allclose(out, ref_f32, atol=0.25, rtol=0.25), \
        "mismatch vs f32 reference"

    print("KERNEL_OK")
</pallas_src>

<mosaic_0001>
module attributes {stable_mosaic.version = 11 : i64} {
  func.func @_mha_addnorm_kernel(%arg0: i32, %arg1: memref<2xi32, #tpu.memory_space<smem>>, %arg2: memref<1x8x128xf32, #tpu.memory_space<vmem>>, %arg3: memref<128x128xbf16, #tpu.memory_space<vmem>>, %arg4: memref<128x128xbf16, #tpu.memory_space<vmem>>, %arg5: memref<128x128xbf16, #tpu.memory_space<vmem>>, %arg6: memref<128x128xbf16, #tpu.memory_space<vmem>>, %arg7: memref<1x128xf32, #tpu.memory_space<vmem>>, %arg8: memref<1x128xf32, #tpu.memory_space<vmem>>, %arg9: memref<1x8x128xf32, #tpu.memory_space<vmem>>) attributes {dimension_semantics = [#tpu.dimension_semantics<parallel>], iteration_bounds = array<i64: 2>, scalar_prefetch = 1 : i64, scratch_operands = 0 : i64, tpu.core_type = #tpu.core_type<tc>, window_params = [{transform_indices = @transform_0, window_bounds = array<i64: 1, 8, 128>}, {pipeline_mode = #tpu.pipeline_mode<synchronous>, transform_indices = @transform_1, window_bounds = array<i64: 128, 128>}, {pipeline_mode = #tpu.pipeline_mode<synchronous>, transform_indices = @transform_2, window_bounds = array<i64: 128, 128>}, {pipeline_mode = #tpu.pipeline_mode<synchronous>, transform_indices = @transform_3, window_bounds = array<i64: 128, 128>}, {pipeline_mode = #tpu.pipeline_mode<synchronous>, transform_indices = @transform_4, window_bounds = array<i64: 128, 128>}, {pipeline_mode = #tpu.pipeline_mode<synchronous>, transform_indices = @transform_5, window_bounds = array<i64: 1, 128>}, {pipeline_mode = #tpu.pipeline_mode<synchronous>, transform_indices = @transform_6, window_bounds = array<i64: 1, 128>}, {transform_indices = @transform_7, window_bounds = array<i64: 1, 8, 128>}]} {
    %c0 = arith.constant 0 : index
    %c0_0 = arith.constant 0 : index
    %c0_1 = arith.constant 0 : index
    %0 = vector.load %arg2[%c0, %c0_0, %c0_1] : memref<1x8x128xf32, #tpu.memory_space<vmem>>, vector<1x8x128xf32>
    %1 = vector.shape_cast %0 : vector<1x8x128xf32> to vector<8x128xf32>
    %2 = arith.truncf %1 : vector<8x128xf32> to vector<8x128xbf16>
    %c0_2 = arith.constant 0 : index
    %c0_3 = arith.constant 0 : index
    %3 = vector.load %arg3[%c0_2, %c0_3] : memref<128x128xbf16, #tpu.memory_space<vmem>>, vector<128x128xbf16>
    %cst = arith.constant dense<0.000000e+00> : vector<8x128xf32>
    %4 = tpu.matmul %2, %3, %cst {dimension_numbers = #tpu.dot_dimension_numbers<[1], [0], [0], [1], [0, 0, 1, 1], [], []>} : vector<8x128xbf16>, vector<128x128xbf16>, vector<8x128xf32> -> vector<8x128xf32>
    %c0_4 = arith.constant 0 : index
    %c0_5 = arith.constant 0 : index
    %5 = vector.load %arg4[%c0_4, %c0_5] : memref<128x128xbf16, #tpu.memory_space<vmem>>, vector<128x128xbf16>
    %cst_6 = arith.constant dense<0.000000e+00> : vector<8x128xf32>
    %6 = tpu.matmul %2, %5, %cst_6 {dimension_numbers = #tpu.dot_dimension_numbers<[1], [0], [0], [1], [0, 0, 1, 1], [], []>} : vector<8x128xbf16>, vector<128x128xbf16>, vector<8x128xf32> -> vector<8x128xf32>
    %c0_7 = arith.constant 0 : index
    %c0_8 = arith.constant 0 : index
    %7 = vector.load %arg5[%c0_7, %c0_8] : memref<128x128xbf16, #tpu.memory_space<vmem>>, vector<128x128xbf16>
    %cst_9 = arith.constant dense<0.000000e+00> : vector<8x128xf32>
    %8 = tpu.matmul %2, %7, %cst_9 {dimension_numbers = #tpu.dot_dimension_numbers<[1], [0], [0], [1], [0, 0, 1, 1], [], []>} : vector<8x128xbf16>, vector<128x128xbf16>, vector<8x128xf32> -> vector<8x128xf32>
    %9 = arith.index_cast %arg0 : i32 to index
    %10 = memref.load %arg1[%9] : memref<2xi32, #tpu.memory_space<smem>>
    %11 = tpu.iota {dimensions = array<i32: 1>} : vector<8x8xi32>
    %cst_10 = arith.constant 0.000000e+00 : f32
    %12 = vector.broadcast %cst_10 : f32 to vector<8x128xf32>
    %13 = vector.extract_strided_slice %4 {offsets = [0, 0], sizes = [8, 32], strides = [1, 1]} : vector<8x128xf32> to vector<8x32xf32>
    %14 = arith.truncf %13 : vector<8x32xf32> to vector<8x32xbf16>
    %15 = vector.extract_strided_slice %6 {offsets = [0, 0], sizes = [8, 32], strides = [1, 1]} : vector<8x128xf32> to vector<8x32xf32>
    %16 = arith.truncf %15 : vector<8x32xf32> to vector<8x32xbf16>
    %17 = vector.extract_strided_slice %8 {offsets = [0, 0], sizes = [8, 32], strides = [1, 1]} : vector<8x128xf32> to vector<8x32xf32>
    %18 = arith.truncf %17 : vector<8x32xf32> to vector<8x32xbf16>
    %cst_11 = arith.constant dense<0.000000e+00> : vector<8x8xf32>
    %19 = tpu.matmul %14, %16, %cst_11 {dimension_numbers = #tpu.dot_dimension_numbers<[1], [1], [0], [0], [0, 0, 1, 0], [], []>} : vector<8x32xbf16>, vector<8x32xbf16>, vector<8x8xf32> -> vector<8x8xf32>
    %cst_12 = arith.constant 0.176776692 : f32
    %20 = vector.broadcast %cst_12 : f32 to vector<8x8xf32>
    %21 = arith.mulf %19, %20 : vector<8x8xf32>
    %22 = vector.broadcast %10 : i32 to vector<8x8xi32>
    %23 = arith.cmpi slt, %11, %22 : vector<8x8xi32>
    %cst_13 = arith.constant -1.000000e+06 : f32
    %24 = vector.broadcast %cst_13 : f32 to vector<8x8xf32>
    %25 = arith.select %23, %21, %24 : vector<8x8xi1>, vector<8x8xf32>
    %cst_14 = arith.constant dense<0xFF800000> : vector<8xf32>
    %26 = vector.multi_reduction <maximumf>, %25, %cst_14 [1] : vector<8x8xf32> to vector<8xf32>
    %27 = vector.shape_cast %26 : vector<8xf32> to vector<8x1xf32>
    %28 = vector.broadcast %27 : vector<8x1xf32> to vector<8x8xf32>
    %29 = arith.subf %25, %28 : vector<8x8xf32>
    %30 = math.exp %29 : vector<8x8xf32>
    %cst_15 = arith.constant dense<0.000000e+00> : vector<8xf32>
    %31 = vector.multi_reduction <add>, %30, %cst_15 [1] : vector<8x8xf32> to vector<8xf32>
    %32 = vector.shape_cast %31 : vector<8xf32> to vector<8x1xf32>
    %33 = vector.broadcast %32 : vector<8x1xf32> to vector<8x8xf32>
    %34 = arith.divf %30, %33 : vector<8x8xf32>
    %35 = arith.truncf %34 : vector<8x8xf32> to vector<8x8xbf16>
    %cst_16 = arith.constant dense<0.000000e+00> : vector<8x32xf32>
    %36 = tpu.matmul %35, %18, %cst_16 {dimension_numbers = #tpu.dot_dimension_numbers<[1], [0], [0], [1], [0, 0, 1, 1], [], []>} : vector<8x8xbf16>, vector<8x32xbf16>, vector<8x32xf32> -> vector<8x32xf32>
    %37 = arith.truncf %36 : vector<8x32xf32> to vector<8x32xbf16>
    %c0_17 = arith.constant 0 : index
    %c0_18 = arith.constant 0 : index
    %38 = vector.load %arg6[%c0_17, %c0_18] : memref<128x128xbf16, #tpu.memory_space<vmem>>, vector<32x128xbf16>
    %cst_19 = arith.constant dense<0.000000e+00> : vector<8x128xf32>
    %39 = tpu.matmul %37, %38, %cst_19 {dimension_numbers = #tpu.dot_dimension_numbers<[1], [0], [0], [1], [0, 0, 1, 1], [], []>} : vector<8x32xbf16>, vector<32x128xbf16>, vector<8x128xf32> -> vector<8x128xf32>
    %40 = arith.addf %12, %39 : vector<8x128xf32>
    %41 = vector.extract_strided_slice %4 {offsets = [0, 32], sizes = [8, 32], strides = [1, 1]} : vector<8x128xf32> to vector<8x32xf32>
    %42 = arith.truncf %41 : vector<8x32xf32> to vector<8x32xbf16>
    %43 = vector.extract_strided_slice %6 {offsets = [0, 32], sizes = [8, 32], strides = [1, 1]} : vector<8x128xf32> to vector<8x32xf32>
    %44 = arith.truncf %43 : vector<8x32xf32> to vector<8x32xbf16>
    %45 = vector.extract_strided_slice %8 {offsets = [0, 32], sizes = [8, 32], strides = [1, 1]} : vector<8x128xf32> to vector<8x32xf32>
    %46 = arith.truncf %45 : vector<8x32xf32> to vector<8x32xbf16>
    %cst_20 = arith.constant dense<0.000000e+00> : vector<8x8xf32>
    %47 = tpu.matmul %42, %44, %cst_20 {dimension_numbers = #tpu.dot_dimension_numbers<[1], [1], [0], [0], [0, 0, 1, 0], [], []>} : vector<8x32xbf16>, vector<8x32xbf16>, vector<8x8xf32> -> vector<8x8xf32>
    %cst_21 = arith.constant 0.176776692 : f32
    %48 = vector.broadcast %cst_21 : f32 to vector<8x8xf32>
    %49 = arith.mulf %47, %48 : vector<8x8xf32>
    %50 = vector.broadcast %10 : i32 to vector<8x8xi32>
    %51 = arith.cmpi slt, %11, %50 : vector<8x8xi32>
    %cst_22 = arith.constant -1.000000e+06 : f32
    %52 = vector.broadcast %cst_22 : f32 to vector<8x8xf32>
    %53 = arith.select %51, %49, %52 : vector<8x8xi1>, vector<8x8xf32>
    %cst_23 = arith.constant dense<0xFF800000> : vector<8xf32>
    %54 = vector.multi_reduction <maximumf>, %53, %cst_23 [1] : vector<8x8xf32> to vector<8xf32>
    %55 = vector.shape_cast %54 : vector<8xf32> to vector<8x1xf32>
    %56 = vector.broadcast %55 : vector<8x1xf32> to vector<8x8xf32>
    %57 = arith.subf %53, %56 : vector<8x8xf32>
    %58 = math.exp %57 : vector<8x8xf32>
    %cst_24 = arith.constant dense<0.000000e+00> : vector<8xf32>
    %59 = vector.multi_reduction <add>, %58, %cst_24 [1] : vector<8x8xf32> to vector<8xf32>
    %60 = vector.shape_cast %59 : vector<8xf32> to vector<8x1xf32>
    %61 = vector.broadcast %60 : vector<8x1xf32> to vector<8x8xf32>
    %62 = arith.divf %58, %61 : vector<8x8xf32>
    %63 = arith.truncf %62 : vector<8x8xf32> to vector<8x8xbf16>
    %cst_25 = arith.constant dense<0.000000e+00> : vector<8x32xf32>
    %64 = tpu.matmul %63, %46, %cst_25 {dimension_numbers = #tpu.dot_dimension_numbers<[1], [0], [0], [1], [0, 0, 1, 1], [], []>} : vector<8x8xbf16>, vector<8x32xbf16>, vector<8x32xf32> -> vector<8x32xf32>
    %65 = arith.truncf %64 : vector<8x32xf32> to vector<8x32xbf16>
    %c32 = arith.constant 32 : index
    %c0_26 = arith.constant 0 : index
    %66 = vector.load %arg6[%c32, %c0_26] : memref<128x128xbf16, #tpu.memory_space<vmem>>, vector<32x128xbf16>
    %cst_27 = arith.constant dense<0.000000e+00> : vector<8x128xf32>
    %67 = tpu.matmul %65, %66, %cst_27 {dimension_numbers = #tpu.dot_dimension_numbers<[1], [0], [0], [1], [0, 0, 1, 1], [], []>} : vector<8x32xbf16>, vector<32x128xbf16>, vector<8x128xf32> -> vector<8x128xf32>
    %68 = arith.addf %40, %67 : vector<8x128xf32>
    %69 = vector.extract_strided_slice %4 {offsets = [0, 64], sizes = [8, 32], strides = [1, 1]} : vector<8x128xf32> to vector<8x32xf32>
    %70 = arith.truncf %69 : vector<8x32xf32> to vector<8x32xbf16>
    %71 = vector.extract_strided_slice %6 {offsets = [0, 64], sizes = [8, 32], strides = [1, 1]} : vector<8x128xf32> to vector<8x32xf32>
    %72 = arith.truncf %71 : vector<8x32xf32> to vector<8x32xbf16>
    %73 = vector.extract_strided_slice %8 {offsets = [0, 64], sizes = [8, 32], strides = [1, 1]} : vector<8x128xf32> to vector<8x32xf32>
    %74 = arith.truncf %73 : vector<8x32xf32> to vector<8x32xbf16>
    %cst_28 = arith.constant dense<0.000000e+00> : vector<8x8xf32>
    %75 = tpu.matmul %70, %72, %cst_28 {dimension_numbers = #tpu.dot_dimension_numbers<[1], [1], [0], [0], [0, 0, 1, 0], [], []>} : vector<8x32xbf16>, vector<8x32xbf16>, vector<8x8xf32> -> vector<8x8xf32>
    %cst_29 = arith.constant 0.176776692 : f32
    %76 = vector.broadcast %cst_29 : f32 to vector<8x8xf32>
    %77 = arith.mulf %75, %76 : vector<8x8xf32>
    %78 = vector.broadcast %10 : i32 to vector<8x8xi32>
    %79 = arith.cmpi slt, %11, %78 : vector<8x8xi32>
    %cst_30 = arith.constant -1.000000e+06 : f32
    %80 = vector.broadcast %cst_30 : f32 to vector<8x8xf32>
    %81 = arith.select %79, %77, %80 : vector<8x8xi1>, vector<8x8xf32>
    %cst_31 = arith.constant dense<0xFF800000> : vector<8xf32>
    %82 = vector.multi_reduction <maximumf>, %81, %cst_31 [1] : vector<8x8xf32> to vector<8xf32>
    %83 = vector.shape_cast %82 : vector<8xf32> to vector<8x1xf32>
    %84 = vector.broadcast %83 : vector<8x1xf32> to vector<8x8xf32>
    %85 = arith.subf %81, %84 : vector<8x8xf32>
    %86 = math.exp %85 : vector<8x8xf32>
    %cst_32 = arith.constant dense<0.000000e+00> : vector<8xf32>
    %87 = vector.multi_reduction <add>, %86, %cst_32 [1] : vector<8x8xf32> to vector<8xf32>
    %88 = vector.shape_cast %87 : vector<8xf32> to vector<8x1xf32>
    %89 = vector.broadcast %88 : vector<8x1xf32> to vector<8x8xf32>
    %90 = arith.divf %86, %89 : vector<8x8xf32>
    %91 = arith.truncf %90 : vector<8x8xf32> to vector<8x8xbf16>
    %cst_33 = arith.constant dense<0.000000e+00> : vector<8x32xf32>
    %92 = tpu.matmul %91, %74, %cst_33 {dimension_numbers = #tpu.dot_dimension_numbers<[1], [0], [0], [1], [0, 0, 1, 1], [], []>} : vector<8x8xbf16>, vector<8x32xbf16>, vector<8x32xf32> -> vector<8x32xf32>
    %93 = arith.truncf %92 : vector<8x32xf32> to vector<8x32xbf16>
    %c64 = arith.constant 64 : index
    %c0_34 = arith.constant 0 : index
    %94 = vector.load %arg6[%c64, %c0_34] : memref<128x128xbf16, #tpu.memory_space<vmem>>, vector<32x128xbf16>
    %cst_35 = arith.constant dense<0.000000e+00> : vector<8x128xf32>
    %95 = tpu.matmul %93, %94, %cst_35 {dimension_numbers = #tpu.dot_dimension_numbers<[1], [0], [0], [1], [0, 0, 1, 1], [], []>} : vector<8x32xbf16>, vector<32x128xbf16>, vector<8x128xf32> -> vector<8x128xf32>
    %96 = arith.addf %68, %95 : vector<8x128xf32>
    %97 = vector.extract_strided_slice %4 {offsets = [0, 96], sizes = [8, 32], strides = [1, 1]} : vector<8x128xf32> to vector<8x32xf32>
    %98 = arith.truncf %97 : vector<8x32xf32> to vector<8x32xbf16>
    %99 = vector.extract_strided_slice %6 {offsets = [0, 96], sizes = [8, 32], strides = [1, 1]} : vector<8x128xf32> to vector<8x32xf32>
    %100 = arith.truncf %99 : vector<8x32xf32> to vector<8x32xbf16>
    %101 = vector.extract_strided_slice %8 {offsets = [0, 96], sizes = [8, 32], strides = [1, 1]} : vector<8x128xf32> to vector<8x32xf32>
    %102 = arith.truncf %101 : vector<8x32xf32> to vector<8x32xbf16>
    %cst_36 = arith.constant dense<0.000000e+00> : vector<8x8xf32>
    %103 = tpu.matmul %98, %100, %cst_36 {dimension_numbers = #tpu.dot_dimension_numbers<[1], [1], [0], [0], [0, 0, 1, 0], [], []>} : vector<8x32xbf16>, vector<8x32xbf16>, vector<8x8xf32> -> vector<8x8xf32>
    %cst_37 = arith.constant 0.176776692 : f32
    %104 = vector.broadcast %cst_37 : f32 to vector<8x8xf32>
    %105 = arith.mulf %103, %104 : vector<8x8xf32>
    %106 = vector.broadcast %10 : i32 to vector<8x8xi32>
    %107 = arith.cmpi slt, %11, %106 : vector<8x8xi32>
    %cst_38 = arith.constant -1.000000e+06 : f32
    %108 = vector.broadcast %cst_38 : f32 to vector<8x8xf32>
    %109 = arith.select %107, %105, %108 : vector<8x8xi1>, vector<8x8xf32>
    %cst_39 = arith.constant dense<0xFF800000> : vector<8xf32>
    %110 = vector.multi_reduction <maximumf>, %109, %cst_39 [1] : vector<8x8xf32> to vector<8xf32>
    %111 = vector.shape_cast %110 : vector<8xf32> to vector<8x1xf32>
    %112 = vector.broadcast %111 : vector<8x1xf32> to vector<8x8xf32>
    %113 = arith.subf %109, %112 : vector<8x8xf32>
    %114 = math.exp %113 : vector<8x8xf32>
    %cst_40 = arith.constant dense<0.000000e+00> : vector<8xf32>
    %115 = vector.multi_reduction <add>, %114, %cst_40 [1] : vector<8x8xf32> to vector<8xf32>
    %116 = vector.shape_cast %115 : vector<8xf32> to vector<8x1xf32>
    %117 = vector.broadcast %116 : vector<8x1xf32> to vector<8x8xf32>
    %118 = arith.divf %114, %117 : vector<8x8xf32>
    %119 = arith.truncf %118 : vector<8x8xf32> to vector<8x8xbf16>
    %cst_41 = arith.constant dense<0.000000e+00> : vector<8x32xf32>
    %120 = tpu.matmul %119, %102, %cst_41 {dimension_numbers = #tpu.dot_dimension_numbers<[1], [0], [0], [1], [0, 0, 1, 1], [], []>} : vector<8x8xbf16>, vector<8x32xbf16>, vector<8x32xf32> -> vector<8x32xf32>
    %121 = arith.truncf %120 : vector<8x32xf32> to vector<8x32xbf16>
    %c96 = arith.constant 96 : index
    %c0_42 = arith.constant 0 : index
    %122 = vector.load %arg6[%c96, %c0_42] : memref<128x128xbf16, #tpu.memory_space<vmem>>, vector<32x128xbf16>
    %cst_43 = arith.constant dense<0.000000e+00> : vector<8x128xf32>
    %123 = tpu.matmul %121, %122, %cst_43 {dimension_numbers = #tpu.dot_dimension_numbers<[1], [0], [0], [1], [0, 0, 1, 1], [], []>} : vector<8x32xbf16>, vector<32x128xbf16>, vector<8x128xf32> -> vector<8x128xf32>
    %124 = arith.addf %96, %123 : vector<8x128xf32>
    %125 = arith.addf %1, %124 : vector<8x128xf32>
    %c0_44 = arith.constant 0 : index
    %c0_45 = arith.constant 0 : index
    %126 = vector.load %arg7[%c0_44, %c0_45] : memref<1x128xf32, #tpu.memory_space<vmem>>, vector<1x128xf32>
    %c0_46 = arith.constant 0 : index
    %c0_47 = arith.constant 0 : index
    %127 = vector.load %arg8[%c0_46, %c0_47] : memref<1x128xf32, #tpu.memory_space<vmem>>, vector<1x128xf32>
    %cst_48 = arith.constant dense<0.000000e+00> : vector<8xf32>
    %128 = vector.multi_reduction <add>, %125, %cst_48 [1] : vector<8x128xf32> to vector<8xf32>
    %129 = vector.shape_cast %128 : vector<8xf32> to vector<8x1xf32>
    %cst_49 = arith.constant 1.280000e+02 : f32
    %130 = vector.broadcast %cst_49 : f32 to vector<8x1xf32>
    %131 = arith.divf %129, %130 : vector<8x1xf32>
    %132 = vector.broadcast %131 : vector<8x1xf32> to vector<8x128xf32>
    %133 = arith.subf %125, %132 : vector<8x128xf32>
    %134 = arith.mulf %133, %133 : vector<8x128xf32>
    %cst_50 = arith.constant dense<0.000000e+00> : vector<8xf32>
    %135 = vector.multi_reduction <add>, %134, %cst_50 [1] : vector<8x128xf32> to vector<8xf32>
    %136 = vector.shape_cast %135 : vector<8xf32> to vector<8x1xf32>
    %cst_51 = arith.constant 1.280000e+02 : f32
    %137 = vector.broadcast %cst_51 : f32 to vector<8x1xf32>
    %138 = arith.divf %136, %137 : vector<8x1xf32>
    %cst_52 = arith.constant 9.99999974E-6 : f32
    %139 = vector.broadcast %cst_52 : f32 to vector<8x1xf32>
    %140 = arith.addf %138, %139 : vector<8x1xf32>
    %141 = math.rsqrt %140 : vector<8x1xf32>
    %142 = vector.broadcast %141 : vector<8x1xf32> to vector<8x128xf32>
    %143 = arith.mulf %133, %142 : vector<8x128xf32>
    %144 = vector.broadcast %126 : vector<1x128xf32> to vector<8x128xf32>
    %145 = arith.mulf %143, %144 : vector<8x128xf32>
    %146 = vector.broadcast %127 : vector<1x128xf32> to vector<8x128xf32>
    %147 = arith.addf %145, %146 : vector<8x128xf32>
    %c0_53 = arith.constant 0 : index
    %c0_54 = arith.constant 0 : index
    %c0_55 = arith.constant 0 : index
    %148 = vector.load %arg9[%c0_53, %c0_54, %c0_55] : memref<1x8x128xf32, #tpu.memory_space<vmem>>, vector<1x8x128xf32>
    %149 = vector.shape_cast %148 : vector<1x8x128xf32> to vector<8x128xf32>
    %150 = vector.shape_cast %147 : vector<8x128xf32> to vector<1x8x128xf32>
    tpu.vector_store %arg9[%c0_53, %c0_54, %c0_55], %150 {strides = array<i32>} : memref<1x8x128xf32, #tpu.memory_space<vmem>>, vector<1x8x128xf32>,
    return
  }
  func.func @transform_0(%arg0: i32, %arg1: memref<2xi32, #tpu.memory_space<smem>>) -> (i32, i32, i32) {
    %c0_i32 = arith.constant 0 : i32
    %c0_i32_0 = arith.constant 0 : i32
    %c0_i32_1 = arith.constant 0 : i32
    return %arg0, %c0_i32, %c0_i32_0 : i32, i32, i32
  }
  func.func @transform_1(%arg0: i32, %arg1: memref<2xi32, #tpu.memory_space<smem>>) -> (i32, i32) {
    %c0_i32 = arith.constant 0 : i32
    %c0_i32_0 = arith.constant 0 : i32
    %c0_i32_1 = arith.constant 0 : i32
    return %c0_i32, %c0_i32_0 : i32, i32
  }
  func.func @transform_2(%arg0: i32, %arg1: memref<2xi32, #tpu.memory_space<smem>>) -> (i32, i32) {
    %c0_i32 = arith.constant 0 : i32
    %c0_i32_0 = arith.constant 0 : i32
    %c0_i32_1 = arith.constant 0 : i32
    return %c0_i32, %c0_i32_0 : i32, i32
  }
  func.func @transform_3(%arg0: i32, %arg1: memref<2xi32, #tpu.memory_space<smem>>) -> (i32, i32) {
    %c0_i32 = arith.constant 0 : i32
    %c0_i32_0 = arith.constant 0 : i32
    %c0_i32_1 = arith.constant 0 : i32
    return %c0_i32, %c0_i32_0 : i32, i32
  }
  func.func @transform_4(%arg0: i32, %arg1: memref<2xi32, #tpu.memory_space<smem>>) -> (i32, i32) {
    %c0_i32 = arith.constant 0 : i32
    %c0_i32_0 = arith.constant 0 : i32
    %c0_i32_1 = arith.constant 0 : i32
    return %c0_i32, %c0_i32_0 : i32, i32
  }
  func.func @transform_5(%arg0: i32, %arg1: memref<2xi32, #tpu.memory_space<smem>>) -> (i32, i32) {
    %c0_i32 = arith.constant 0 : i32
    %c0_i32_0 = arith.constant 0 : i32
    %c0_i32_1 = arith.constant 0 : i32
    return %c0_i32, %c0_i32_0 : i32, i32
  }
  func.func @transform_6(%arg0: i32, %arg1: memref<2xi32, #tpu.memory_space<smem>>) -> (i32, i32) {
    %c0_i32 = arith.constant 0 : i32
    %c0_i32_0 = arith.constant 0 : i32
    %c0_i32_1 = arith.constant 0 : i32
    return %c0_i32, %c0_i32_0 : i32, i32
  }
  func.func @transform_7(%arg0: i32, %arg1: memref<2xi32, #tpu.memory_space<smem>>) -> (i32, i32, i32) {
    %c0_i32 = arith.constant 0 : i32
    %c0_i32_0 = arith.constant 0 : i32
    %c0_i32_1 = arith.constant 0 : i32
    return %arg0, %c0_i32, %c0_i32_0 : i32, i32, i32
  }
}

module attributes {stable_mosaic.version = 11 : i64} {
  func.func @_mha_addnorm_kernel(%arg0: i32, %arg1: memref<2xi32, #tpu.memory_space<smem>>, %arg2: memref<1x8x128xf32, #tpu.memory_space<vmem>>, %arg3: memref<128x128xbf16, #tpu.memory_space<vmem>>, %arg4: memref<128x128xbf16, #tpu.memory_space<vmem>>, %arg5: memref<128x128xbf16, #tpu.memory_space<vmem>>, %arg6: memref<128x128xbf16, #tpu.memory_space<vmem>>, %arg7: memref<1x128xf32, #tpu.memory_space<vmem>>, %arg8: memref<1x128xf32, #tpu.memory_space<vmem>>, %arg9: memref<1x8x128xf32, #tpu.memory_space<vmem>>) attributes {dimension_semantics = [#tpu.dimension_semantics<parallel>], iteration_bounds = array<i64: 2>, scalar_prefetch = 1 : i64, scratch_operands = 0 : i64, tpu.core_type = #tpu.core_type<tc>, window_params = [{transform_indices = @transform_0, window_bounds = array<i64: 1, 8, 128>}, {pipeline_mode = #tpu.pipeline_mode<synchronous>, transform_indices = @transform_1, window_bounds = array<i64: 128, 128>}, {pipeline_mode = #tpu.pipeline_mode<synchronous>, transform_indices = @transform_2, window_bounds = array<i64: 128, 128>}, {pipeline_mode = #tpu.pipeline_mode<synchronous>, transform_indices = @transform_3, window_bounds = array<i64: 128, 128>}, {pipeline_mode = #tpu.pipeline_mode<synchronous>, transform_indices = @transform_4, window_bounds = array<i64: 128, 128>}, {pipeline_mode = #tpu.pipeline_mode<synchronous>, transform_indices = @transform_5, window_bounds = array<i64: 1, 128>}, {pipeline_mode = #tpu.pipeline_mode<synchronous>, transform_indices = @transform_6, window_bounds = array<i64: 1, 128>}, {transform_indices = @transform_7, window_bounds = array<i64: 1, 8, 128>}]} {
    %c0 = arith.constant 0 : index
    %c0_0 = arith.constant 0 : index
    %c0_1 = arith.constant 0 : index
    %0 = vector.load %arg2[%c0, %c0_0, %c0_1] : memref<1x8x128xf32, #tpu.memory_space<vmem>>, vector<1x8x128xf32>
    %1 = vector.shape_cast %0 : vector<1x8x128xf32> to vector<8x128xf32>
    %2 = arith.truncf %1 : vector<8x128xf32> to vector<8x128xbf16>
    %c0_2 = arith.constant 0 : index
    %c0_3 = arith.constant 0 : index
    %3 = vector.load %arg3[%c0_2, %c0_3] : memref<128x128xbf16, #tpu.memory_space<vmem>>, vector<128x128xbf16>
    %cst = arith.constant dense<0.000000e+00> : vector<8x128xf32>
    %4 = tpu.matmul %2, %3, %cst {dimension_numbers = #tpu.dot_dimension_numbers<[1], [0], [0], [1], [0, 0, 1, 1], [], []>} : vector<8x128xbf16>, vector<128x128xbf16>, vector<8x128xf32> -> vector<8x128xf32>
    %c0_4 = arith.constant 0 : index
    %c0_5 = arith.constant 0 : index
    %5 = vector.load %arg4[%c0_4, %c0_5] : memref<128x128xbf16, #tpu.memory_space<vmem>>, vector<128x128xbf16>
    %cst_6 = arith.constant dense<0.000000e+00> : vector<8x128xf32>
    %6 = tpu.matmul %2, %5, %cst_6 {dimension_numbers = #tpu.dot_dimension_numbers<[1], [0], [0], [1], [0, 0, 1, 1], [], []>} : vector<8x128xbf16>, vector<128x128xbf16>, vector<8x128xf32> -> vector<8x128xf32>
    %c0_7 = arith.constant 0 : index
    %c0_8 = arith.constant 0 : index
    %7 = vector.load %arg5[%c0_7, %c0_8] : memref<128x128xbf16, #tpu.memory_space<vmem>>, vector<128x128xbf16>
    %cst_9 = arith.constant dense<0.000000e+00> : vector<8x128xf32>
    %8 = tpu.matmul %2, %7, %cst_9 {dimension_numbers = #tpu.dot_dimension_numbers<[1], [0], [0], [1], [0, 0, 1, 1], [], []>} : vector<8x128xbf16>, vector<128x128xbf16>, vector<8x128xf32> -> vector<8x128xf32>
    %9 = arith.index_cast %arg0 : i32 to index
    %10 = memref.load %arg1[%9] : memref<2xi32, #tpu.memory_space<smem>>
    %11 = tpu.iota {dimensions = array<i32: 1>} : vector<8x8xi32>
    %cst_10 = arith.constant 0.000000e+00 : f32
    %12 = vector.broadcast %cst_10 : f32 to vector<8x128xf32>
    %13 = vector.extract_strided_slice %4 {offsets = [0, 0], sizes = [8, 32], strides = [1, 1]} : vector<8x128xf32> to vector<8x32xf32>
    %14 = arith.truncf %13 : vector<8x32xf32> to vector<8x32xbf16>
    %15 = vector.extract_strided_slice %6 {offsets = [0, 0], sizes = [8, 32], strides = [1, 1]} : vector<8x128xf32> to vector<8x32xf32>
    %16 = arith.truncf %15 : vector<8x32xf32> to vector<8x32xbf16>
    %17 = vector.extract_strided_slice %8 {offsets = [0, 0], sizes = [8, 32], strides = [1, 1]} : vector<8x128xf32> to vector<8x32xf32>
    %18 = arith.truncf %17 : vector<8x32xf32> to vector<8x32xbf16>
    %cst_11 = arith.constant dense<0.000000e+00> : vector<8x8xf32>
    %19 = tpu.matmul %14, %16, %cst_11 {dimension_numbers = #tpu.dot_dimension_numbers<[1], [1], [0], [0], [0, 0, 1, 0], [], []>} : vector<8x32xbf16>, vector<8x32xbf16>, vector<8x8xf32> -> vector<8x8xf32>
    %cst_12 = arith.constant 0.176776692 : f32
    %20 = vector.broadcast %cst_12 : f32 to vector<8x8xf32>
    %21 = arith.mulf %19, %20 : vector<8x8xf32>
    %22 = vector.broadcast %10 : i32 to vector<8x8xi32>
    %23 = arith.cmpi slt, %11, %22 : vector<8x8xi32>
    %cst_13 = arith.constant -1.000000e+06 : f32
    %24 = vector.broadcast %cst_13 : f32 to vector<8x8xf32>
    %25 = arith.select %23, %21, %24 : vector<8x8xi1>, vector<8x8xf32>
    %cst_14 = arith.constant dense<0xFF800000> : vector<8xf32>
    %26 = vector.multi_reduction <maximumf>, %25, %cst_14 [1] : vector<8x8xf32> to vector<8xf32>
    %27 = vector.shape_cast %26 : vector<8xf32> to vector<8x1xf32>
    %28 = vector.broadcast %27 : vector<8x1xf32> to vector<8x8xf32>
    %29 = arith.subf %25, %28 : vector<8x8xf32>
    %30 = math.exp %29 : vector<8x8xf32>
    %cst_15 = arith.constant dense<0.000000e+00> : vector<8xf32>
    %31 = vector.multi_reduction <add>, %30, %cst_15 [1] : vector<8x8xf32> to vector<8xf32>
    %32 = vector.shape_cast %31 : vector<8xf32> to vector<8x1xf32>
    %33 = vector.broadcast %32 : vector<8x1xf32> to vector<8x8xf32>
    %34 = arith.divf %30, %33 : vector<8x8xf32>
    %35 = arith.truncf %34 : vector<8x8xf32> to vector<8x8xbf16>
    %cst_16 = arith.constant dense<0.000000e+00> : vector<8x32xf32>
    %36 = tpu.matmul %35, %18, %cst_16 {dimension_numbers = #tpu.dot_dimension_numbers<[1], [0], [0], [1], [0, 0, 1, 1], [], []>} : vector<8x8xbf16>, vector<8x32xbf16>, vector<8x32xf32> -> vector<8x32xf32>
    %37 = arith.truncf %36 : vector<8x32xf32> to vector<8x32xbf16>
    %c0_17 = arith.constant 0 : index
    %c0_18 = arith.constant 0 : index
    %38 = vector.load %arg6[%c0_17, %c0_18] : memref<128x128xbf16, #tpu.memory_space<vmem>>, vector<32x128xbf16>
    %cst_19 = arith.constant dense<0.000000e+00> : vector<8x128xf32>
    %39 = tpu.matmul %37, %38, %cst_19 {dimension_numbers = #tpu.dot_dimension_numbers<[1], [0], [0], [1], [0, 0, 1, 1], [], []>} : vector<8x32xbf16>, vector<32x128xbf16>, vector<8x128xf32> -> vector<8x128xf32>
    %40 = arith.addf %12, %39 : vector<8x128xf32>
    %41 = vector.extract_strided_slice %4 {offsets = [0, 32], sizes = [8, 32], strides = [1, 1]} : vector<8x128xf32> to vector<8x32xf32>
    %42 = arith.truncf %41 : vector<8x32xf32> to vector<8x32xbf16>
    %43 = vector.extract_strided_slice %6 {offsets = [0, 32], sizes = [8, 32], strides = [1, 1]} : vector<8x128xf32> to vector<8x32xf32>
    %44 = arith.truncf %43 : vector<8x32xf32> to vector<8x32xbf16>
    %45 = vector.extract_strided_slice %8 {offsets = [0, 32], sizes = [8, 32], strides = [1, 1]} : vector<8x128xf32> to vector<8x32xf32>
    %46 = arith.truncf %45 : vector<8x32xf32> to vector<8x32xbf16>
    %cst_20 = arith.constant dense<0.000000e+00> : vector<8x8xf32>
    %47 = tpu.matmul %42, %44, %cst_20 {dimension_numbers = #tpu.dot_dimension_numbers<[1], [1], [0], [0], [0, 0, 1, 0], [], []>} : vector<8x32xbf16>, vector<8x32xbf16>, vector<8x8xf32> -> vector<8x8xf32>
    %cst_21 = arith.constant 0.176776692 : f32
    %48 = vector.broadcast %cst_21 : f32 to vector<8x8xf32>
    %49 = arith.mulf %47, %48 : vector<8x8xf32>
    %50 = vector.broadcast %10 : i32 to vector<8x8xi32>
    %51 = arith.cmpi slt, %11, %50 : vector<8x8xi32>
    %cst_22 = arith.constant -1.000000e+06 : f32
    %52 = vector.broadcast %cst_22 : f32 to vector<8x8xf32>
    %53 = arith.select %51, %49, %52 : vector<8x8xi1>, vector<8x8xf32>
    %cst_23 = arith.constant dense<0xFF800000> : vector<8xf32>
    %54 = vector.multi_reduction <maximumf>, %53, %cst_23 [1] : vector<8x8xf32> to vector<8xf32>
    %55 = vector.shape_cast %54 : vector<8xf32> to vector<8x1xf32>
    %56 = vector.broadcast %55 : vector<8x1xf32> to vector<8x8xf32>
    %57 = arith.subf %53, %56 : vector<8x8xf32>
    %58 = math.exp %57 : vector<8x8xf32>
    %cst_24 = arith.constant dense<0.000000e+00> : vector<8xf32>
    %59 = vector.multi_reduction <add>, %58, %cst_24 [1] : vector<8x8xf32> to vector<8xf32>
    %60 = vector.shape_cast %59 : vector<8xf32> to vector<8x1xf32>
    %61 = vector.broadcast %60 : vector<8x1xf32> to vector<8x8xf32>
    %62 = arith.divf %58, %61 : vector<8x8xf32>
    %63 = arith.truncf %62 : vector<8x8xf32> to vector<8x8xbf16>
    %cst_25 = arith.constant dense<0.000000e+00> : vector<8x32xf32>
    %64 = tpu.matmul %63, %46, %cst_25 {dimension_numbers = #tpu.dot_dimension_numbers<[1], [0], [0], [1], [0, 0, 1, 1], [], []>} : vector<8x8xbf16>, vector<8x32xbf16>, vector<8x32xf32> -> vector<8x32xf32>
    %65 = arith.truncf %64 : vector<8x32xf32> to vector<8x32xbf16>
    %c32 = arith.constant 32 : index
    %c0_26 = arith.constant 0 : index
    %66 = vector.load %arg6[%c32, %c0_26] : memref<128x128xbf16, #tpu.memory_space<vmem>>, vector<32x128xbf16>
    %cst_27 = arith.constant dense<0.000000e+00> : vector<8x128xf32>
    %67 = tpu.matmul %65, %66, %cst_27 {dimension_numbers = #tpu.dot_dimension_numbers<[1], [0], [0], [1], [0, 0, 1, 1], [], []>} : vector<8x32xbf16>, vector<32x128xbf16>, vector<8x128xf32> -> vector<8x128xf32>
    %68 = arith.addf %40, %67 : vector<8x128xf32>
    %69 = vector.extract_strided_slice %4 {offsets = [0, 64], sizes = [8, 32], strides = [1, 1]} : vector<8x128xf32> to vector<8x32xf32>
    %70 = arith.truncf %69 : vector<8x32xf32> to vector<8x32xbf16>
    %71 = vector.extract_strided_slice %6 {offsets = [0, 64], sizes = [8, 32], strides = [1, 1]} : vector<8x128xf32> to vector<8x32xf32>
    %72 = arith.truncf %71 : vector<8x32xf32> to vector<8x32xbf16>
    %73 = vector.extract_strided_slice %8 {offsets = [0, 64], sizes = [8, 32], strides = [1, 1]} : vector<8x128xf32> to vector<8x32xf32>
    %74 = arith.truncf %73 : vector<8x32xf32> to vector<8x32xbf16>
    %cst_28 = arith.constant dense<0.000000e+00> : vector<8x8xf32>
    %75 = tpu.matmul %70, %72, %cst_28 {dimension_numbers = #tpu.dot_dimension_numbers<[1], [1], [0], [0], [0, 0, 1, 0], [], []>} : vector<8x32xbf16>, vector<8x32xbf16>, vector<8x8xf32> -> vector<8x8xf32>
    %cst_29 = arith.constant 0.176776692 : f32
    %76 = vector.broadcast %cst_29 : f32 to vector<8x8xf32>
    %77 = arith.mulf %75, %76 : vector<8x8xf32>
    %78 = vector.broadcast %10 : i32 to vector<8x8xi32>
    %79 = arith.cmpi slt, %11, %78 : vector<8x8xi32>
    %cst_30 = arith.constant -1.000000e+06 : f32
    %80 = vector.broadcast %cst_30 : f32 to vector<8x8xf32>
    %81 = arith.select %79, %77, %80 : vector<8x8xi1>, vector<8x8xf32>
    %cst_31 = arith.constant dense<0xFF800000> : vector<8xf32>
    %82 = vector.multi_reduction <maximumf>, %81, %cst_31 [1] : vector<8x8xf32> to vector<8xf32>
    %83 = vector.shape_cast %82 : vector<8xf32> to vector<8x1xf32>
    %84 = vector.broadcast %83 : vector<8x1xf32> to vector<8x8xf32>
    %85 = arith.subf %81, %84 : vector<8x8xf32>
    %86 = math.exp %85 : vector<8x8xf32>
    %cst_32 = arith.constant dense<0.000000e+00> : vector<8xf32>
    %87 = vector.multi_reduction <add>, %86, %cst_32 [1] : vector<8x8xf32> to vector<8xf32>
    %88 = vector.shape_cast %87 : vector<8xf32> to vector<8x1xf32>
    %89 = vector.broadcast %88 : vector<8x1xf32> to vector<8x8xf32>
    %90 = arith.divf %86, %89 : vector<8x8xf32>
    %91 = arith.truncf %90 : vector<8x8xf32> to vector<8x8xbf16>
    %cst_33 = arith.constant dense<0.000000e+00> : vector<8x32xf32>
    %92 = tpu.matmul %91, %74, %cst_33 {dimension_numbers = #tpu.dot_dimension_numbers<[1], [0], [0], [1], [0, 0, 1, 1], [], []>} : vector<8x8xbf16>, vector<8x32xbf16>, vector<8x32xf32> -> vector<8x32xf32>
    %93 = arith.truncf %92 : vector<8x32xf32> to vector<8x32xbf16>
    %c64 = arith.constant 64 : index
    %c0_34 = arith.constant 0 : index
    %94 = vector.load %arg6[%c64, %c0_34] : memref<128x128xbf16, #tpu.memory_space<vmem>>, vector<32x128xbf16>
    %cst_35 = arith.constant dense<0.000000e+00> : vector<8x128xf32>
    %95 = tpu.matmul %93, %94, %cst_35 {dimension_numbers = #tpu.dot_dimension_numbers<[1], [0], [0], [1], [0, 0, 1, 1], [], []>} : vector<8x32xbf16>, vector<32x128xbf16>, vector<8x128xf32> -> vector<8x128xf32>
    %96 = arith.addf %68, %95 : vector<8x128xf32>
    %97 = vector.extract_strided_slice %4 {offsets = [0, 96], sizes = [8, 32], strides = [1, 1]} : vector<8x128xf32> to vector<8x32xf32>
    %98 = arith.truncf %97 : vector<8x32xf32> to vector<8x32xbf16>
    %99 = vector.extract_strided_slice %6 {offsets = [0, 96], sizes = [8, 32], strides = [1, 1]} : vector<8x128xf32> to vector<8x32xf32>
    %100 = arith.truncf %99 : vector<8x32xf32> to vector<8x32xbf16>
    %101 = vector.extract_strided_slice %8 {offsets = [0, 96], sizes = [8, 32], strides = [1, 1]} : vector<8x128xf32> to vector<8x32xf32>
    %102 = arith.truncf %101 : vector<8x32xf32> to vector<8x32xbf16>
    %cst_36 = arith.constant dense<0.000000e+00> : vector<8x8xf32>
    %103 = tpu.matmul %98, %100, %cst_36 {dimension_numbers = #tpu.dot_dimension_numbers<[1], [1], [0], [0], [0, 0, 1, 0], [], []>} : vector<8x32xbf16>, vector<8x32xbf16>, vector<8x8xf32> -> vector<8x8xf32>
    %cst_37 = arith.constant 0.176776692 : f32
    %104 = vector.broadcast %cst_37 : f32 to vector<8x8xf32>
    %105 = arith.mulf %103, %104 : vector<8x8xf32>
    %106 = vector.broadcast %10 : i32 to vector<8x8xi32>
    %107 = arith.cmpi slt, %11, %106 : vector<8x8xi32>
    %cst_38 = arith.constant -1.000000e+06 : f32
    %108 = vector.broadcast %cst_38 : f32 to vector<8x8xf32>
    %109 = arith.select %107, %105, %108 : vector<8x8xi1>, vector<8x8xf32>
    %cst_39 = arith.constant dense<0xFF800000> : vector<8xf32>
    %110 = vector.multi_reduction <maximumf>, %109, %cst_39 [1] : vector<8x8xf32> to vector<8xf32>
    %111 = vector.shape_cast %110 : vector<8xf32> to vector<8x1xf32>
    %112 = vector.broadcast %111 : vector<8x1xf32> to vector<8x8xf32>
    %113 = arith.subf %109, %112 : vector<8x8xf32>
    %114 = math.exp %113 : vector<8x8xf32>
    %cst_40 = arith.constant dense<0.000000e+00> : vector<8xf32>
    %115 = vector.multi_reduction <add>, %114, %cst_40 [1] : vector<8x8xf32> to vector<8xf32>
    %116 = vector.shape_cast %115 : vector<8xf32> to vector<8x1xf32>
    %117 = vector.broadcast %116 : vector<8x1xf32> to vector<8x8xf32>
    %118 = arith.divf %114, %117 : vector<8x8xf32>
    %119 = arith.truncf %118 : vector<8x8xf32> to vector<8x8xbf16>
    %cst_41 = arith.constant dense<0.000000e+00> : vector<8x32xf32>
    %120 = tpu.matmul %119, %102, %cst_41 {dimension_numbers = #tpu.dot_dimension_numbers<[1], [0], [0], [1], [0, 0, 1, 1], [], []>} : vector<8x8xbf16>, vector<8x32xbf16>, vector<8x32xf32> -> vector<8x32xf32>
    %121 = arith.truncf %120 : vector<8x32xf32> to vector<8x32xbf16>
    %c96 = arith.constant 96 : index
    %c0_42 = arith.constant 0 : index
    %122 = vector.load %arg6[%c96, %c0_42] : memref<128x128xbf16, #tpu.memory_space<vmem>>, vector<32x128xbf16>
    %cst_43 = arith.constant dense<0.000000e+00> : vector<8x128xf32>
    %123 = tpu.matmul %121, %122, %cst_43 {dimension_numbers = #tpu.dot_dimension_numbers<[1], [0], [0], [1], [0, 0, 1, 1], [], []>} : vector<8x32xbf16>, vector<32x128xbf16>, vector<8x128xf32> -> vector<8x128xf32>
    %124 = arith.addf %96, %123 : vector<8x128xf32>
    %125 = arith.addf %1, %124 : vector<8x128xf32>
    %c0_44 = arith.constant 0 : index
    %c0_45 = arith.constant 0 : index
    %126 = vector.load %arg7[%c0_44, %c0_45] : memref<1x128xf32, #tpu.memory_space<vmem>>, vector<1x128xf32>
    %c0_46 = arith.constant 0 : index
    %c0_47 = arith.constant 0 : index
    %127 = vector.load %arg8[%c0_46, %c0_47] : memref<1x128xf32, #tpu.memory_space<vmem>>, vector<1x128xf32>
    %cst_48 = arith.constant dense<0.000000e+00> : vector<8xf32>
    %128 = vector.multi_reduction <add>, %125, %cst_48 [1] : vector<8x128xf32> to vector<8xf32>
    %129 = vector.shape_cast %128 : vector<8xf32> to vector<8x1xf32>
    %cst_49 = arith.constant 1.280000e+02 : f32
    %130 = vector.broadcast %cst_49 : f32 to vector<8x1xf32>
    %131 = arith.divf %129, %130 : vector<8x1xf32>
    %132 = vector.broadcast %131 : vector<8x1xf32> to vector<8x128xf32>
    %133 = arith.subf %125, %132 : vector<8x128xf32>
    %134 = arith.mulf %133, %133 : vector<8x128xf32>
    %cst_50 = arith.constant dense<0.000000e+00> : vector<8xf32>
    %135 = vector.multi_reduction <add>, %134, %cst_50 [1] : vector<8x128xf32> to vector<8xf32>
    %136 = vector.shape_cast %135 : vector<8xf32> to vector<8x1xf32>
    %cst_51 = arith.constant 1.280000e+02 : f32
    %137 = vector.broadcast %cst_51 : f32 to vector<8x1xf32>
    %138 = arith.divf %136, %137 : vector<8x1xf32>
    %cst_52 = arith.constant 9.99999974E-6 : f32
    %139 = vector.broadcast %cst_52 : f32 to vector<8x1xf32>
    %140 = arith.addf %138, %139 : vector<8x1xf32>
    %141 = math.rsqrt %140 : vector<8x1xf32>
    %142 = vector.broadcast %141 : vector<8x1xf32> to vector<8x128xf32>
    %143 = arith.mulf %133, %142 : vector<8x128xf32>
    %144 = vector.broadcast %126 : vector<1x128xf32> to vector<8x128xf32>
    %145 = arith.mulf %143, %144 : vector<8x128xf32>
    %146 = vector.broadcast %127 : vector<1x128xf32> to vector<8x128xf32>
    %147 = arith.addf %145, %146 : vector<8x128xf32>
    %c0_53 = arith.constant 0 : index
    %c0_54 = arith.constant 0 : index
    %c0_55 = arith.constant 0 : index
    %148 = vector.load %arg9[%c0_53, %c0_54, %c0_55] : memref<1x8x128xf32, #tpu.memory_space<vmem>>, vector<1x8x128xf32>
    %149 = vector.shape_cast %148 : vector<1x8x128xf32> to vector<8x128xf32>
    %150 = vector.shape_cast %147 : vector<8x128xf32> to vector<1x8x128xf32>
    tpu.vector_store %arg9[%c0_53, %c0_54, %c0_55], %150 {strides = array<i32>} : memref<1x8x128xf32, #tpu.memory_space<vmem>>, vector<1x8x128xf32>,
    return
  }
  func.func @transform_0(%arg0: i32, %arg1: memref<2xi32, #tpu.memory_space<smem>>) -> (i32, i32, i32) {
    %c0_i32 = arith.constant 0 : i32
    %c0_i32_0 = arith.constant 0 : i32
    %c0_i32_1 = arith.constant 0 : i32
    return %arg0, %c0_i32, %c0_i32_0 : i32, i32, i32
  }
  func.func @transform_1(%arg0: i32, %arg1: memref<2xi32, #tpu.memory_space<smem>>) -> (i32, i32) {
    %c0_i32 = arith.constant 0 : i32
    %c0_i32_0 = arith.constant 0 : i32
    %c0_i32_1 = arith.constant 0 : i32
    return %c0_i32, %c0_i32_0 : i32, i32
  }
  func.func @transform_2(%arg0: i32, %arg1: memref<2xi32, #tpu.memory_space<smem>>) -> (i32, i32) {
    %c0_i32 = arith.constant 0 : i32
    %c0_i32_0 = arith.constant 0 : i32
    %c0_i32_1 = arith.constant 0 : i32
    return %c0_i32, %c0_i32_0 : i32, i32
  }
  func.func @transform_3(%arg0: i32, %arg1: memref<2xi32, #tpu.memory_space<smem>>) -> (i32, i32) {
    %c0_i32 = arith.constant 0 : i32
    %c0_i32_0 = arith.constant 0 : i32
    %c0_i32_1 = arith.constant 0 : i32
    return %c0_i32, %c0_i32_0 : i32, i32
  }
  func.func @transform_4(%arg0: i32, %arg1: memref<2xi32, #tpu.memory_space<smem>>) -> (i32, i32) {
    %c0_i32 = arith.constant 0 : i32
    %c0_i32_0 = arith.constant 0 : i32
    %c0_i32_1 = arith.constant 0 : i32
    return %c0_i32, %c0_i32_0 : i32, i32
  }
  func.func @transform_5(%arg0: i32, %arg1: memref<2xi32, #tpu.memory_space<smem>>) -> (i32, i32) {
    %c0_i32 = arith.constant 0 : i32
    %c0_i32_0 = arith.constant 0 : i32
    %c0_i32_1 = arith.constant 0 : i32
    return %c0_i32, %c0_i32_0 : i32, i32
  }
  func.func @transform_6(%arg0: i32, %arg1: memref<2xi32, #tpu.memory_space<smem>>) -> (i32, i32) {
    %c0_i32 = arith.constant 0 : i32
    %c0_i32_0 = arith.constant 0 : i32
    %c0_i32_1 = arith.constant 0 : i32
    return %c0_i32, %c0_i32_0 : i32, i32
  }
  func.func @transform_7(%arg0: i32, %arg1: memref<2xi32, #tpu.memory_space<smem>>) -> (i32, i32, i32) {
    %c0_i32 = arith.constant 0 : i32
    %c0_i32_0 = arith.constant 0 : i32
    %c0_i32_1 = arith.constant 0 : i32
    return %arg0, %c0_i32, %c0_i32_0 : i32, i32, i32
  }
}

</mosaic_0001>

<llo_original>
// kernel: tpu_custom_call.1
$region0: #{tpu_custom_call.1}
  #allocation0 [shape = 'u32[]', space=smem, size = 0x4, offset = 0x4, fixed_abs, tag = 'smem constant byte address 0x4 - core index']
  #allocation1 [shape = 'u32[144,128]{1,0:T(1,128)}', space=vmem, size = 0x12000, scoped, tag = 'internal scratch']
  #allocation2 [shape = 's32[1]{0}', space=sflag, size = 0x4, scoped, tag = 'scoped memory for tpu_custom_call.1']
  #allocation3 [shape = 'u8[512]{0}', space=smem, size = 0x200, scoped, tag = 'prefetched SMEM operand 0']
  %s0 = inlined_call_operand.hbm [shape: s32[2], index: 0, kind: input, shape index: {}]
  %s1 = inlined_call_operand.hbm [shape: f32[2,8,128], index: 1, kind: input, shape index: {}]
  %s2 = inlined_call_operand.hbm [shape: bf16[128,128], index: 2, kind: input, shape index: {}]
  %s3 = inlined_call_operand.hbm [shape: bf16[128,128], index: 3, kind: input, shape index: {}]
  %s4 = inlined_call_operand.hbm [shape: bf16[128,128], index: 4, kind: input, shape index: {}]
  %s5 = inlined_call_operand.hbm [shape: bf16[128,128], index: 5, kind: input, shape index: {}]
  %s6 = inlined_call_operand.hbm [shape: f32[1,128], index: 6, kind: input, shape index: {}]
  %s7 = inlined_call_operand.hbm [shape: f32[1,128], index: 7, kind: input, shape index: {}]
  %s8 = inlined_call_operand.hbm [shape: f32[2,8,128], index: 8, kind: output, shape index: {}]
  %s9 = sld [smem:[#allocation0]]
  $region89: #{tpu_custom_call.1} parent=0
    _
  %s11 = ssub.s32 1, %s9
  %s12 = scalar_select 0, %s11, %s9
  %14 = dma.hbm_to_smem %s0, 16, [#allocation3], [#allocation2]
  %15 = dma.done [#allocation2], 16
  %16 = sfence
  $region1: #{tpu_custom_call.1} parent=0
    #allocation4 [shape = 'u8[8192]{0}', space=vmem, size = 0x2000, scoped, tag = 'input window, operand 1']
    #allocation5 [shape = 's32[2]{0}', space=sflag, size = 0x8, scoped, tag = 'scoped memory for tpu_custom_call.1']
    #allocation6 [shape = 's32[2]{0}', space=sflag, size = 0x8, scoped, tag = 'scoped memory for tpu_custom_call.1']
    #allocation7 [shape = 'u8[32768]{0}', space=vmem, size = 0x8000, scoped, tag = 'input window, operand 2, single buffered']
    #allocation8 [shape = 's32[1]{0}', space=sflag, size = 0x4, scoped, tag = 'scoped memory for tpu_custom_call.1']
    #allocation9 [shape = 'u8[32768]{0}', space=vmem, size = 0x8000, scoped, tag = 'input window, operand 3, single buffered']
    #allocation10 [shape = 'u8[32768]{0}', space=vmem, size = 0x8000, scoped, tag = 'input window, operand 4, single buffered']
    #allocation11 [shape = 's32[1]{0}', space=sflag, size = 0x4, scoped, tag = 'scoped memory for tpu_custom_call.1']
    #allocation12 [shape = 'u8[32768]{0}', space=vmem, size = 0x8000, scoped, tag = 'input window, operand 5, single buffered']
    #allocation13 [shape = 'u8[512]{0}', space=vmem, size = 0x400, scoped, tag = 'input window, operand 6, single buffered']
    #allocation14 [shape = 's32[1]{0}', space=sflag, size = 0x4, scoped, tag = 'scoped memory for tpu_custom_call.1']
    #allocation15 [shape = 'u8[512]{0}', space=vmem, size = 0x400, scoped, tag = 'input window, operand 7, single buffered']
    #allocation16 [shape = 'u8[8192]{0}', space=vmem, size = 0x2000, scoped, tag = 'output window, operand 0']
    %17 = vsyncpa [#allocation5], 0
    %s18 = scalar_lea.sflag [#allocation5], 1
    %19 = vsyncpa %s18, 0
    %20 = vsyncpa [#allocation8], 0
    %21 = vsyncpa [#allocation11], 0
    %22 = vsyncpa [#allocation14], 0
    %23 = vsyncpa [#allocation6], 0
    %s24 = scalar_lea.sflag [#allocation6], 1
    %25 = vsyncpa %s24, 0
    loop: start=0, step=1, limit=4
    $region2: #{tpu_custom_call.1} parent=1 // loop_pre_header
      _
    $region3: #{tpu_custom_call.1} parent=1 // loop_header
      %s27 = sphi 0, %s31
      %p28 = scmp.ge.s32.totalorder %s27, 4
      %s37 = sphi 0, %s39
      %s40 = sphi 0, %s37
      %s41 = sphi 0, %s40
      %s57 = sphi 0, %s41
      %s61 = sphi 0, %s61
      %s63 = sphi 0, %s61
      %s64 = sphi 0, %s63
      %s78 = sphi 0, %s64
      %s82 = sphi 0, %s82
      %s84 = sphi 0, %s82
      %s85 = sphi 0, %s84
      %s99 = sphi 0, %s85
      %s103 = sphi 0, %s103
      %s105 = sphi 0, %s103
      %s106 = sphi 0, %s105
      %s120 = sphi 0, %s106
      %s124 = sphi 0, %s124
      %s126 = sphi 0, %s124
      %s127 = sphi 0, %s126
      %s141 = sphi 0, %s127
      %s145 = sphi 0, %s145
      %s147 = sphi 0, %s145
      %s148 = sphi 0, %s147
      %s162 = sphi 0, %s148
      %s166 = sphi 0, %s166
      %s168 = sphi 0, %s166
      %s169 = sphi 0, %s168
      %s183 = sphi 0, %s169
      %s189 = sphi 0, %s191
      %s192 = sphi 0, %s189
      %s193 = sphi 0, %s192
      %s209 = sphi 0, %s193
    $region4: #{tpu_custom_call.1} parent=1 // loop_header_branch
      %30 = sbr.rel (%p28) target = $region8
    $region5: #{tpu_custom_call.1} parent=1 // loop_body
      %s32 = ssub.s32 %s27, 1
      %s33 = ssub.s32 %s27, 2
      %s34 = sadd.s32 %s27, 1
      %s35 = ssub.s32 %s27, %s34
      %p36 = scmp.eq.s32.totalorder %s35, 0
      %s38 = sadd.s32 %s37, 1
      %s39 = scalar_select %p36, %s37, %s38
      %p42 = pneg %p36
      %p43 = scmp.eq.s32.totalorder %s27, 1
      %p44 = por %p42, %p43
      %p45 = scmp.ne.s32.totalorder %s37, %s40
      %p46 = scmp.eq.s32.totalorder %s27, 0
      %p47 = por %p45, %p46
      %p48 = scmp.ne.s32.totalorder %s37, %s40
      %p49 = scmp.eq.s32.totalorder %s32, 1
      %p50 = por %p48, %p49
      %p51 = scmp.ne.s32.totalorder %s40, %s41
      %p52 = scmp.eq.s32.totalorder %s32, 0
      %p53 = por %p51, %p52
      %p54 = scmp.ne.s32.totalorder %s40, %s41
      %p55 = scmp.eq.s32.totalorder %s33, 1
      %p56 = por %p54, %p55
      %p58 = scmp.ne.s32.totalorder %s41, %s57
      %p59 = scmp.eq.s32.totalorder %s33, 0
      %p60 = por %p58, %p59
      %s62 = sadd.s32 %s61, 1
      %p65 = scmp.eq.s32.totalorder %s27, 1
      %p66 = scmp.ne.s32.totalorder %s61, %s63
      %p67 = scmp.eq.s32.totalorder %s27, 0
      %p68 = por %p66, %p67
      %p69 = scmp.ne.s32.totalorder %s61, %s63
      %p70 = scmp.eq.s32.totalorder %s32, 1
      %p71 = por %p69, %p70
      %p72 = scmp.ne.s32.totalorder %s63, %s64
      %p73 = scmp.eq.s32.totalorder %s32, 0
      %p74 = por %p72, %p73
      %p75 = scmp.ne.s32.totalorder %s63, %s64
      %p76 = scmp.eq.s32.totalorder %s33, 1
      %p77 = por %p75, %p76
      %p79 = scmp.ne.s32.totalorder %s64, %s78
      %p80 = scmp.eq.s32.totalorder %s33, 0
      %p81 = por %p79, %p80
      %s83 = sadd.s32 %s82, 1
      %p86 = scmp.eq.s32.totalorder %s27, 1
      %p87 = scmp.ne.s32.totalorder %s82, %s84
      %p88 = scmp.eq.s32.totalorder %s27, 0
      %p89 = por %p87, %p88
      %p90 = scmp.ne.s32.totalorder %s82, %s84
      %p91 = scmp.eq.s32.totalorder %s32, 1
      %p92 = por %p90, %p91
      %p93 = scmp.ne.s32.totalorder %s84, %s85
      %p94 = scmp.eq.s32.totalorder %s32, 0
      %p95 = por %p93, %p94
      %p96 = scmp.ne.s32.totalorder %s84, %s85
      %p97 = scmp.eq.s32.totalorder %s33, 1
      %p98 = por %p96, %p97
      %p100 = scmp.ne.s32.totalorder %s85, %s99
      %p101 = scmp.eq.s32.totalorder %s33, 0
      %p102 = por %p100, %p101
      %s104 = sadd.s32 %s103, 1
      %p107 = scmp.eq.s32.totalorder %s27, 1
      %p108 = scmp.ne.s32.totalorder %s103, %s105
      %p109 = scmp.eq.s32.totalorder %s27, 0
      %p110 = por %p108, %p109
      %p111 = scmp.ne.s32.totalorder %s103, %s105
      %p112 = scmp.eq.s32.totalorder %s32, 1
      %p113 = por %p111, %p112
      %p114 = scmp.ne.s32.totalorder %s105, %s106
      %p115 = scmp.eq.s32.totalorder %s32, 0
      %p116 = por %p114, %p115
      %p117 = scmp.ne.s32.totalorder %s105, %s106
      %p118 = scmp.eq.s32.totalorder %s33, 1
      %p119 = por %p117, %p118
      %p121 = scmp.ne.s32.totalorder %s106, %s120
      %p122 = scmp.eq.s32.totalorder %s33, 0
      %p123 = por %p121, %p122
      %s125 = sadd.s32 %s124, 1
      %p128 = scmp.eq.s32.totalorder %s27, 1
      %p129 = scmp.ne.s32.totalorder %s124, %s126
      %p130 = scmp.eq.s32.totalorder %s27, 0
      %p131 = por %p129, %p130
      %p132 = scmp.ne.s32.totalorder %s124, %s126
      %p133 = scmp.eq.s32.totalorder %s32, 1
      %p134 = por %p132, %p133
      %p135 = scmp.ne.s32.totalorder %s126, %s127
      %p136 = scmp.eq.s32.totalorder %s32, 0
      %p137 = por %p135, %p136
      %p138 = scmp.ne.s32.totalorder %s126, %s127
      %p139 = scmp.eq.s32.totalorder %s33, 1
      %p140 = por %p138, %p139
      %p142 = scmp.ne.s32.totalorder %s127, %s141
      %p143 = scmp.eq.s32.totalorder %s33, 0
      %p144 = por %p142, %p143
      %s146 = sadd.s32 %s145, 1
      %p149 = scmp.eq.s32.totalorder %s27, 1
      %p150 = scmp.ne.s32.totalorder %s145, %s147
      %p151 = scmp.eq.s32.totalorder %s27, 0
      %p152 = por %p150, %p151
      %p153 = scmp.ne.s32.totalorder %s145, %s147
      %p154 = scmp.eq.s32.totalorder %s32, 1
      %p155 = por %p153, %p154
      %p156 = scmp.ne.s32.totalorder %s147, %s148
      %p157 = scmp.eq.s32.totalorder %s32, 0
      %p158 = por %p156, %p157
      %p159 = scmp.ne.s32.totalorder %s147, %s148
      %p160 = scmp.eq.s32.totalorder %s33, 1
      %p161 = por %p159, %p160
      %p163 = scmp.ne.s32.totalorder %s148, %s162
      %p164 = scmp.eq.s32.totalorder %s33, 0
      %p165 = por %p163, %p164
      %s167 = sadd.s32 %s166, 1
      %p170 = scmp.eq.s32.totalorder %s27, 1
      %p171 = scmp.ne.s32.totalorder %s166, %s168
      %p172 = scmp.eq.s32.totalorder %s27, 0
      %p173 = por %p171, %p172
      %p174 = scmp.ne.s32.totalorder %s166, %s168
      %p175 = scmp.eq.s32.totalorder %s32, 1
      %p176 = por %p174, %p175
      %p177 = scmp.ne.s32.totalorder %s168, %s169
      %p178 = scmp.eq.s32.totalorder %s32, 0
      %p179 = por %p177, %p178
      %p180 = scmp.ne.s32.totalorder %s168, %s169
      %p181 = scmp.eq.s32.totalorder %s33, 1
      %p182 = por %p180, %p181
      %p184 = scmp.ne.s32.totalorder %s169, %s183
      %p185 = scmp.eq.s32.totalorder %s33, 0
      %p186 = por %p184, %p185
      %s187 = ssub.s32 %s27, %s34
      %p188 = scmp.eq.s32.totalorder %s187, 0
      %s190 = sadd.s32 %s189, 1
      %s191 = scalar_select %p188, %s189, %s190
      %p194 = pneg %p188
      %p195 = scmp.eq.s32.totalorder %s27, 1
      %p196 = por %p194, %p195
      %p197 = scmp.ne.s32.totalorder %s189, %s192
      %p198 = scmp.eq.s32.totalorder %s27, 0
      %p199 = por %p197, %p198
      %p200 = scmp.ne.s32.totalorder %s189, %s192
      %p201 = scmp.eq.s32.totalorder %s32, 1
      %p202 = por %p200, %p201
      %p203 = scmp.ne.s32.totalorder %s192, %s193
      %p204 = scmp.eq.s32.totalorder %s32, 0
      %p205 = por %p203, %p204
      %p206 = scmp.ne.s32.totalorder %s192, %s193
      %p207 = scmp.eq.s32.totalorder %s33, 1
      %p208 = por %p206, %p207
      %p210 = scmp.ne.s32.totalorder %s193, %s209
      %p211 = scmp.eq.s32.totalorder %s33, 0
      %p212 = por %p210, %p211
      %p213 = scmp.le.s32.totalorder 1, %s27
      %p214 = scmp.lt.s32.totalorder %s27, 3
      %p215 = pnand %p213, %p214
      %p216 = pneg %p215
      // Predicated region
      $region9: #{tpu_custom_call.1} parent=5 // pred_check
        _
      $region10: #{tpu_custom_call.1} parent=5 // pred_check_branch
        %218 = sbr.rel (%p215) target = $region12
      $region11: #{tpu_custom_call.1} parent=5 // pred_region
        %s219 = ssub.s32 %s27, 1
        // Predicated region
        $region13: #{tpu_custom_call.1} parent=11 // pred_check
          %p220 = pneg %p74
        $region14: #{tpu_custom_call.1} parent=11 // pred_check_branch
          %222 = sbr.rel (%p220) target = $region16
        $region15: #{tpu_custom_call.1} parent=11 // pred_region
          %s224 = ssub.s32 1024, 1024
          %225 = vsyncadd [#allocation8], %s224
          %s226 = sshll.u32 [#allocation7], 4
          %s227 = int_to_ptr.vmem [resolvable:$true] %s226
          %232 = dma.hbm_to_vmem [thread:$0]  %s2, 1024, %s227, [#allocation8], 64, 64, 4
        $region16: #{tpu_custom_call.1} parent=11 // pred_fallthru
          _
        // Predicated region
        $region17: #{tpu_custom_call.1} parent=11 // pred_check
          %p233 = pneg %p95
        $region18: #{tpu_custom_call.1} parent=11 // pred_check_branch
          %235 = sbr.rel (%p233) target = $region20
        $region19: #{tpu_custom_call.1} parent=11 // pred_region
          %s237 = ssub.s32 1024, 1024
          %238 = vsyncadd [#allocation8], %s237
          %s239 = sshll.u32 [#allocation9], 4
          %s240 = int_to_ptr.vmem [resolvable:$true] %s239
          %245 = dma.hbm_to_vmem [thread:$0]  %s3, 1024, %s240, [#allocation8], 64, 64, 4
        $region20: #{tpu_custom_call.1} parent=11 // pred_fallthru
          _
        // Predicated region
        $region21: #{tpu_custom_call.1} parent=11 // pred_check
          %p246 = pneg %p116
        $region22: #{tpu_custom_call.1} parent=11 // pred_check_branch
          %248 = sbr.rel (%p246) target = $region24
        $region23: #{tpu_custom_call.1} parent=11 // pred_region
          %s250 = ssub.s32 1024, 1024
          %251 = vsyncadd [#allocation11], %s250
          %s252 = sshll.u32 [#allocation10], 4
          %s253 = int_to_ptr.vmem [resolvable:$true] %s252
          %258 = dma.hbm_to_vmem [thread:$0]  %s4, 1024, %s253, [#allocation11], 64, 64, 4
        $region24: #{tpu_custom_call.1} parent=11 // pred_fallthru
          _
        // Predicated region
        $region25: #{tpu_custom_call.1} parent=11 // pred_check
          %p259 = pneg %p137
        $region26: #{tpu_custom_call.1} parent=11 // pred_check_branch
          %261 = sbr.rel (%p259) target = $region28
        $region27: #{tpu_custom_call.1} parent=11 // pred_region
          %s263 = ssub.s32 1024, 1024
          %264 = vsyncadd [#allocation11], %s263
          %s265 = sshll.u32 [#allocation12], 4
          %s266 = int_to_ptr.vmem [resolvable:$true] %s265
          %271 = dma.hbm_to_vmem [thread:$0]  %s5, 1024, %s266, [#allocation11], 64, 64, 4
        $region28: #{tpu_custom_call.1} parent=11 // pred_fallthru
          _
        // Predicated region
        $region29: #{tpu_custom_call.1} parent=11 // pred_check
          %p272 = pneg %p158
        $region30: #{tpu_custom_call.1} parent=11 // pred_check_branch
          %274 = sbr.rel (%p272) target = $region32
        $region31: #{tpu_custom_call.1} parent=11 // pred_region
          %s276 = ssub.s32 16, 16
          %277 = vsyncadd [#allocation14], %s276
          %s279 = sshll.u32 [#allocation13], 4
          %s280 = int_to_ptr.vmem [resolvable:$true] %s279
          %282 = dma.hbm_to_vmem [thread:$0]  %s6, 16, %s280, [#allocation14]
        $region32: #{tpu_custom_call.1} parent=11 // pred_fallthru
          _
        // Predicated region
        $region33: #{tpu_custom_call.1} parent=11 // pred_check
          %p283 = pneg %p179
        $region34: #{tpu_custom_call.1} parent=11 // pred_check_branch
          %285 = sbr.rel (%p283) target = $region36
        $region35: #{tpu_custom_call.1} parent=11 // pred_region
          %s287 = ssub.s32 16, 16
          %288 = vsyncadd [#allocation14], %s287
          %s290 = sshll.u32 [#allocation15], 4
          %s291 = int_to_ptr.vmem [resolvable:$true] %s290
          %293 = dma.hbm_to_vmem [thread:$0]  %s7, 16, %s291, [#allocation14]
        $region36: #{tpu_custom_call.1} parent=11 // pred_fallthru
          _
      $region12: #{tpu_custom_call.1} parent=5 // pred_fallthru
        _
      %p294 = scmp.lt.s32.totalorder %s27, 2
      // Predicated region
      $region37: #{tpu_custom_call.1} parent=5 // pred_check
        %p295 = pneg %p294
      $region38: #{tpu_custom_call.1} parent=5 // pred_check_branch
        %297 = sbr.rel (%p295) target = $region40
      $region39: #{tpu_custom_call.1} parent=5 // pred_region
        // Predicated region
        $region41: #{tpu_custom_call.1} parent=39 // pred_check
          %p298 = pneg %p47
        $region42: #{tpu_custom_call.1} parent=39 // pred_check_branch
          %300 = sbr.rel (%p298) target = $region44
        $region43: #{tpu_custom_call.1} parent=39 // pred_region
          %s301 = sand.u32 %s37, 1
          %s302 = scalar_lea.sflag [#allocation5], %s301
          %s303 = sand.u32 %s37, 1
          %s304 = smul.addr %s303, 8
          %s305 = scalar_lea.vmem [#allocation4], %s304
          %s307 = ssub.s32 128, 128
          %308 = vsyncadd %s302, %s307
          %s309 = smul.addr %s27, 128
          %s310 = scalar_lea.hbm %s1, %s309
          %s312 = sshll.u32 %s305, 4
          %s313 = int_to_ptr.vmem [resolvable:$true] %s312
          %315 = dma.hbm_to_vmem [thread:$0]  %s310, 128, %s313, %s302
        $region44: #{tpu_custom_call.1} parent=39 // pred_fallthru
          _
      $region40: #{tpu_custom_call.1} parent=5 // pred_fallthru
        _
      %p316 = scmp.le.s32.totalorder 1, %s27
      %p317 = scmp.lt.s32.totalorder %s27, 3
      %p318 = pnand %p316, %p317
      %p319 = pneg %p318
      // Predicated region
      $region45: #{tpu_custom_call.1} parent=5 // pred_check
        _
      $region46: #{tpu_custom_call.1} parent=5 // pred_check_branch
        %321 = sbr.rel (%p318) target = $region48
      $region47: #{tpu_custom_call.1} parent=5 // pred_region
        %s322 = ssub.s32 %s27, 1
        %s323 = sand.u32 %s40, 1
        %s324 = scalar_lea.sflag [#allocation5], %s323
        %s325 = sand.u32 %s40, 1
        %s326 = smul.addr %s325, 8
        %s327 = scalar_lea.vmem [#allocation4], %s326
        // Predicated region
        $region49: #{tpu_custom_call.1} parent=47 // pred_check
          %p328 = pneg %p53
        $region50: #{tpu_custom_call.1} parent=47 // pred_check_branch
          %330 = sbr.rel (%p328) target = $region52
        $region51: #{tpu_custom_call.1} parent=47 // pred_region
          %331 = dma.done %s324, 128
        $region52: #{tpu_custom_call.1} parent=47 // pred_fallthru
          _
        // Predicated region
        $region53: #{tpu_custom_call.1} parent=47 // pred_check
          %p332 = pneg %p74
        $region54: #{tpu_custom_call.1} parent=47 // pred_check_branch
          %334 = sbr.rel (%p332) target = $region56
        $region55: #{tpu_custom_call.1} parent=47 // pred_region
          %335 = dma.done [#allocation8], 1024
        $region56: #{tpu_custom_call.1} parent=47 // pred_fallthru
          _
        // Predicated region
        $region57: #{tpu_custom_call.1} parent=47 // pred_check
          %p336 = pneg %p95
        $region58: #{tpu_custom_call.1} parent=47 // pred_check_branch
          %338 = sbr.rel (%p336) target = $region60
        $region59: #{tpu_custom_call.1} parent=47 // pred_region
          %339 = dma.done [#allocation8], 1024
        $region60: #{tpu_custom_call.1} parent=47 // pred_fallthru
          _
        // Predicated region
        $region61: #{tpu_custom_call.1} parent=47 // pred_check
          %p340 = pneg %p116
        $region62: #{tpu_custom_call.1} parent=47 // pred_check_branch
          %342 = sbr.rel (%p340) target = $region64
        $region63: #{tpu_custom_call.1} parent=47 // pred_region
          %343 = dma.done [#allocation11], 1024
        $region64: #{tpu_custom_call.1} parent=47 // pred_fallthru
          _
        // Predicated region
        $region65: #{tpu_custom_call.1} parent=47 // pred_check
          %p344 = pneg %p137
        $region66: #{tpu_custom_call.1} parent=47 // pred_check_branch
          %346 = sbr.rel (%p344) target = $region68
        $region67: #{tpu_custom_call.1} parent=47 // pred_region
          %347 = dma.done [#allocation11], 1024
        $region68: #{tpu_custom_call.1} parent=47 // pred_fallthru
          _
        // Predicated region
        $region69: #{tpu_custom_call.1} parent=47 // pred_check
          %p348 = pneg %p158
        $region70: #{tpu_custom_call.1} parent=47 // pred_check_branch
          %350 = sbr.rel (%p348) target = $region72
        $region71: #{tpu_custom_call.1} parent=47 // pred_region
          %351 = dma.done [#allocation14], 16
        $region72: #{tpu_custom_call.1} parent=47 // pred_fallthru
          _
        // Predicated region
        $region73: #{tpu_custom_call.1} parent=47 // pred_check
          %p352 = pneg %p179
        $region74: #{tpu_custom_call.1} parent=47 // pred_check_branch
          %354 = sbr.rel (%p352) target = $region76
        $region75: #{tpu_custom_call.1} parent=47 // pred_region
          %355 = dma.done [#allocation14], 16
        $region76: #{tpu_custom_call.1} parent=47 // pred_fallthru
          _
        %s356 = sand.u32 %s40, 1
        %s357 = scalar_lea.sflag [#allocation5], %s356
        %s358 = sand.u32 %s40, 1
        %s359 = smul.addr %s358, 8
        %s360 = scalar_lea.vmem [#allocation4], %s359
        %p361 = pneg %p53
        %p362 = pneg %p50
        %p363 = pneg %p74
        %p364 = pneg %p71
        %p365 = pneg %p95
        %p366 = pneg %p92
        %p367 = pneg %p116
        %p368 = pneg %p113
        %p369 = pneg %p137
        %p370 = pneg %p134
        %p371 = pneg %p158
        %p372 = pneg %p155
        %p373 = pneg %p179
        %p374 = pneg %p176
        %p375 = pneg %p205
        %p376 = pneg %p202
        %s377 = sand.u32 %s192, 1
        %s378 = scalar_lea.sflag [#allocation6], %s377
        %s379 = sand.u32 %s192, 1
        %s380 = smul.addr %s379, 8
        %s381 = scalar_lea.vmem [#allocation16], %s380
        %v383 = vld [vmem:[%s327] sm:$0xff]
        %v384 = vpack.c.bf16 %v383, %v383
        %v385 = vld [vmem:[#allocation7] sm:$0xf]
        %v386 = vld [vmem:[#allocation7 + $0x4] sm:$0xf]
        %v387 = vld [vmem:[#allocation7 + $0x8] sm:$0xf]
        %v388 = vld [vmem:[#allocation7 + $0xc] sm:$0xf]
        %v389 = vld [vmem:[#allocation7 + $0x10] sm:$0xf]
        %v390 = vld [vmem:[#allocation7 + $0x14] sm:$0xf]
        %v391 = vld [vmem:[#allocation7 + $0x18] sm:$0xf]
        %v392 = vld [vmem:[#allocation7 + $0x1c] sm:$0xf]
        %v393 = vld [vmem:[#allocation7 + $0x20] sm:$0xf]
        %v394 = vld [vmem:[#allocation7 + $0x24] sm:$0xf]
        %v395 = vld [vmem:[#allocation7 + $0x28] sm:$0xf]
        %v396 = vld [vmem:[#allocation7 + $0x2c] sm:$0xf]
        %v397 = vld [vmem:[#allocation7 + $0x30] sm:$0xf]
        %v398 = vld [vmem:[#allocation7 + $0x34] sm:$0xf]
        %v399 = vld [vmem:[#allocation7 + $0x38] sm:$0xf]
        %v400 = vld [vmem:[#allocation7 + $0x3c] sm:$0xf]
        %v417 = vunpack.c.l.b16 %v385
        %v418 = vunpack.c.l.b16 %v386
        %v419 = vunpack.c.l.b16 %v387
        %v420 = vunpack.c.l.b16 %v388
        %v421 = vunpack.c.l.b16 %v389
        %v422 = vunpack.c.l.b16 %v390
        %v423 = vunpack.c.l.b16 %v391
        %v424 = vunpack.c.l.b16 %v392
        %v425 = vunpack.c.l.b16 %v393
        %v426 = vunpack.c.l.b16 %v394
        %v427 = vunpack.c.l.b16 %v395
        %v428 = vunpack.c.l.b16 %v396
        %v429 = vunpack.c.l.b16 %v397
        %v430 = vunpack.c.l.b16 %v398
        %v431 = vunpack.c.l.b16 %v399
        %v432 = vunpack.c.l.b16 %v400
        %v433 = vpack.c.b16 %v418, %v417
        %v434 = vpack.c.b16 %v420, %v419
        %v435 = vpack.c.b16 %v422, %v421
        %v436 = vpack.c.b16 %v424, %v423
        %v437 = vpack.c.b16 %v426, %v425
        %v438 = vpack.c.b16 %v428, %v427
        %v439 = vpack.c.b16 %v430, %v429
        %v440 = vpack.c.b16 %v432, %v431
        %449 = vmatprep.subr.bf16.mxu0 0
        %450 = vmatpush1.bf16.msra.mxu0 %v433
        %451 = vmatprep.subr.bf16.mxu0 0
        %452 = vmatpush1.bf16.msra.mxu0 %v434
        %453 = vmatprep.subr.bf16.mxu0 0
        %454 = vmatpush1.bf16.msra.mxu0 %v435
        %455 = vmatprep.subr.bf16.mxu0 0
        %456 = vmatpush1.bf16.msra.mxu0 %v436
        %457 = vmatprep.subr.bf16.mxu0 0
        %458 = vmatpush1.bf16.msra.mxu0 %v437
        %459 = vmatprep.subr.bf16.mxu0 0
        %460 = vmatpush1.bf16.msra.mxu0 %v438
        %461 = vmatprep.subr.bf16.mxu0 0
        %462 = vmatpush1.bf16.msra.mxu0 %v439
        %463 = vmatprep.subr.bf16.mxu0 0
        %464 = vmatpush1.bf16.msra.mxu0 %v440
        %465 = vmatprep.subr.bf16.mxu0 0
        %466 = vmatpush1.bf16.msra.mxu0 0
        %467 = vmatprep.subr.bf16.mxu0 0
        %468 = vmatpush1.bf16.msra.mxu0 0
        %469 = vmatprep.subr.bf16.mxu0 0
        %470 = vmatpush1.bf16.msra.mxu0 0
        %471 = vmatprep.subr.bf16.mxu0 0
        %472 = vmatpush1.bf16.msra.mxu0 0
        %473 = vmatprep.subr.bf16.mxu0 0
        %474 = vmatpush1.bf16.msra.mxu0 0
        %475 = vmatprep.subr.bf16.mxu0 0
        %476 = vmatpush1.bf16.msra.mxu0 0
        %477 = vmatprep.subr.bf16.mxu0 0
        %478 = vmatpush1.bf16.msra.mxu0 0
        %479 = vmatprep.subr.bf16.mxu0 0
        %480 = vmatpush1.bf16.msra.mxu0 0
        %481 = vmatprep.mubr.bf16.mxu0 0
        %482 = vmatmul.mubr.bf16.gmra.mrb[0].mxu0 %v384
        %v483 = vpop.f32.mrb[0].mxu0
        %v484 = vadd.f32 0.0, %v483
        %v485 = vpop.f32.mrb[0].mxu0
        %v486 = vpop.f32.mrb[0].mxu0
        %v487 = vpop.f32.mrb[0].mxu0
        %488 = vdwg.mxu0
        %v489 = vld [vmem:[#allocation9] sm:$0xf]
        %v490 = vld [vmem:[#allocation9 + $0x4] sm:$0xf]
        %v491 = vld [vmem:[#allocation9 + $0x8] sm:$0xf]
        %v492 = vld [vmem:[#allocation9 + $0xc] sm:$0xf]
        %v493 = vld [vmem:[#allocation9 + $0x10] sm:$0xf]
        %v494 = vld [vmem:[#allocation9 + $0x14] sm:$0xf]
        %v495 = vld [vmem:[#allocation9 + $0x18] sm:$0xf]
        %v496 = vld [vmem:[#allocation9 + $0x1c] sm:$0xf]
        %v497 = vld [vmem:[#allocation9 + $0x20] sm:$0xf]
        %v498 = vld [vmem:[#allocation9 + $0x24] sm:$0xf]
        %v499 = vld [vmem:[#allocation9 + $0x28] sm:$0xf]
        %v500 = vld [vmem:[#allocation9 + $0x2c] sm:$0xf]
        %v501 = vld [vmem:[#allocation9 + $0x30] sm:$0xf]
        %v502 = vld [vmem:[#allocation9 + $0x34] sm:$0xf]
        %v503 = vld [vmem:[#allocation9 + $0x38] sm:$0xf]
        %v504 = vld [vmem:[#allocation9 + $0x3c] sm:$0xf]
        %v521 = vunpack.c.l.b16 %v489
        %v522 = vunpack.c.l.b16 %v490
        %v523 = vunpack.c.l.b16 %v491
        %v524 = vunpack.c.l.b16 %v492
        %v525 = vunpack.c.l.b16 %v493
        %v526 = vunpack.c.l.b16 %v494
        %v527 = vunpack.c.l.b16 %v495
        %v528 = vunpack.c.l.b16 %v496
        %v529 = vunpack.c.l.b16 %v497
        %v530 = vunpack.c.l.b16 %v498
        %v531 = vunpack.c.l.b16 %v499
        %v532 = vunpack.c.l.b16 %v500
        %v533 = vunpack.c.l.b16 %v501
        %v534 = vunpack.c.l.b16 %v502
        %v535 = vunpack.c.l.b16 %v503
        %v536 = vunpack.c.l.b16 %v504
        %v537 = vpack.c.b16 %v522, %v521
        %v538 = vpack.c.b16 %v524, %v523
        %v539 = vpack.c.b16 %v526, %v525
        %v540 = vpack.c.b16 %v528, %v527
        %v541 = vpack.c.b16 %v530, %v529
        %v542 = vpack.c.b16 %v532, %v531
        %v543 = vpack.c.b16 %v534, %v533
        %v544 = vpack.c.b16 %v536, %v535
        %553 = vmatprep.subr.bf16.mxu0 0
        %554 = vmatpush1.bf16.msra.mxu0 %v537
        %555 = vmatprep.subr.bf16.mxu0 0
        %556 = vmatpush1.bf16.msra.mxu0 %v538
        %557 = vmatprep.subr.bf16.mxu0 0
        %558 = vmatpush1.bf16.msra.mxu0 %v539
        %559 = vmatprep.subr.bf16.mxu0 0
        %560 = vmatpush1.bf16.msra.mxu0 %v540
        %561 = vmatprep.subr.bf16.mxu0 0
        %562 = vmatpush1.bf16.msra.mxu0 %v541
        %563 = vmatprep.subr.bf16.mxu0 0
        %564 = vmatpush1.bf16.msra.mxu0 %v542
        %565 = vmatprep.subr.bf16.mxu0 0
        %566 = vmatpush1.bf16.msra.mxu0 %v543
        %567 = vmatprep.subr.bf16.mxu0 0
        %568 = vmatpush1.bf16.msra.mxu0 %v544
        %569 = vmatprep.subr.bf16.mxu0 0
        %570 = vmatpush1.bf16.msra.mxu0 0
        %571 = vmatprep.subr.bf16.mxu0 0
        %572 = vmatpush1.bf16.msra.mxu0 0
        %573 = vmatprep.subr.bf16.mxu0 0
        %574 = vmatpush1.bf16.msra.mxu0 0
        %575 = vmatprep.subr.bf16.mxu0 0
        %576 = vmatpush1.bf16.msra.mxu0 0
        %577 = vmatprep.subr.bf16.mxu0 0
        %578 = vmatpush1.bf16.msra.mxu0 0
        %579 = vmatprep.subr.bf16.mxu0 0
        %580 = vmatpush1.bf16.msra.mxu0 0
        %581 = vmatprep.subr.bf16.mxu0 0
        %582 = vmatpush1.bf16.msra.mxu0 0
        %583 = vmatprep.subr.bf16.mxu0 0
        %584 = vmatpush1.bf16.msra.mxu0 0
        %585 = vmatprep.mubr.bf16.mxu0 0
        %586 = vmatmul.mubr.bf16.gmra.mrb[0].mxu0 %v384
        %v587 = vpop.f32.mrb[0].mxu0
        %v588 = vadd.f32 0.0, %v587
        %v589 = vpop.f32.mrb[0].mxu0
        %v590 = vpop.f32.mrb[0].mxu0
        %v591 = vpop.f32.mrb[0].mxu0
        %592 = vdwg.mxu0
        %v593 = vld [vmem:[#allocation10] sm:$0xf]
        %v594 = vld [vmem:[#allocation10 + $0x4] sm:$0xf]
        %v595 = vld [vmem:[#allocation10 + $0x8] sm:$0xf]
        %v596 = vld [vmem:[#allocation10 + $0xc] sm:$0xf]
        %v597 = vld [vmem:[#allocation10 + $0x10] sm:$0xf]
        %v598 = vld [vmem:[#allocation10 + $0x14] sm:$0xf]
        %v599 = vld [vmem:[#allocation10 + $0x18] sm:$0xf]
        %v600 = vld [vmem:[#allocation10 + $0x1c] sm:$0xf]
        %v601 = vld [vmem:[#allocation10 + $0x20] sm:$0xf]
        %v602 = vld [vmem:[#allocation10 + $0x24] sm:$0xf]
        %v603 = vld [vmem:[#allocation10 + $0x28] sm:$0xf]
        %v604 = vld [vmem:[#allocation10 + $0x2c] sm:$0xf]
        %v605 = vld [vmem:[#allocation10 + $0x30] sm:$0xf]
        %v606 = vld [vmem:[#allocation10 + $0x34] sm:$0xf]
        %v607 = vld [vmem:[#allocation10 + $0x38] sm:$0xf]
        %v608 = vld [vmem:[#allocation10 + $0x3c] sm:$0xf]
        %v625 = vunpack.c.l.b16 %v593
        %v626 = vunpack.c.l.b16 %v594
        %v627 = vunpack.c.l.b16 %v595
        %v628 = vunpack.c.l.b16 %v596
        %v629 = vunpack.c.l.b16 %v597
        %v630 = vunpack.c.l.b16 %v598
        %v631 = vunpack.c.l.b16 %v599
        %v632 = vunpack.c.l.b16 %v600
        %v633 = vunpack.c.l.b16 %v601
        %v634 = vunpack.c.l.b16 %v602
        %v635 = vunpack.c.l.b16 %v603
        %v636 = vunpack.c.l.b16 %v604
        %v637 = vunpack.c.l.b16 %v605
        %v638 = vunpack.c.l.b16 %v606
        %v639 = vunpack.c.l.b16 %v607
        %v640 = vunpack.c.l.b16 %v608
        %v641 = vpack.c.b16 %v626, %v625
        %v642 = vpack.c.b16 %v628, %v627
        %v643 = vpack.c.b16 %v630, %v629
        %v644 = vpack.c.b16 %v632, %v631
        %v645 = vpack.c.b16 %v634, %v633
        %v646 = vpack.c.b16 %v636, %v635
        %v647 = vpack.c.b16 %v638, %v637
        %v648 = vpack.c.b16 %v640, %v639
        %657 = vmatprep.subr.bf16.mxu0 0
        %658 = vmatpush1.bf16.msra.mxu0 %v641
        %659 = vmatprep.subr.bf16.mxu0 0
        %660 = vmatpush1.bf16.msra.mxu0 %v642
        %661 = vmatprep.subr.bf16.mxu0 0
        %662 = vmatpush1.bf16.msra.mxu0 %v643
        %663 = vmatprep.subr.bf16.mxu0 0
        %664 = vmatpush1.bf16.msra.mxu0 %v644
        %665 = vmatprep.subr.bf16.mxu0 0
        %666 = vmatpush1.bf16.msra.mxu0 %v645
        %667 = vmatprep.subr.bf16.mxu0 0
        %668 = vmatpush1.bf16.msra.mxu0 %v646
        %669 = vmatprep.subr.bf16.mxu0 0
        %670 = vmatpush1.bf16.msra.mxu0 %v647
        %671 = vmatprep.subr.bf16.mxu0 0
        %672 = vmatpush1.bf16.msra.mxu0 %v648
        %673 = vmatprep.subr.bf16.mxu0 0
        %674 = vmatpush1.bf16.msra.mxu0 0
        %675 = vmatprep.subr.bf16.mxu0 0
        %676 = vmatpush1.bf16.msra.mxu0 0
        %677 = vmatprep.subr.bf16.mxu0 0
        %678 = vmatpush1.bf16.msra.mxu0 0
        %679 = vmatprep.subr.bf16.mxu0 0
        %680 = vmatpush1.bf16.msra.mxu0 0
        %681 = vmatprep.subr.bf16.mxu0 0
        %682 = vmatpush1.bf16.msra.mxu0 0
        %683 = vmatprep.subr.bf16.mxu0 0
        %684 = vmatpush1.bf16.msra.mxu0 0
        %685 = vmatprep.subr.bf16.mxu0 0
        %686 = vmatpush1.bf16.msra.mxu0 0
        %687 = vmatprep.subr.bf16.mxu0 0
        %688 = vmatpush1.bf16.msra.mxu0 0
        %689 = vmatprep.mubr.bf16.mxu0 0
        %690 = vmatmul.mubr.bf16.gmra.mrb[0].mxu0 %v384
        %v691 = vpop.f32.mrb[0].mxu0
        %v692 = vadd.f32 0.0, %v691
        %v693 = vpop.f32.mrb[0].mxu0
        %v694 = vpop.f32.mrb[0].mxu0
        %v695 = vpop.f32.mrb[0].mxu0
        %696 = vdwg.mxu0
        %s697 = sld [smem:[#allocation3 + %s32]]
        %v698 = vlaneseq
        %v699 = vand.u32 %v698, 127
        %v700 = vpack.c.bf16 %v484, %v484
        %v701 = vpack.c.bf16 %v588, %v588
        %v702 = vpack.c.bf16 %v692, %v692
        %vm703 = vcmask 261120
        %v705 = vsel %vm703, %v700, 0
        %v708 = vsel %vm703, %v701, 0
        %710 = vmatprep.subr.bf16.mxu0 0
        %711 = vmatpush1.bf16.xpose.msra.mxu0 %v708
        %712 = vmatprep.subr.bf16.mxu0 0
        %713 = vmatpush1.bf16.xpose.msra.mxu0 0
        %714 = vmatprep.subr.bf16.mxu0 0
        %715 = vmatpush1.bf16.xpose.msra.mxu0 0
        %716 = vmatprep.subr.bf16.mxu0 0
        %717 = vmatpush1.bf16.xpose.msra.mxu0 0
        %718 = vmatprep.subr.bf16.mxu0 0
        %719 = vmatpush1.bf16.xpose.msra.mxu0 0
        %720 = vmatprep.subr.bf16.mxu0 0
        %721 = vmatpush1.bf16.xpose.msra.mxu0 0
        %722 = vmatprep.subr.bf16.mxu0 0
        %723 = vmatpush1.bf16.xpose.msra.mxu0 0
        %724 = vmatprep.subr.bf16.mxu0 0
        %725 = vmatpush1.bf16.xpose.msra.mxu0 0
        %726 = vmatprep.subr.bf16.mxu0 0
        %727 = vmatpush1.bf16.xpose.msra.mxu0 0
        %728 = vmatprep.subr.bf16.mxu0 0
        %729 = vmatpush1.bf16.xpose.msra.mxu0 0
        %730 = vmatprep.subr.bf16.mxu0 0
        %731 = vmatpush1.bf16.xpose.msra.mxu0 0
        %732 = vmatprep.subr.bf16.mxu0 0
        %733 = vmatpush1.bf16.xpose.msra.mxu0 0
        %734 = vmatprep.subr.bf16.mxu0 0
        %735 = vmatpush1.bf16.xpose.msra.mxu0 0
        %736 = vmatprep.subr.bf16.mxu0 0
        %737 = vmatpush1.bf16.xpose.msra.mxu0 0
        %738 = vmatprep.subr.bf16.mxu0 0
        %739 = vmatpush1.bf16.xpose.msra.mxu0 0
        %740 = vmatprep.subr.bf16.mxu0 0
        %741 = vmatpush1.bf16.xpose.msra.mxu0 0
        %742 = vmatprep.mubr.bf16.mxu0 0
        %743 = vmatmul.mubr.bf16.gmra.mrb[0].mxu0 %v705
        %v744 = vpop.f32.mrb[0].mxu0
        %v745 = vadd.f32 0.0, %v744
        %v746 = vpop.f32.mrb[0].mxu0
        %v747 = vpop.f32.mrb[0].mxu0
        %v748 = vpop.f32.mrb[0].mxu0
        %749 = vdwg.mxu0
        %v750 = vmul.f32 %v745, 0.17677669
        %v751 = vstv %s697
        %vm752 = vcmp.lt.s32.totalorder %v699, %v751
        %v753 = vsel %vm752, %v750, -1000000.0
        %vm754 = vcmask 64512
        %v755 = vsel %vm754, %v753, -inf
        %756 = vmax.xlane.f32.xlu0 %v755
        %v757 = vpop.xlane.xlu0 %756
        %v758 = vsub.f32 %v753, %v757
        %v759 = vmul.f32 %v758, 1.442695
        %v760 = vpow.pop %v759
        %v761 = vsel %vm754, %v760, 0.0
        %762 = vadd.xlane.f32.xlu0 %v761
        %v763 = vpop.xlane.xlu0 %762
        %v764 = vrcp.pop %v763
        %v765 = vmul.f32 %v760, %v764
        %v766 = vpack.c.bf16 %v765, %v765
        %v768 = vsel %vm754, %v766, 0
        %vm770 = vcmask 1043456
        %v772 = vsel %vm770, %v702, 0
        %774 = vmatprep.subr.bf16.mxu0 0
        %775 = vmatpush1.bf16.msra.mxu0 %v772
        %776 = vmatprep.subr.bf16.mxu0 0
        %777 = vmatpush1.bf16.msra.mxu0 0
        %778 = vmatprep.subr.bf16.mxu0 0
        %779 = vmatpush1.bf16.msra.mxu0 0
        %780 = vmatprep.subr.bf16.mxu0 0
        %781 = vmatpush1.bf16.msra.mxu0 0
        %782 = vmatprep.subr.bf16.mxu0 0
        %783 = vmatpush1.bf16.msra.mxu0 0
        %784 = vmatprep.subr.bf16.mxu0 0
        %785 = vmatpush1.bf16.msra.mxu0 0
        %786 = vmatprep.subr.bf16.mxu0 0
        %787 = vmatpush1.bf16.msra.mxu0 0
        %788 = vmatprep.subr.bf16.mxu0 0
        %789 = vmatpush1.bf16.msra.mxu0 0
        %790 = vmatprep.subr.bf16.mxu0 0
        %791 = vmatpush1.bf16.msra.mxu0 0
        %792 = vmatprep.subr.bf16.mxu0 0
        %793 = vmatpush1.bf16.msra.mxu0 0
        %794 = vmatprep.subr.bf16.mxu0 0
        %795 = vmatpush1.bf16.msra.mxu0 0
        %796 = vmatprep.subr.bf16.mxu0 0
        %797 = vmatpush1.bf16.msra.mxu0 0
        %798 = vmatprep.subr.bf16.mxu0 0
        %799 = vmatpush1.bf16.msra.mxu0 0
        %800 = vmatprep.subr.bf16.mxu0 0
        %801 = vmatpush1.bf16.msra.mxu0 0
        %802 = vmatprep.subr.bf16.mxu0 0
        %803 = vmatpush1.bf16.msra.mxu0 0
        %804 = vmatprep.subr.bf16.mxu0 0
        %805 = vmatpush1.bf16.msra.mxu0 0
        %806 = vmatprep.mubr.bf16.mxu0 0
        %807 = vmatmul.mubr.bf16.gmra.mrb[0].mxu0 %v768
        %v808 = vpop.f32.mrb[0].mxu0
        %v809 = vadd.f32 0.0, %v808
        %v810 = vpop.f32.mrb[0].mxu0
        %v811 = vpop.f32.mrb[0].mxu0
        %v812 = vpop.f32.mrb[0].mxu0
        %813 = vdwg.mxu0
        %v814 = vpack.c.bf16 %v809, %v809
        %v815 = vld [vmem:[#allocation12] sm:$0xf]
        %v816 = vld [vmem:[#allocation12 + $0x4] sm:$0xf]
        %v817 = vld [vmem:[#allocation12 + $0x8] sm:$0xf]
        %v818 = vld [vmem:[#allocation12 + $0xc] sm:$0xf]
        %820 = vrot.lane.b32.xlu0 %v700, 96
        %v821 = vpop.permute.xlu0 %820
        %823 = vrot.lane.b32.xlu0 %v701, 96
        %v824 = vpop.permute.xlu0 %823
        %v826 = vsel %vm703, %v821, 0
        %v829 = vsel %vm703, %v824, 0
        %831 = vmatprep.subr.bf16.mxu0 0
        %832 = vmatpush1.bf16.xpose.msra.mxu0 %v829
        %833 = vmatprep.subr.bf16.mxu0 0
        %834 = vmatpush1.bf16.xpose.msra.mxu0 0
        %835 = vmatprep.subr.bf16.mxu0 0
        %836 = vmatpush1.bf16.xpose.msra.mxu0 0
        %837 = vmatprep.subr.bf16.mxu0 0
        %838 = vmatpush1.bf16.xpose.msra.mxu0 0
        %839 = vmatprep.subr.bf16.mxu0 0
        %840 = vmatpush1.bf16.xpose.msra.mxu0 0
        %841 = vmatprep.subr.bf16.mxu0 0
        %842 = vmatpush1.bf16.xpose.msra.mxu0 0
        %843 = vmatprep.subr.bf16.mxu0 0
        %844 = vmatpush1.bf16.xpose.msra.mxu0 0
        %845 = vmatprep.subr.bf16.mxu0 0
        %846 = vmatpush1.bf16.xpose.msra.mxu0 0
        %847 = vmatprep.subr.bf16.mxu0 0
        %848 = vmatpush1.bf16.xpose.msra.mxu0 0
        %849 = vmatprep.subr.bf16.mxu0 0
        %850 = vmatpush1.bf16.xpose.msra.mxu0 0
        %851 = vmatprep.subr.bf16.mxu0 0
        %852 = vmatpush1.bf16.xpose.msra.mxu0 0
        %853 = vmatprep.subr.bf16.mxu0 0
        %854 = vmatpush1.bf16.xpose.msra.mxu0 0
        %855 = vmatprep.subr.bf16.mxu0 0
        %856 = vmatpush1.bf16.xpose.msra.mxu0 0
        %857 = vmatprep.subr.bf16.mxu0 0
        %858 = vmatpush1.bf16.xpose.msra.mxu0 0
        %859 = vmatprep.subr.bf16.mxu0 0
        %860 = vmatpush1.bf16.xpose.msra.mxu0 0
        %861 = vmatprep.subr.bf16.mxu0 0
        %862 = vmatpush1.bf16.xpose.msra.mxu0 0
        %863 = vmatprep.mubr.bf16.mxu0 0
        %864 = vmatmul.mubr.bf16.gmra.mrb[0].mxu0 %v826
        %v865 = vpop.f32.mrb[0].mxu0
        %v866 = vadd.f32 0.0, %v865
        %v867 = vpop.f32.mrb[0].mxu0
        %v868 = vpop.f32.mrb[0].mxu0
        %v869 = vpop.f32.mrb[0].mxu0
        %870 = vdwg.mxu0
        %v871 = vmul.f32 %v866, 0.17677669
        %v872 = vsel %vm752, %v871, -1000000.0
        %v873 = vsel %vm754, %v872, -inf
        %874 = vmax.xlane.f32.xlu0 %v873
        %v875 = vpop.xlane.xlu0 %874
        %v876 = vsub.f32 %v872, %v875
        %v877 = vmul.f32 %v876, 1.442695
        %v878 = vpow.pop %v877
        %v879 = vsel %vm754, %v878, 0.0
        %880 = vadd.xlane.f32.xlu0 %v879
        %v881 = vpop.xlane.xlu0 %880
        %v882 = vrcp.pop %v881
        %v883 = vmul.f32 %v878, %v882
        %v884 = vpack.c.bf16 %v883, %v883
        %886 = vrot.lane.b32.xlu0 %v702, 96
        %v887 = vpop.permute.xlu0 %886
        %v889 = vsel %vm754, %v884, 0
        %v892 = vsel %vm770, %v887, 0
        %894 = vmatprep.subr.bf16.mxu0 0
        %895 = vmatpush1.bf16.msra.mxu0 %v892
        %896 = vmatprep.subr.bf16.mxu0 0
        %897 = vmatpush1.bf16.msra.mxu0 0
        %898 = vmatprep.subr.bf16.mxu0 0
        %899 = vmatpush1.bf16.msra.mxu0 0
        %900 = vmatprep.subr.bf16.mxu0 0
        %901 = vmatpush1.bf16.msra.mxu0 0
        %902 = vmatprep.subr.bf16.mxu0 0
        %903 = vmatpush1.bf16.msra.mxu0 0
        %904 = vmatprep.subr.bf16.mxu0 0
        %905 = vmatpush1.bf16.msra.mxu0 0
        %906 = vmatprep.subr.bf16.mxu0 0
        %907 = vmatpush1.bf16.msra.mxu0 0
        %908 = vmatprep.subr.bf16.mxu0 0
        %909 = vmatpush1.bf16.msra.mxu0 0
        %910 = vmatprep.subr.bf16.mxu0 0
        %911 = vmatpush1.bf16.msra.mxu0 0
        %912 = vmatprep.subr.bf16.mxu0 0
        %913 = vmatpush1.bf16.msra.mxu0 0
        %914 = vmatprep.subr.bf16.mxu0 0
        %915 = vmatpush1.bf16.msra.mxu0 0
        %916 = vmatprep.subr.bf16.mxu0 0
        %917 = vmatpush1.bf16.msra.mxu0 0
        %918 = vmatprep.subr.bf16.mxu0 0
        %919 = vmatpush1.bf16.msra.mxu0 0
        %920 = vmatprep.subr.bf16.mxu0 0
        %921 = vmatpush1.bf16.msra.mxu0 0
        %922 = vmatprep.subr.bf16.mxu0 0
        %923 = vmatpush1.bf16.msra.mxu0 0
        %924 = vmatprep.subr.bf16.mxu0 0
        %925 = vmatpush1.bf16.msra.mxu0 0
        %926 = vmatprep.mubr.bf16.mxu0 0
        %927 = vmatmul.mubr.bf16.gmra.mrb[0].mxu0 %v889
        %v928 = vpop.f32.mrb[0].mxu0
        %v929 = vadd.f32 0.0, %v928
        %v930 = vpop.f32.mrb[0].mxu0
        %v931 = vpop.f32.mrb[0].mxu0
        %v932 = vpop.f32.mrb[0].mxu0
        %933 = vdwg.mxu0
        %v934 = vpack.c.bf16 %v929, %v929
        %v935 = vld [vmem:[#allocation12 + $0x10] sm:$0xf]
        %v936 = vld [vmem:[#allocation12 + $0x14] sm:$0xf]
        %v937 = vld [vmem:[#allocation12 + $0x18] sm:$0xf]
        %v938 = vld [vmem:[#allocation12 + $0x1c] sm:$0xf]
        %v943 = vunpack.c.l.b16 %v935
        %v944 = vunpack.c.l.b16 %v936
        %v945 = vunpack.c.l.b16 %v937
        %v946 = vunpack.c.l.b16 %v938
        %v947 = vpack.c.b16 %v944, %v943
        %v948 = vpack.c.b16 %v946, %v945
        %v952 = vsel %vm703, %v934, 0
        %954 = vmatprep.subr.bf16.mxu0 0
        %955 = vmatpush1.bf16.msra.mxu0 %v947
        %956 = vmatprep.subr.bf16.mxu0 0
        %957 = vmatpush1.bf16.msra.mxu0 %v948
        %958 = vmatprep.subr.bf16.mxu0 0
        %959 = vmatpush1.bf16.msra.mxu0 0
        %960 = vmatprep.subr.bf16.mxu0 0
        %961 = vmatpush1.bf16.msra.mxu0 0
        %962 = vmatprep.subr.bf16.mxu0 0
        %963 = vmatpush1.bf16.msra.mxu0 0
        %964 = vmatprep.subr.bf16.mxu0 0
        %965 = vmatpush1.bf16.msra.mxu0 0
        %966 = vmatprep.subr.bf16.mxu0 0
        %967 = vmatpush1.bf16.msra.mxu0 0
        %968 = vmatprep.subr.bf16.mxu0 0
        %969 = vmatpush1.bf16.msra.mxu0 0
        %970 = vmatprep.subr.bf16.mxu0 0
        %971 = vmatpush1.bf16.msra.mxu0 0
        %972 = vmatprep.subr.bf16.mxu0 0
        %973 = vmatpush1.bf16.msra.mxu0 0
        %974 = vmatprep.subr.bf16.mxu0 0
        %975 = vmatpush1.bf16.msra.mxu0 0
        %976 = vmatprep.subr.bf16.mxu0 0
        %977 = vmatpush1.bf16.msra.mxu0 0
        %978 = vmatprep.subr.bf16.mxu0 0
        %979 = vmatpush1.bf16.msra.mxu0 0
        %980 = vmatprep.subr.bf16.mxu0 0
        %981 = vmatpush1.bf16.msra.mxu0 0
        %982 = vmatprep.subr.bf16.mxu0 0
        %983 = vmatpush1.bf16.msra.mxu0 0
        %984 = vmatprep.subr.bf16.mxu0 0
        %985 = vmatpush1.bf16.msra.mxu0 0
        %986 = vmatprep.mubr.bf16.mxu0 0
        %987 = vmatmul.mubr.bf16.gmra.mrb[0].mxu0 %v952
        %v988 = vpop.f32.mrb[0].mxu0
        %v989 = vadd.f32 0.0, %v988
        %v990 = vpop.f32.mrb[0].mxu0
        %v991 = vpop.f32.mrb[0].mxu0
        %v992 = vpop.f32.mrb[0].mxu0
        %993 = vdwg.mxu0
        %v998 = vunpack.c.l.b16 %v815
        %v999 = vunpack.c.l.b16 %v816
        %v1000 = vunpack.c.l.b16 %v817
        %v1001 = vunpack.c.l.b16 %v818
        %v1002 = vpack.c.b16 %v999, %v998
        %v1003 = vpack.c.b16 %v1001, %v1000
        %v1007 = vsel %vm703, %v814, 0
        %1009 = vmatprep.subr.bf16.mxu0 0
        %1010 = vmatpush1.bf16.msra.mxu0 %v1002
        %1011 = vmatprep.subr.bf16.mxu0 0
        %1012 = vmatpush1.bf16.msra.mxu0 %v1003
        %1013 = vmatprep.subr.bf16.mxu0 0
        %1014 = vmatpush1.bf16.msra.mxu0 0
        %1015 = vmatprep.subr.bf16.mxu0 0
        %1016 = vmatpush1.bf16.msra.mxu0 0
        %1017 = vmatprep.subr.bf16.mxu0 0
        %1018 = vmatpush1.bf16.msra.mxu0 0
        %1019 = vmatprep.subr.bf16.mxu0 0
        %1020 = vmatpush1.bf16.msra.mxu0 0
        %1021 = vmatprep.subr.bf16.mxu0 0
        %1022 = vmatpush1.bf16.msra.mxu0 0
        %1023 = vmatprep.subr.bf16.mxu0 0
        %1024 = vmatpush1.bf16.msra.mxu0 0
        %1025 = vmatprep.subr.bf16.mxu0 0
        %1026 = vmatpush1.bf16.msra.mxu0 0
        %1027 = vmatprep.subr.bf16.mxu0 0
        %1028 = vmatpush1.bf16.msra.mxu0 0
        %1029 = vmatprep.subr.bf16.mxu0 0
        %1030 = vmatpush1.bf16.msra.mxu0 0
        %1031 = vmatprep.subr.bf16.mxu0 0
        %1032 = vmatpush1.bf16.msra.mxu0 0
        %1033 = vmatprep.subr.bf16.mxu0 0
        %1034 = vmatpush1.bf16.msra.mxu0 0
        %1035 = vmatprep.subr.bf16.mxu0 0
        %1036 = vmatpush1.bf16.msra.mxu0 0
        %1037 = vmatprep.subr.bf16.mxu0 0
        %1038 = vmatpush1.bf16.msra.mxu0 0
        %1039 = vmatprep.subr.bf16.mxu0 0
        %1040 = vmatpush1.bf16.msra.mxu0 0
        %1041 = vmatprep.mubr.bf16.mxu0 0
        %1042 = vmatmul.mubr.bf16.gmra.mrb[0].mxu0 %v1007
        %v1043 = vpop.f32.mrb[0].mxu0
        %v1044 = vadd.f32 %v989, %v1043
        %v1045 = vpop.f32.mrb[0].mxu0
        %v1046 = vpop.f32.mrb[0].mxu0
        %v1047 = vpop.f32.mrb[0].mxu0
        %1048 = vdwg.mxu0
        %1049 = vrot.lane.b32.xlu0 %v700, 64
        %v1050 = vpop.permute.xlu0 %1049
        %1051 = vrot.lane.b32.xlu0 %v701, 64
        %v1052 = vpop.permute.xlu0 %1051
        %v1054 = vsel %vm703, %v1050, 0
        %v1057 = vsel %vm703, %v1052, 0
        %1059 = vmatprep.subr.bf16.mxu0 0
        %1060 = vmatpush1.bf16.xpose.msra.mxu0 %v1057
        %1061 = vmatprep.subr.bf16.mxu0 0
        %1062 = vmatpush1.bf16.xpose.msra.mxu0 0
        %1063 = vmatprep.subr.bf16.mxu0 0
        %1064 = vmatpush1.bf16.xpose.msra.mxu0 0
        %1065 = vmatprep.subr.bf16.mxu0 0
        %1066 = vmatpush1.bf16.xpose.msra.mxu0 0
        %1067 = vmatprep.subr.bf16.mxu0 0
        %1068 = vmatpush1.bf16.xpose.msra.mxu0 0
        %1069 = vmatprep.subr.bf16.mxu0 0
        %1070 = vmatpush1.bf16.xpose.msra.mxu0 0
        %1071 = vmatprep.subr.bf16.mxu0 0
        %1072 = vmatpush1.bf16.xpose.msra.mxu0 0
        %1073 = vmatprep.subr.bf16.mxu0 0
        %1074 = vmatpush1.bf16.xpose.msra.mxu0 0
        %1075 = vmatprep.subr.bf16.mxu0 0
        %1076 = vmatpush1.bf16.xpose.msra.mxu0 0
        %1077 = vmatprep.subr.bf16.mxu0 0
        %1078 = vmatpush1.bf16.xpose.msra.mxu0 0
        %1079 = vmatprep.subr.bf16.mxu0 0
        %1080 = vmatpush1.bf16.xpose.msra.mxu0 0
        %1081 = vmatprep.subr.bf16.mxu0 0
        %1082 = vmatpush1.bf16.xpose.msra.mxu0 0
        %1083 = vmatprep.subr.bf16.mxu0 0
        %1084 = vmatpush1.bf16.xpose.msra.mxu0 0
        %1085 = vmatprep.subr.bf16.mxu0 0
        %1086 = vmatpush1.bf16.xpose.msra.mxu0 0
        %1087 = vmatprep.subr.bf16.mxu0 0
        %1088 = vmatpush1.bf16.xpose.msra.mxu0 0
        %1089 = vmatprep.subr.bf16.mxu0 0
        %1090 = vmatpush1.bf16.xpose.msra.mxu0 0
        %1091 = vmatprep.mubr.bf16.mxu0 0
        %1092 = vmatmul.mubr.bf16.gmra.mrb[0].mxu0 %v1054
        %v1093 = vpop.f32.mrb[0].mxu0
        %v1094 = vadd.f32 0.0, %v1093
        %v1095 = vpop.f32.mrb[0].mxu0
        %v1096 = vpop.f32.mrb[0].mxu0
        %v1097 = vpop.f32.mrb[0].mxu0
        %1098 = vdwg.mxu0
        %v1099 = vmul.f32 %v1094, 0.17677669
        %v1100 = vsel %vm752, %v1099, -1000000.0
        %v1101 = vsel %vm754, %v1100, -inf
        %1102 = vmax.xlane.f32.xlu0 %v1101
        %v1103 = vpop.xlane.xlu0 %1102
        %v1104 = vsub.f32 %v1100, %v1103
        %v1105 = vmul.f32 %v1104, 1.442695
        %v1106 = vpow.pop %v1105
        %v1107 = vsel %vm754, %v1106, 0.0
        %1108 = vadd.xlane.f32.xlu0 %v1107
        %v1109 = vpop.xlane.xlu0 %1108
        %v1110 = vrcp.pop %v1109
        %v1111 = vmul.f32 %v1106, %v1110
        %v1112 = vpack.c.bf16 %v1111, %v1111
        %1113 = vrot.lane.b32.xlu0 %v702, 64
        %v1114 = vpop.permute.xlu0 %1113
        %v1116 = vsel %vm754, %v1112, 0
        %v1119 = vsel %vm770, %v1114, 0
        %1121 = vmatprep.subr.bf16.mxu0 0
        %1122 = vmatpush1.bf16.msra.mxu0 %v1119
        %1123 = vmatprep.subr.bf16.mxu0 0
        %1124 = vmatpush1.bf16.msra.mxu0 0
        %1125 = vmatprep.subr.bf16.mxu0 0
        %1126 = vmatpush1.bf16.msra.mxu0 0
        %1127 = vmatprep.subr.bf16.mxu0 0
        %1128 = vmatpush1.bf16.msra.mxu0 0
        %1129 = vmatprep.subr.bf16.mxu0 0
        %1130 = vmatpush1.bf16.msra.mxu0 0
        %1131 = vmatprep.subr.bf16.mxu0 0
        %1132 = vmatpush1.bf16.msra.mxu0 0
        %1133 = vmatprep.subr.bf16.mxu0 0
        %1134 = vmatpush1.bf16.msra.mxu0 0
        %1135 = vmatprep.subr.bf16.mxu0 0
        %1136 = vmatpush1.bf16.msra.mxu0 0
        %1137 = vmatprep.subr.bf16.mxu0 0
        %1138 = vmatpush1.bf16.msra.mxu0 0
        %1139 = vmatprep.subr.bf16.mxu0 0
        %1140 = vmatpush1.bf16.msra.mxu0 0
        %1141 = vmatprep.subr.bf16.mxu0 0
        %1142 = vmatpush1.bf16.msra.mxu0 0
        %1143 = vmatprep.subr.bf16.mxu0 0
        %1144 = vmatpush1.bf16.msra.mxu0 0
        %1145 = vmatprep.subr.bf16.mxu0 0
        %1146 = vmatpush1.bf16.msra.mxu0 0
        %1147 = vmatprep.subr.bf16.mxu0 0
        %1148 = vmatpush1.bf16.msra.mxu0 0
        %1149 = vmatprep.subr.bf16.mxu0 0
        %1150 = vmatpush1.bf16.msra.mxu0 0
        %1151 = vmatprep.subr.bf16.mxu0 0
        %1152 = vmatpush1.bf16.msra.mxu0 0
        %1153 = vmatprep.mubr.bf16.mxu0 0
        %1154 = vmatmul.mubr.bf16.gmra.mrb[0].mxu0 %v1116
        %v1155 = vpop.f32.mrb[0].mxu0
        %v1156 = vadd.f32 0.0, %v1155
        %v1157 = vpop.f32.mrb[0].mxu0
        %v1158 = vpop.f32.mrb[0].mxu0
        %v1159 = vpop.f32.mrb[0].mxu0
        %1160 = vdwg.mxu0
        %v1161 = vpack.c.bf16 %v1156, %v1156
        %v1162 = vld [vmem:[#allocation12 + $0x20] sm:$0xf]
        %v1163 = vld [vmem:[#allocation12 + $0x24] sm:$0xf]
        %v1164 = vld [vmem:[#allocation12 + $0x28] sm:$0xf]
        %v1165 = vld [vmem:[#allocation12 + $0x2c] sm:$0xf]
        %v1170 = vunpack.c.l.b16 %v1162
        %v1171 = vunpack.c.l.b16 %v1163
        %v1172 = vunpack.c.l.b16 %v1164
        %v1173 = vunpack.c.l.b16 %v1165
        %v1174 = vpack.c.b16 %v1171, %v1170
        %v1175 = vpack.c.b16 %v1173, %v1172
        %v1179 = vsel %vm703, %v1161, 0
        %1181 = vmatprep.subr.bf16.mxu0 0
        %1182 = vmatpush1.bf16.msra.mxu0 %v1174
        %1183 = vmatprep.subr.bf16.mxu0 0
        %1184 = vmatpush1.bf16.msra.mxu0 %v1175
        %1185 = vmatprep.subr.bf16.mxu0 0
        %1186 = vmatpush1.bf16.msra.mxu0 0
        %1187 = vmatprep.subr.bf16.mxu0 0
        %1188 = vmatpush1.bf16.msra.mxu0 0
        %1189 = vmatprep.subr.bf16.mxu0 0
        %1190 = vmatpush1.bf16.msra.mxu0 0
        %1191 = vmatprep.subr.bf16.mxu0 0
        %1192 = vmatpush1.bf16.msra.mxu0 0
        %1193 = vmatprep.subr.bf16.mxu0 0
        %1194 = vmatpush1.bf16.msra.mxu0 0
        %1195 = vmatprep.subr.bf16.mxu0 0
        %1196 = vmatpush1.bf16.msra.mxu0 0
        %1197 = vmatprep.subr.bf16.mxu0 0
        %1198 = vmatpush1.bf16.msra.mxu0 0
        %1199 = vmatprep.subr.bf16.mxu0 0
        %1200 = vmatpush1.bf16.msra.mxu0 0
        %1201 = vmatprep.subr.bf16.mxu0 0
        %1202 = vmatpush1.bf16.msra.mxu0 0
        %1203 = vmatprep.subr.bf16.mxu0 0
        %1204 = vmatpush1.bf16.msra.mxu0 0
        %1205 = vmatprep.subr.bf16.mxu0 0
        %1206 = vmatpush1.bf16.msra.mxu0 0
        %1207 = vmatprep.subr.bf16.mxu0 0
        %1208 = vmatpush1.bf16.msra.mxu0 0
        %1209 = vmatprep.subr.bf16.mxu0 0
        %1210 = vmatpush1.bf16.msra.mxu0 0
        %1211 = vmatprep.subr.bf16.mxu0 0
        %1212 = vmatpush1.bf16.msra.mxu0 0
        %1213 = vmatprep.mubr.bf16.mxu0 0
        %1214 = vmatmul.mubr.bf16.gmra.mrb[0].mxu0 %v1179
        %v1215 = vpop.f32.mrb[0].mxu0
        %v1216 = vadd.f32 0.0, %v1215
        %v1217 = vpop.f32.mrb[0].mxu0
        %v1218 = vpop.f32.mrb[0].mxu0
        %v1219 = vpop.f32.mrb[0].mxu0
        %1220 = vdwg.mxu0
        %v1221 = vadd.f32 %v1044, %v1216
        %1222 = vrot.lane.b32.xlu0 %v700, 32
        %v1223 = vpop.permute.xlu0 %1222
        %1224 = vrot.lane.b32.xlu0 %v701, 32
        %v1225 = vpop.permute.xlu0 %1224
        %v1227 = vsel %vm703, %v1223, 0
        %v1230 = vsel %vm703, %v1225, 0
        %1232 = vmatprep.subr.bf16.mxu0 0
        %1233 = vmatpush1.bf16.xpose.msra.mxu0 %v1230
        %1234 = vmatprep.subr.bf16.mxu0 0
        %1235 = vmatpush1.bf16.xpose.msra.mxu0 0
        %1236 = vmatprep.subr.bf16.mxu0 0
        %1237 = vmatpush1.bf16.xpose.msra.mxu0 0
        %1238 = vmatprep.subr.bf16.mxu0 0
        %1239 = vmatpush1.bf16.xpose.msra.mxu0 0
        %1240 = vmatprep.subr.bf16.mxu0 0
        %1241 = vmatpush1.bf16.xpose.msra.mxu0 0
        %1242 = vmatprep.subr.bf16.mxu0 0
        %1243 = vmatpush1.bf16.xpose.msra.mxu0 0
        %1244 = vmatprep.subr.bf16.mxu0 0
        %1245 = vmatpush1.bf16.xpose.msra.mxu0 0
        %1246 = vmatprep.subr.bf16.mxu0 0
        %1247 = vmatpush1.bf16.xpose.msra.mxu0 0
        %1248 = vmatprep.subr.bf16.mxu0 0
        %1249 = vmatpush1.bf16.xpose.msra.mxu0 0
        %1250 = vmatprep.subr.bf16.mxu0 0
        %1251 = vmatpush1.bf16.xpose.msra.mxu0 0
        %1252 = vmatprep.subr.bf16.mxu0 0
        %1253 = vmatpush1.bf16.xpose.msra.mxu0 0
        %1254 = vmatprep.subr.bf16.mxu0 0
        %1255 = vmatpush1.bf16.xpose.msra.mxu0 0
        %1256 = vmatprep.subr.bf16.mxu0 0
        %1257 = vmatpush1.bf16.xpose.msra.mxu0 0
        %1258 = vmatprep.subr.bf16.mxu0 0
        %1259 = vmatpush1.bf16.xpose.msra.mxu0 0
        %1260 = vmatprep.subr.bf16.mxu0 0
        %1261 = vmatpush1.bf16.xpose.msra.mxu0 0
        %1262 = vmatprep.subr.bf16.mxu0 0
        %1263 = vmatpush1.bf16.xpose.msra.mxu0 0
        %1264 = vmatprep.mubr.bf16.mxu0 0
        %1265 = vmatmul.mubr.bf16.gmra.mrb[0].mxu0 %v1227
        %v1266 = vpop.f32.mrb[0].mxu0
        %v1267 = vadd.f32 0.0, %v1266
        %v1268 = vpop.f32.mrb[0].mxu0
        %v1269 = vpop.f32.mrb[0].mxu0
        %v1270 = vpop.f32.mrb[0].mxu0
        %1271 = vdwg.mxu0
        %v1272 = vmul.f32 %v1267, 0.17677669
        %v1273 = vsel %vm752, %v1272, -1000000.0
        %v1274 = vsel %vm754, %v1273, -inf
        %1275 = vmax.xlane.f32.xlu0 %v1274
        %v1276 = vpop.xlane.xlu0 %1275
        %v1277 = vsub.f32 %v1273, %v1276
        %v1278 = vmul.f32 %v1277, 1.442695
        %v1279 = vpow.pop %v1278
        %v1280 = vsel %vm754, %v1279, 0.0
        %1281 = vadd.xlane.f32.xlu0 %v1280
        %v1282 = vpop.xlane.xlu0 %1281
        %v1283 = vrcp.pop %v1282
        %v1284 = vmul.f32 %v1279, %v1283
        %v1285 = vpack.c.bf16 %v1284, %v1284
        %1286 = vrot.lane.b32.xlu0 %v702, 32
        %v1287 = vpop.permute.xlu0 %1286
        %v1289 = vsel %vm754, %v1285, 0
        %v1292 = vsel %vm770, %v1287, 0
        %1294 = vmatprep.subr.bf16.mxu0 0
        %1295 = vmatpush1.bf16.msra.mxu0 %v1292
        %1296 = vmatprep.subr.bf16.mxu0 0
        %1297 = vmatpush1.bf16.msra.mxu0 0
        %1298 = vmatprep.subr.bf16.mxu0 0
        %1299 = vmatpush1.bf16.msra.mxu0 0
        %1300 = vmatprep.subr.bf16.mxu0 0
        %1301 = vmatpush1.bf16.msra.mxu0 0
        %1302 = vmatprep.subr.bf16.mxu0 0
        %1303 = vmatpush1.bf16.msra.mxu0 0
        %1304 = vmatprep.subr.bf16.mxu0 0
        %1305 = vmatpush1.bf16.msra.mxu0 0
        %1306 = vmatprep.subr.bf16.mxu0 0
        %1307 = vmatpush1.bf16.msra.mxu0 0
        %1308 = vmatprep.subr.bf16.mxu0 0
        %1309 = vmatpush1.bf16.msra.mxu0 0
        %1310 = vmatprep.subr.bf16.mxu0 0
        %1311 = vmatpush1.bf16.msra.mxu0 0
        %1312 = vmatprep.subr.bf16.mxu0 0
        %1313 = vmatpush1.bf16.msra.mxu0 0
        %1314 = vmatprep.subr.bf16.mxu0 0
        %1315 = vmatpush1.bf16.msra.mxu0 0
        %1316 = vmatprep.subr.bf16.mxu0 0
        %1317 = vmatpush1.bf16.msra.mxu0 0
        %1318 = vmatprep.subr.bf16.mxu0 0
        %1319 = vmatpush1.bf16.msra.mxu0 0
        %1320 = vmatprep.subr.bf16.mxu0 0
        %1321 = vmatpush1.bf16.msra.mxu0 0
        %1322 = vmatprep.subr.bf16.mxu0 0
        %1323 = vmatpush1.bf16.msra.mxu0 0
        %1324 = vmatprep.subr.bf16.mxu0 0
        %1325 = vmatpush1.bf16.msra.mxu0 0
        %1326 = vmatprep.mubr.bf16.mxu0 0
        %1327 = vmatmul.mubr.bf16.gmra.mrb[0].mxu0 %v1289
        %v1328 = vpop.f32.mrb[0].mxu0
        %v1329 = vadd.f32 0.0, %v1328
        %v1330 = vpop.f32.mrb[0].mxu0
        %v1331 = vpop.f32.mrb[0].mxu0
        %v1332 = vpop.f32.mrb[0].mxu0
        %1333 = vdwg.mxu0
        %v1334 = vpack.c.bf16 %v1329, %v1329
        %v1335 = vld [vmem:[#allocation12 + $0x30] sm:$0xf]
        %v1336 = vld [vmem:[#allocation12 + $0x34] sm:$0xf]
        %v1337 = vld [vmem:[#allocation12 + $0x38] sm:$0xf]
        %v1338 = vld [vmem:[#allocation12 + $0x3c] sm:$0xf]
        %v1343 = vunpack.c.l.b16 %v1335
        %v1344 = vunpack.c.l.b16 %v1336
        %v1345 = vunpack.c.l.b16 %v1337
        %v1346 = vunpack.c.l.b16 %v1338
        %v1347 = vpack.c.b16 %v1344, %v1343
        %v1348 = vpack.c.b16 %v1346, %v1345
        %v1352 = vsel %vm703, %v1334, 0
        %1354 = vmatprep.subr.bf16.mxu0 0
        %1355 = vmatpush1.bf16.msra.mxu0 %v1347
        %1356 = vmatprep.subr.bf16.mxu0 0
        %1357 = vmatpush1.bf16.msra.mxu0 %v1348
        %1358 = vmatprep.subr.bf16.mxu0 0
        %1359 = vmatpush1.bf16.msra.mxu0 0
        %1360 = vmatprep.subr.bf16.mxu0 0
        %1361 = vmatpush1.bf16.msra.mxu0 0
        %1362 = vmatprep.subr.bf16.mxu0 0
        %1363 = vmatpush1.bf16.msra.mxu0 0
        %1364 = vmatprep.subr.bf16.mxu0 0
        %1365 = vmatpush1.bf16.msra.mxu0 0
        %1366 = vmatprep.subr.bf16.mxu0 0
        %1367 = vmatpush1.bf16.msra.mxu0 0
        %1368 = vmatprep.subr.bf16.mxu0 0
        %1369 = vmatpush1.bf16.msra.mxu0 0
        %1370 = vmatprep.subr.bf16.mxu0 0
        %1371 = vmatpush1.bf16.msra.mxu0 0
        %1372 = vmatprep.subr.bf16.mxu0 0
        %1373 = vmatpush1.bf16.msra.mxu0 0
        %1374 = vmatprep.subr.bf16.mxu0 0
        %1375 = vmatpush1.bf16.msra.mxu0 0
        %1376 = vmatprep.subr.bf16.mxu0 0
        %1377 = vmatpush1.bf16.msra.mxu0 0
        %1378 = vmatprep.subr.bf16.mxu0 0
        %1379 = vmatpush1.bf16.msra.mxu0 0
        %1380 = vmatprep.subr.bf16.mxu0 0
        %1381 = vmatpush1.bf16.msra.mxu0 0
        %1382 = vmatprep.subr.bf16.mxu0 0
        %1383 = vmatpush1.bf16.msra.mxu0 0
        %1384 = vmatprep.subr.bf16.mxu0 0
        %1385 = vmatpush1.bf16.msra.mxu0 0
        %1386 = vmatprep.mubr.bf16.mxu0 0
        %1387 = vmatmul.mubr.bf16.gmra.mrb[0].mxu0 %v1352
        %v1388 = vpop.f32.mrb[0].mxu0
        %v1389 = vadd.f32 0.0, %v1388
        %v1390 = vpop.f32.mrb[0].mxu0
        %v1391 = vpop.f32.mrb[0].mxu0
        %v1392 = vpop.f32.mrb[0].mxu0
        %1393 = vdwg.mxu0
        %v1394 = vadd.f32 %v1221, %v1389
        %v1395 = vadd.f32 %v383, %v1394
        %v1396 = vld [vmem:[#allocation13] sm:$0x1]
        %v1397 = vld [vmem:[#allocation15] sm:$0x1]
        %1398 = vadd.xlane.f32.xlu0 %v1395
        %v1399 = vpop.xlane.xlu0 %1398
        %v1400 = vrcp.pop 128.0
        %v1401 = vmul.f32 %v1399, %v1400
        %v1402 = vsub.f32 %v1395, %v1401
        %v1403 = vmul.f32 %v1402, %v1402
        %1404 = vadd.xlane.f32.xlu0 %v1403
        %v1405 = vpop.xlane.xlu0 %1404
        %v1406 = vmul.f32 %v1405, %v1400
        %v1407 = vadd.f32 %v1406, 1e-05
        %v1408 = vrsqrt.pop %v1407
        %v1409 = vmul.f32 %v1402, %v1408
        %v1411 = vlaneseq
        %v1412 = vshrl.u32 %v1411, 7
        %v1413 = vsub.s32 0, %v1412
        %v1414 = vrot.slane %v1396, %v1413
        %v1416 = vmul.f32 %v1409, %v1414
        %v1418 = vlaneseq
        %v1419 = vshrl.u32 %v1418, 7
        %v1420 = vsub.s32 0, %v1419
        %v1421 = vrot.slane %v1397, %v1420
        %v1423 = vadd.f32 %v1416, %v1421
        %1424 = vst [vmem:[%s381] sm:$0xff] %v1423
        %s1425 = sand.u32 %s192, 1
        %s1426 = scalar_lea.sflag [#allocation6], %s1425
        %s1427 = sand.u32 %s192, 1
        %s1428 = smul.addr %s1427, 8
        %s1429 = scalar_lea.vmem [#allocation16], %s1428
        // Predicated region
        $region77: #{tpu_custom_call.1} parent=47 // pred_check
          %p1430 = pneg %p202
        $region78: #{tpu_custom_call.1} parent=47 // pred_check_branch
          %1432 = sbr.rel (%p1430) target = $region80
        $region79: #{tpu_custom_call.1} parent=47 // pred_region
          %s1434 = ssub.s32 128, 128
          %1435 = vsyncadd %s1426, %s1434
          %s1436 = smul.addr %s32, 128
          %s1437 = scalar_lea.hbm %s8, %s1436
          %s1439 = sshll.u32 %s1429, 4
          %s1440 = int_to_ptr.vmem [resolvable:$true] %s1439
          %1442 = dma.vmem_to_hbm [thread:$0]  %s1440, 128, %s1437, %s1426
        $region80: #{tpu_custom_call.1} parent=47 // pred_fallthru
          _
      $region48: #{tpu_custom_call.1} parent=5 // pred_fallthru
        _
      %p1443 = scmp.le.s32.totalorder 2, %s27
      // Predicated region
      $region81: #{tpu_custom_call.1} parent=5 // pred_check
        %p1444 = pneg %p1443
      $region82: #{tpu_custom_call.1} parent=5 // pred_check_branch
        %1446 = sbr.rel (%p1444) target = $region84
      $region83: #{tpu_custom_call.1} parent=5 // pred_region
        %s1447 = ssub.s32 %s27, 2
        // Predicated region
        $region85: #{tpu_custom_call.1} parent=83 // pred_check
          %p1448 = pneg %p208
        $region86: #{tpu_custom_call.1} parent=83 // pred_check_branch
          %1450 = sbr.rel (%p1448) target = $region88
        $region87: #{tpu_custom_call.1} parent=83 // pred_region
          %s1451 = sand.u32 %s193, 1
          %s1452 = scalar_lea.sflag [#allocation6], %s1451
          %s1453 = sand.u32 %s193, 1
          %s1454 = smul.addr %s1453, 8
          %s1455 = scalar_lea.vmem [#allocation16], %s1454
          %1456 = dma.done %s1452, 128
        $region88: #{tpu_custom_call.1} parent=83 // pred_fallthru
          _
      $region84: #{tpu_custom_call.1} parent=5 // pred_fallthru
        _
    $region6: #{tpu_custom_call.1} parent=1 // loop_footer
      %s31 = sadd.s32 1, %s27
    $region7: #{tpu_custom_call.1} parent=1 // loop_footer_branch
      %26 = sbr.rel target = $region3
    $region8: #{tpu_custom_call.1} parent=1 // loop_exit
      _
    %1457 = vsyncpa [#allocation5], 1
    %s1458 = scalar_lea.sflag [#allocation5], 1
    %1459 = vsyncpa %s1458, 1
    %1460 = vsyncpa [#allocation8], 1
    %1461 = vsyncpa [#allocation11], 1
    %1462 = vsyncpa [#allocation14], 1
    %1463 = vsyncpa [#allocation6], 1
    %s1464 = scalar_lea.sflag [#allocation6], 1
    %1465 = vsyncpa %s1464, 1

// kernel: tpu_custom_call.1
$region0: #{tpu_custom_call.1}
  #allocation0 [shape = 'u32[]', space=smem, size = 0x4, offset = 0x4, fixed_abs, tag = 'smem constant byte address 0x4 - core index']
  #allocation1 [shape = 'u32[144,128]{1,0:T(1,128)}', space=vmem, size = 0x12000, scoped, tag = 'internal scratch']
  #allocation2 [shape = 's32[1]{0}', space=sflag, size = 0x4, scoped, tag = 'scoped memory for tpu_custom_call.1']
  #allocation3 [shape = 'u8[512]{0}', space=smem, size = 0x200, scoped, tag = 'prefetched SMEM operand 0']
  %s0 = inlined_call_operand.hbm [shape: s32[2], index: 0, kind: input, shape index: {}]
  %s1 = inlined_call_operand.hbm [shape: f32[2,8,128], index: 1, kind: input, shape index: {}]
  %s2 = inlined_call_operand.hbm [shape: bf16[128,128], index: 2, kind: input, shape index: {}]
  %s3 = inlined_call_operand.hbm [shape: bf16[128,128], index: 3, kind: input, shape index: {}]
  %s4 = inlined_call_operand.hbm [shape: bf16[128,128], index: 4, kind: input, shape index: {}]
  %s5 = inlined_call_operand.hbm [shape: bf16[128,128], index: 5, kind: input, shape index: {}]
  %s6 = inlined_call_operand.hbm [shape: f32[1,128], index: 6, kind: input, shape index: {}]
  %s7 = inlined_call_operand.hbm [shape: f32[1,128], index: 7, kind: input, shape index: {}]
  %s8 = inlined_call_operand.hbm [shape: f32[2,8,128], index: 8, kind: output, shape index: {}]
  %s9 = sld [smem:[#allocation0]]
  $region89: #{tpu_custom_call.1} parent=0
    _
  %s11 = ssub.s32 1, %s9
  %s12 = scalar_select 0, %s11, %s9
  %14 = dma.hbm_to_smem %s0, 16, [#allocation3], [#allocation2]
  %15 = dma.done [#allocation2], 16
  %16 = sfence
  $region1: #{tpu_custom_call.1} parent=0
    #allocation4 [shape = 'u8[8192]{0}', space=vmem, size = 0x2000, scoped, tag = 'input window, operand 1']
    #allocation5 [shape = 's32[2]{0}', space=sflag, size = 0x8, scoped, tag = 'scoped memory for tpu_custom_call.1']
    #allocation6 [shape = 's32[2]{0}', space=sflag, size = 0x8, scoped, tag = 'scoped memory for tpu_custom_call.1']
    #allocation7 [shape = 'u8[32768]{0}', space=vmem, size = 0x8000, scoped, tag = 'input window, operand 2, single buffered']
    #allocation8 [shape = 's32[1]{0}', space=sflag, size = 0x4, scoped, tag = 'scoped memory for tpu_custom_call.1']
    #allocation9 [shape = 'u8[32768]{0}', space=vmem, size = 0x8000, scoped, tag = 'input window, operand 3, single buffered']
    #allocation10 [shape = 'u8[32768]{0}', space=vmem, size = 0x8000, scoped, tag = 'input window, operand 4, single buffered']
    #allocation11 [shape = 's32[1]{0}', space=sflag, size = 0x4, scoped, tag = 'scoped memory for tpu_custom_call.1']
    #allocation12 [shape = 'u8[32768]{0}', space=vmem, size = 0x8000, scoped, tag = 'input window, operand 5, single buffered']
    #allocation13 [shape = 'u8[512]{0}', space=vmem, size = 0x400, scoped, tag = 'input window, operand 6, single buffered']
    #allocation14 [shape = 's32[1]{0}', space=sflag, size = 0x4, scoped, tag = 'scoped memory for tpu_custom_call.1']
    #allocation15 [shape = 'u8[512]{0}', space=vmem, size = 0x400, scoped, tag = 'input window, operand 7, single buffered']
    #allocation16 [shape = 'u8[8192]{0}', space=vmem, size = 0x2000, scoped, tag = 'output window, operand 0']
    %17 = vsyncpa [#allocation5], 0
    %s18 = scalar_lea.sflag [#allocation5], 1
    %19 = vsyncpa %s18, 0
    %20 = vsyncpa [#allocation8], 0
    %21 = vsyncpa [#allocation11], 0
    %22 = vsyncpa [#allocation14], 0
    %23 = vsyncpa [#allocation6], 0
    %s24 = scalar_lea.sflag [#allocation6], 1
    %25 = vsyncpa %s24, 0
    loop: start=0, step=1, limit=4
    $region2: #{tpu_custom_call.1} parent=1 // loop_pre_header
      _
    $region3: #{tpu_custom_call.1} parent=1 // loop_header
      %s27 = sphi 0, %s31
      %p28 = scmp.ge.s32.totalorder %s27, 4
      %s37 = sphi 0, %s39
      %s40 = sphi 0, %s37
      %s41 = sphi 0, %s40
      %s57 = sphi 0, %s41
      %s61 = sphi 0, %s61
      %s63 = sphi 0, %s61
      %s64 = sphi 0, %s63
      %s78 = sphi 0, %s64
      %s82 = sphi 0, %s82
      %s84 = sphi 0, %s82
      %s85 = sphi 0, %s84
      %s99 = sphi 0, %s85
      %s103 = sphi 0, %s103
      %s105 = sphi 0, %s103
      %s106 = sphi 0, %s105
      %s120 = sphi 0, %s106
      %s124 = sphi 0, %s124
      %s126 = sphi 0, %s124
      %s127 = sphi 0, %s126
      %s141 = sphi 0, %s127
      %s145 = sphi 0, %s145
      %s147 = sphi 0, %s145
      %s148 = sphi 0, %s147
      %s162 = sphi 0, %s148
      %s166 = sphi 0, %s166
      %s168 = sphi 0, %s166
      %s169 = sphi 0, %s168
      %s183 = sphi 0, %s169
      %s189 = sphi 0, %s191
      %s192 = sphi 0, %s189
      %s193 = sphi 0, %s192
      %s209 = sphi 0, %s193
    $region4: #{tpu_custom_call.1} parent=1 // loop_header_branch
      %30 = sbr.rel (%p28) target = $region8
    $region5: #{tpu_custom_call.1} parent=1 // loop_body
      %s32 = ssub.s32 %s27, 1
      %s33 = ssub.s32 %s27, 2
      %s34 = sadd.s32 %s27, 1
      %s35 = ssub.s32 %s27, %s34
      %p36 = scmp.eq.s32.totalorder %s35, 0
      %s38 = sadd.s32 %s37, 1
      %s39 = scalar_select %p36, %s37, %s38
      %p42 = pneg %p36
      %p43 = scmp.eq.s32.totalorder %s27, 1
      %p44 = por %p42, %p43
      %p45 = scmp.ne.s32.totalorder %s37, %s40
      %p46 = scmp.eq.s32.totalorder %s27, 0
      %p47 = por %p45, %p46
      %p48 = scmp.ne.s32.totalorder %s37, %s40
      %p49 = scmp.eq.s32.totalorder %s32, 1
      %p50 = por %p48, %p49
      %p51 = scmp.ne.s32.totalorder %s40, %s41
      %p52 = scmp.eq.s32.totalorder %s32, 0
      %p53 = por %p51, %p52
      %p54 = scmp.ne.s32.totalorder %s40, %s41
      %p55 = scmp.eq.s32.totalorder %s33, 1
      %p56 = por %p54, %p55
      %p58 = scmp.ne.s32.totalorder %s41, %s57
      %p59 = scmp.eq.s32.totalorder %s33, 0
      %p60 = por %p58, %p59
      %s62 = sadd.s32 %s61, 1
      %p65 = scmp.eq.s32.totalorder %s27, 1
      %p66 = scmp.ne.s32.totalorder %s61, %s63
      %p67 = scmp.eq.s32.totalorder %s27, 0
      %p68 = por %p66, %p67
      %p69 = scmp.ne.s32.totalorder %s61, %s63
      %p70 = scmp.eq.s32.totalorder %s32, 1
      %p71 = por %p69, %p70
      %p72 = scmp.ne.s32.totalorder %s63, %s64
      %p73 = scmp.eq.s32.totalorder %s32, 0
      %p74 = por %p72, %p73
      %p75 = scmp.ne.s32.totalorder %s63, %s64
      %p76 = scmp.eq.s32.totalorder %s33, 1
      %p77 = por %p75, %p76
      %p79 = scmp.ne.s32.totalorder %s64, %s78
      %p80 = scmp.eq.s32.totalorder %s33, 0
      %p81 = por %p79, %p80
      %s83 = sadd.s32 %s82, 1
      %p86 = scmp.eq.s32.totalorder %s27, 1
      %p87 = scmp.ne.s32.totalorder %s82, %s84
      %p88 = scmp.eq.s32.totalorder %s27, 0
      %p89 = por %p87, %p88
      %p90 = scmp.ne.s32.totalorder %s82, %s84
      %p91 = scmp.eq.s32.totalorder %s32, 1
      %p92 = por %p90, %p91
      %p93 = scmp.ne.s32.totalorder %s84, %s85
      %p94 = scmp.eq.s32.totalorder %s32, 0
      %p95 = por %p93, %p94
      %p96 = scmp.ne.s32.totalorder %s84, %s85
      %p97 = scmp.eq.s32.totalorder %s33, 1
      %p98 = por %p96, %p97
      %p100 = scmp.ne.s32.totalorder %s85, %s99
      %p101 = scmp.eq.s32.totalorder %s33, 0
      %p102 = por %p100, %p101
      %s104 = sadd.s32 %s103, 1
      %p107 = scmp.eq.s32.totalorder %s27, 1
      %p108 = scmp.ne.s32.totalorder %s103, %s105
      %p109 = scmp.eq.s32.totalorder %s27, 0
      %p110 = por %p108, %p109
      %p111 = scmp.ne.s32.totalorder %s103, %s105
      %p112 = scmp.eq.s32.totalorder %s32, 1
      %p113 = por %p111, %p112
      %p114 = scmp.ne.s32.totalorder %s105, %s106
      %p115 = scmp.eq.s32.totalorder %s32, 0
      %p116 = por %p114, %p115
      %p117 = scmp.ne.s32.totalorder %s105, %s106
      %p118 = scmp.eq.s32.totalorder %s33, 1
      %p119 = por %p117, %p118
      %p121 = scmp.ne.s32.totalorder %s106, %s120
      %p122 = scmp.eq.s32.totalorder %s33, 0
      %p123 = por %p121, %p122
      %s125 = sadd.s32 %s124, 1
      %p128 = scmp.eq.s32.totalorder %s27, 1
      %p129 = scmp.ne.s32.totalorder %s124, %s126
      %p130 = scmp.eq.s32.totalorder %s27, 0
      %p131 = por %p129, %p130
      %p132 = scmp.ne.s32.totalorder %s124, %s126
      %p133 = scmp.eq.s32.totalorder %s32, 1
      %p134 = por %p132, %p133
      %p135 = scmp.ne.s32.totalorder %s126, %s127
      %p136 = scmp.eq.s32.totalorder %s32, 0
      %p137 = por %p135, %p136
      %p138 = scmp.ne.s32.totalorder %s126, %s127
      %p139 = scmp.eq.s32.totalorder %s33, 1
      %p140 = por %p138, %p139
      %p142 = scmp.ne.s32.totalorder %s127, %s141
      %p143 = scmp.eq.s32.totalorder %s33, 0
      %p144 = por %p142, %p143
      %s146 = sadd.s32 %s145, 1
      %p149 = scmp.eq.s32.totalorder %s27, 1
      %p150 = scmp.ne.s32.totalorder %s145, %s147
      %p151 = scmp.eq.s32.totalorder %s27, 0
      %p152 = por %p150, %p151
      %p153 = scmp.ne.s32.totalorder %s145, %s147
      %p154 = scmp.eq.s32.totalorder %s32, 1
      %p155 = por %p153, %p154
      %p156 = scmp.ne.s32.totalorder %s147, %s148
      %p157 = scmp.eq.s32.totalorder %s32, 0
      %p158 = por %p156, %p157
      %p159 = scmp.ne.s32.totalorder %s147, %s148
      %p160 = scmp.eq.s32.totalorder %s33, 1
      %p161 = por %p159, %p160
      %p163 = scmp.ne.s32.totalorder %s148, %s162
      %p164 = scmp.eq.s32.totalorder %s33, 0
      %p165 = por %p163, %p164
      %s167 = sadd.s32 %s166, 1
      %p170 = scmp.eq.s32.totalorder %s27, 1
      %p171 = scmp.ne.s32.totalorder %s166, %s168
      %p172 = scmp.eq.s32.totalorder %s27, 0
      %p173 = por %p171, %p172
      %p174 = scmp.ne.s32.totalorder %s166, %s168
      %p175 = scmp.eq.s32.totalorder %s32, 1
      %p176 = por %p174, %p175
      %p177 = scmp.ne.s32.totalorder %s168, %s169
      %p178 = scmp.eq.s32.totalorder %s32, 0
      %p179 = por %p177, %p178
      %p180 = scmp.ne.s32.totalorder %s168, %s169
      %p181 = scmp.eq.s32.totalorder %s33, 1
      %p182 = por %p180, %p181
      %p184 = scmp.ne.s32.totalorder %s169, %s183
      %p185 = scmp.eq.s32.totalorder %s33, 0
      %p186 = por %p184, %p185
      %s187 = ssub.s32 %s27, %s34
      %p188 = scmp.eq.s32.totalorder %s187, 0
      %s190 = sadd.s32 %s189, 1
      %s191 = scalar_select %p188, %s189, %s190
      %p194 = pneg %p188
      %p195 = scmp.eq.s32.totalorder %s27, 1
      %p196 = por %p194, %p195
      %p197 = scmp.ne.s32.totalorder %s189, %s192
      %p198 = scmp.eq.s32.totalorder %s27, 0
      %p199 = por %p197, %p198
      %p200 = scmp.ne.s32.totalorder %s189, %s192
      %p201 = scmp.eq.s32.totalorder %s32, 1
      %p202 = por %p200, %p201
      %p203 = scmp.ne.s32.totalorder %s192, %s193
      %p204 = scmp.eq.s32.totalorder %s32, 0
      %p205 = por %p203, %p204
      %p206 = scmp.ne.s32.totalorder %s192, %s193
      %p207 = scmp.eq.s32.totalorder %s33, 1
      %p208 = por %p206, %p207
      %p210 = scmp.ne.s32.totalorder %s193, %s209
      %p211 = scmp.eq.s32.totalorder %s33, 0
      %p212 = por %p210, %p211
      %p213 = scmp.le.s32.totalorder 1, %s27
      %p214 = scmp.lt.s32.totalorder %s27, 3
      %p215 = pnand %p213, %p214
      %p216 = pneg %p215
      // Predicated region
      $region9: #{tpu_custom_call.1} parent=5 // pred_check
        _
      $region10: #{tpu_custom_call.1} parent=5 // pred_check_branch
        %218 = sbr.rel (%p215) target = $region12
      $region11: #{tpu_custom_call.1} parent=5 // pred_region
        %s219 = ssub.s32 %s27, 1
        // Predicated region
        $region13: #{tpu_custom_call.1} parent=11 // pred_check
          %p220 = pneg %p74
        $region14: #{tpu_custom_call.1} parent=11 // pred_check_branch
          %222 = sbr.rel (%p220) target = $region16
        $region15: #{tpu_custom_call.1} parent=11 // pred_region
          %s224 = ssub.s32 1024, 1024
          %225 = vsyncadd [#allocation8], %s224
          %s226 = sshll.u32 [#allocation7], 4
          %s227 = int_to_ptr.vmem [resolvable:$true] %s226
          %232 = dma.hbm_to_vmem [thread:$0]  %s2, 1024, %s227, [#allocation8], 64, 64, 4
        $region16: #{tpu_custom_call.1} parent=11 // pred_fallthru
          _
        // Predicated region
        $region17: #{tpu_custom_call.1} parent=11 // pred_check
          %p233 = pneg %p95
        $region18: #{tpu_custom_call.1} parent=11 // pred_check_branch
          %235 = sbr.rel (%p233) target = $region20
        $region19: #{tpu_custom_call.1} parent=11 // pred_region
          %s237 = ssub.s32 1024, 1024
          %238 = vsyncadd [#allocation8], %s237
          %s239 = sshll.u32 [#allocation9], 4
          %s240 = int_to_ptr.vmem [resolvable:$true] %s239
          %245 = dma.hbm_to_vmem [thread:$0]  %s3, 1024, %s240, [#allocation8], 64, 64, 4
        $region20: #{tpu_custom_call.1} parent=11 // pred_fallthru
          _
        // Predicated region
        $region21: #{tpu_custom_call.1} parent=11 // pred_check
          %p246 = pneg %p116
        $region22: #{tpu_custom_call.1} parent=11 // pred_check_branch
          %248 = sbr.rel (%p246) target = $region24
        $region23: #{tpu_custom_call.1} parent=11 // pred_region
          %s250 = ssub.s32 1024, 1024
          %251 = vsyncadd [#allocation11], %s250
          %s252 = sshll.u32 [#allocation10], 4
          %s253 = int_to_ptr.vmem [resolvable:$true] %s252
          %258 = dma.hbm_to_vmem [thread:$0]  %s4, 1024, %s253, [#allocation11], 64, 64, 4
        $region24: #{tpu_custom_call.1} parent=11 // pred_fallthru
          _
        // Predicated region
        $region25: #{tpu_custom_call.1} parent=11 // pred_check
          %p259 = pneg %p137
        $region26: #{tpu_custom_call.1} parent=11 // pred_check_branch
          %261 = sbr.rel (%p259) target = $region28
        $region27: #{tpu_custom_call.1} parent=11 // pred_region
          %s263 = ssub.s32 1024, 1024
          %264 = vsyncadd [#allocation11], %s263
          %s265 = sshll.u32 [#allocation12], 4
          %s266 = int_to_ptr.vmem [resolvable:$true] %s265
          %271 = dma.hbm_to_vmem [thread:$0]  %s5, 1024, %s266, [#allocation11], 64, 64, 4
        $region28: #{tpu_custom_call.1} parent=11 // pred_fallthru
          _
        // Predicated region
        $region29: #{tpu_custom_call.1} parent=11 // pred_check
          %p272 = pneg %p158
        $region30: #{tpu_custom_call.1} parent=11 // pred_check_branch
          %274 = sbr.rel (%p272) target = $region32
        $region31: #{tpu_custom_call.1} parent=11 // pred_region
          %s276 = ssub.s32 16, 16
          %277 = vsyncadd [#allocation14], %s276
          %s279 = sshll.u32 [#allocation13], 4
          %s280 = int_to_ptr.vmem [resolvable:$true] %s279
          %282 = dma.hbm_to_vmem [thread:$0]  %s6, 16, %s280, [#allocation14]
        $region32: #{tpu_custom_call.1} parent=11 // pred_fallthru
          _
        // Predicated region
        $region33: #{tpu_custom_call.1} parent=11 // pred_check
          %p283 = pneg %p179
        $region34: #{tpu_custom_call.1} parent=11 // pred_check_branch
          %285 = sbr.rel (%p283) target = $region36
        $region35: #{tpu_custom_call.1} parent=11 // pred_region
          %s287 = ssub.s32 16, 16
          %288 = vsyncadd [#allocation14], %s287
          %s290 = sshll.u32 [#allocation15], 4
          %s291 = int_to_ptr.vmem [resolvable:$true] %s290
          %293 = dma.hbm_to_vmem [thread:$0]  %s7, 16, %s291, [#allocation14]
        $region36: #{tpu_custom_call.1} parent=11 // pred_fallthru
          _
      $region12: #{tpu_custom_call.1} parent=5 // pred_fallthru
        _
      %p294 = scmp.lt.s32.totalorder %s27, 2
      // Predicated region
      $region37: #{tpu_custom_call.1} parent=5 // pred_check
        %p295 = pneg %p294
      $region38: #{tpu_custom_call.1} parent=5 // pred_check_branch
        %297 = sbr.rel (%p295) target = $region40
      $region39: #{tpu_custom_call.1} parent=5 // pred_region
        // Predicated region
        $region41: #{tpu_custom_call.1} parent=39 // pred_check
          %p298 = pneg %p47
        $region42: #{tpu_custom_call.1} parent=39 // pred_check_branch
          %300 = sbr.rel (%p298) target = $region44
        $region43: #{tpu_custom_call.1} parent=39 // pred_region
          %s301 = sand.u32 %s37, 1
          %s302 = scalar_lea.sflag [#allocation5], %s301
          %s303 = sand.u32 %s37, 1
          %s304 = smul.addr %s303, 8
          %s305 = scalar_lea.vmem [#allocation4], %s304
          %s307 = ssub.s32 128, 128
          %308 = vsyncadd %s302, %s307
          %s309 = smul.addr %s27, 128
          %s310 = scalar_lea.hbm %s1, %s309
          %s312 = sshll.u32 %s305, 4
          %s313 = int_to_ptr.vmem [resolvable:$true] %s312
          %315 = dma.hbm_to_vmem [thread:$0]  %s310, 128, %s313, %s302
        $region44: #{tpu_custom_call.1} parent=39 // pred_fallthru
          _
      $region40: #{tpu_custom_call.1} parent=5 // pred_fallthru
        _
      %p316 = scmp.le.s32.totalorder 1, %s27
      %p317 = scmp.lt.s32.totalorder %s27, 3
      %p318 = pnand %p316, %p317
      %p319 = pneg %p318
      // Predicated region
      $region45: #{tpu_custom_call.1} parent=5 // pred_check
        _
      $region46: #{tpu_custom_call.1} parent=5 // pred_check_branch
        %321 = sbr.rel (%p318) target = $region48
      $region47: #{tpu_custom_call.1} parent=5 // pred_region
        %s322 = ssub.s32 %s27, 1
        %s323 = sand.u32 %s40, 1
        %s324 = scalar_lea.sflag [#allocation5], %s323
        %s325 = sand.u32 %s40, 1
        %s326 = smul.addr %s325, 8
        %s327 = scalar_lea.vmem [#allocation4], %s326
        // Predicated region
        $region49: #{tpu_custom_call.1} parent=47 // pred_check
          %p328 = pneg %p53
        $region50: #{tpu_custom_call.1} parent=47 // pred_check_branch
          %330 = sbr.rel (%p328) target = $region52
        $region51: #{tpu_custom_call.1} parent=47 // pred_region
          %331 = dma.done %s324, 128
        $region52: #{tpu_custom_call.1} parent=47 // pred_fallthru
          _
        // Predicated region
        $region53: #{tpu_custom_call.1} parent=47 // pred_check
          %p332 = pneg %p74
        $region54: #{tpu_custom_call.1} parent=47 // pred_check_branch
          %334 = sbr.rel (%p332) target = $region56
        $region55: #{tpu_custom_call.1} parent=47 // pred_region
          %335 = dma.done [#allocation8], 1024
        $region56: #{tpu_custom_call.1} parent=47 // pred_fallthru
          _
        // Predicated region
        $region57: #{tpu_custom_call.1} parent=47 // pred_check
          %p336 = pneg %p95
        $region58: #{tpu_custom_call.1} parent=47 // pred_check_branch
          %338 = sbr.rel (%p336) target = $region60
        $region59: #{tpu_custom_call.1} parent=47 // pred_region
          %339 = dma.done [#allocation8], 1024
        $region60: #{tpu_custom_call.1} parent=47 // pred_fallthru
          _
        // Predicated region
        $region61: #{tpu_custom_call.1} parent=47 // pred_check
          %p340 = pneg %p116
        $region62: #{tpu_custom_call.1} parent=47 // pred_check_branch
          %342 = sbr.rel (%p340) target = $region64
        $region63: #{tpu_custom_call.1} parent=47 // pred_region
          %343 = dma.done [#allocation11], 1024
        $region64: #{tpu_custom_call.1} parent=47 // pred_fallthru
          _
        // Predicated region
        $region65: #{tpu_custom_call.1} parent=47 // pred_check
          %p344 = pneg %p137
        $region66: #{tpu_custom_call.1} parent=47 // pred_check_branch
          %346 = sbr.rel (%p344) target = $region68
        $region67: #{tpu_custom_call.1} parent=47 // pred_region
          %347 = dma.done [#allocation11], 1024
        $region68: #{tpu_custom_call.1} parent=47 // pred_fallthru
          _
        // Predicated region
        $region69: #{tpu_custom_call.1} parent=47 // pred_check
          %p348 = pneg %p158
        $region70: #{tpu_custom_call.1} parent=47 // pred_check_branch
          %350 = sbr.rel (%p348) target = $region72
        $region71: #{tpu_custom_call.1} parent=47 // pred_region
          %351 = dma.done [#allocation14], 16
        $region72: #{tpu_custom_call.1} parent=47 // pred_fallthru
          _
        // Predicated region
        $region73: #{tpu_custom_call.1} parent=47 // pred_check
          %p352 = pneg %p179
        $region74: #{tpu_custom_call.1} parent=47 // pred_check_branch
          %354 = sbr.rel (%p352) target = $region76
        $region75: #{tpu_custom_call.1} parent=47 // pred_region
          %355 = dma.done [#allocation14], 16
        $region76: #{tpu_custom_call.1} parent=47 // pred_fallthru
          _
        %s356 = sand.u32 %s40, 1
        %s357 = scalar_lea.sflag [#allocation5], %s356
        %s358 = sand.u32 %s40, 1
        %s359 = smul.addr %s358, 8
        %s360 = scalar_lea.vmem [#allocation4], %s359
        %p361 = pneg %p53
        %p362 = pneg %p50
        %p363 = pneg %p74
        %p364 = pneg %p71
        %p365 = pneg %p95
        %p366 = pneg %p92
        %p367 = pneg %p116
        %p368 = pneg %p113
        %p369 = pneg %p137
        %p370 = pneg %p134
        %p371 = pneg %p158
        %p372 = pneg %p155
        %p373 = pneg %p179
        %p374 = pneg %p176
        %p375 = pneg %p205
        %p376 = pneg %p202
        %s377 = sand.u32 %s192, 1
        %s378 = scalar_lea.sflag [#allocation6], %s377
        %s379 = sand.u32 %s192, 1
        %s380 = smul.addr %s379, 8
        %s381 = scalar_lea.vmem [#allocation16], %s380
        %v383 = vld [vmem:[%s327] sm:$0xff]
        %v384 = vpack.c.bf16 %v383, %v383
        %v385 = vld [vmem:[#allocation7] sm:$0xf]
        %v386 = vld [vmem:[#allocation7 + $0x4] sm:$0xf]
        %v387 = vld [vmem:[#allocation7 + $0x8] sm:$0xf]
        %v388 = vld [vmem:[#allocation7 + $0xc] sm:$0xf]
        %v389 = vld [vmem:[#allocation7 + $0x10] sm:$0xf]
        %v390 = vld [vmem:[#allocation7 + $0x14] sm:$0xf]
        %v391 = vld [vmem:[#allocation7 + $0x18] sm:$0xf]
        %v392 = vld [vmem:[#allocation7 + $0x1c] sm:$0xf]
        %v393 = vld [vmem:[#allocation7 + $0x20] sm:$0xf]
        %v394 = vld [vmem:[#allocation7 + $0x24] sm:$0xf]
        %v395 = vld [vmem:[#allocation7 + $0x28] sm:$0xf]
        %v396 = vld [vmem:[#allocation7 + $0x2c] sm:$0xf]
        %v397 = vld [vmem:[#allocation7 + $0x30] sm:$0xf]
        %v398 = vld [vmem:[#allocation7 + $0x34] sm:$0xf]
        %v399 = vld [vmem:[#allocation7 + $0x38] sm:$0xf]
        %v400 = vld [vmem:[#allocation7 + $0x3c] sm:$0xf]
        %v417 = vunpack.c.l.b16 %v385
        %v418 = vunpack.c.l.b16 %v386
        %v419 = vunpack.c.l.b16 %v387
        %v420 = vunpack.c.l.b16 %v388
        %v421 = vunpack.c.l.b16 %v389
        %v422 = vunpack.c.l.b16 %v390
        %v423 = vunpack.c.l.b16 %v391
        %v424 = vunpack.c.l.b16 %v392
        %v425 = vunpack.c.l.b16 %v393
        %v426 = vunpack.c.l.b16 %v394
        %v427 = vunpack.c.l.b16 %v395
        %v428 = vunpack.c.l.b16 %v396
        %v429 = vunpack.c.l.b16 %v397
        %v430 = vunpack.c.l.b16 %v398
        %v431 = vunpack.c.l.b16 %v399
        %v432 = vunpack.c.l.b16 %v400
        %v433 = vpack.c.b16 %v418, %v417
        %v434 = vpack.c.b16 %v420, %v419
        %v435 = vpack.c.b16 %v422, %v421
        %v436 = vpack.c.b16 %v424, %v423
        %v437 = vpack.c.b16 %v426, %v425
        %v438 = vpack.c.b16 %v428, %v427
        %v439 = vpack.c.b16 %v430, %v429
        %v440 = vpack.c.b16 %v432, %v431
        %449 = vmatprep.subr.bf16.mxu0 0
        %450 = vmatpush1.bf16.msra.mxu0 %v433
        %451 = vmatprep.subr.bf16.mxu0 0
        %452 = vmatpush1.bf16.msra.mxu0 %v434
        %453 = vmatprep.subr.bf16.mxu0 0
        %454 = vmatpush1.bf16.msra.mxu0 %v435
        %455 = vmatprep.subr.bf16.mxu0 0
        %456 = vmatpush1.bf16.msra.mxu0 %v436
        %457 = vmatprep.subr.bf16.mxu0 0
        %458 = vmatpush1.bf16.msra.mxu0 %v437
        %459 = vmatprep.subr.bf16.mxu0 0
        %460 = vmatpush1.bf16.msra.mxu0 %v438
        %461 = vmatprep.subr.bf16.mxu0 0
        %462 = vmatpush1.bf16.msra.mxu0 %v439
        %463 = vmatprep.subr.bf16.mxu0 0
        %464 = vmatpush1.bf16.msra.mxu0 %v440
        %465 = vmatprep.subr.bf16.mxu0 0
        %466 = vmatpush1.bf16.msra.mxu0 0
        %467 = vmatprep.subr.bf16.mxu0 0
        %468 = vmatpush1.bf16.msra.mxu0 0
        %469 = vmatprep.subr.bf16.mxu0 0
        %470 = vmatpush1.bf16.msra.mxu0 0
        %471 = vmatprep.subr.bf16.mxu0 0
        %472 = vmatpush1.bf16.msra.mxu0 0
        %473 = vmatprep.subr.bf16.mxu0 0
        %474 = vmatpush1.bf16.msra.mxu0 0
        %475 = vmatprep.subr.bf16.mxu0 0
        %476 = vmatpush1.bf16.msra.mxu0 0
        %477 = vmatprep.subr.bf16.mxu0 0
        %478 = vmatpush1.bf16.msra.mxu0 0
        %479 = vmatprep.subr.bf16.mxu0 0
        %480 = vmatpush1.bf16.msra.mxu0 0
        %481 = vmatprep.mubr.bf16.mxu0 0
        %482 = vmatmul.mubr.bf16.gmra.mrb[0].mxu0 %v384
        %v483 = vpop.f32.mrb[0].mxu0
        %v484 = vadd.f32 0.0, %v483
        %v485 = vpop.f32.mrb[0].mxu0
        %v486 = vpop.f32.mrb[0].mxu0
        %v487 = vpop.f32.mrb[0].mxu0
        %488 = vdwg.mxu0
        %v489 = vld [vmem:[#allocation9] sm:$0xf]
        %v490 = vld [vmem:[#allocation9 + $0x4] sm:$0xf]
        %v491 = vld [vmem:[#allocation9 + $0x8] sm:$0xf]
        %v492 = vld [vmem:[#allocation9 + $0xc] sm:$0xf]
        %v493 = vld [vmem:[#allocation9 + $0x10] sm:$0xf]
        %v494 = vld [vmem:[#allocation9 + $0x14] sm:$0xf]
        %v495 = vld [vmem:[#allocation9 + $0x18] sm:$0xf]
        %v496 = vld [vmem:[#allocation9 + $0x1c] sm:$0xf]
        %v497 = vld [vmem:[#allocation9 + $0x20] sm:$0xf]
        %v498 = vld [vmem:[#allocation9 + $0x24] sm:$0xf]
        %v499 = vld [vmem:[#allocation9 + $0x28] sm:$0xf]
        %v500 = vld [vmem:[#allocation9 + $0x2c] sm:$0xf]
        %v501 = vld [vmem:[#allocation9 + $0x30] sm:$0xf]
        %v502 = vld [vmem:[#allocation9 + $0x34] sm:$0xf]
        %v503 = vld [vmem:[#allocation9 + $0x38] sm:$0xf]
        %v504 = vld [vmem:[#allocation9 + $0x3c] sm:$0xf]
        %v521 = vunpack.c.l.b16 %v489
        %v522 = vunpack.c.l.b16 %v490
        %v523 = vunpack.c.l.b16 %v491
        %v524 = vunpack.c.l.b16 %v492
        %v525 = vunpack.c.l.b16 %v493
        %v526 = vunpack.c.l.b16 %v494
        %v527 = vunpack.c.l.b16 %v495
        %v528 = vunpack.c.l.b16 %v496
        %v529 = vunpack.c.l.b16 %v497
        %v530 = vunpack.c.l.b16 %v498
        %v531 = vunpack.c.l.b16 %v499
        %v532 = vunpack.c.l.b16 %v500
        %v533 = vunpack.c.l.b16 %v501
        %v534 = vunpack.c.l.b16 %v502
        %v535 = vunpack.c.l.b16 %v503
        %v536 = vunpack.c.l.b16 %v504
        %v537 = vpack.c.b16 %v522, %v521
        %v538 = vpack.c.b16 %v524, %v523
        %v539 = vpack.c.b16 %v526, %v525
        %v540 = vpack.c.b16 %v528, %v527
        %v541 = vpack.c.b16 %v530, %v529
        %v542 = vpack.c.b16 %v532, %v531
        %v543 = vpack.c.b16 %v534, %v533
        %v544 = vpack.c.b16 %v536, %v535
        %553 = vmatprep.subr.bf16.mxu0 0
        %554 = vmatpush1.bf16.msra.mxu0 %v537
        %555 = vmatprep.subr.bf16.mxu0 0
        %556 = vmatpush1.bf16.msra.mxu0 %v538
        %557 = vmatprep.subr.bf16.mxu0 0
        %558 = vmatpush1.bf16.msra.mxu0 %v539
        %559 = vmatprep.subr.bf16.mxu0 0
        %560 = vmatpush1.bf16.msra.mxu0 %v540
        %561 = vmatprep.subr.bf16.mxu0 0
        %562 = vmatpush1.bf16.msra.mxu0 %v541
        %563 = vmatprep.subr.bf16.mxu0 0
        %564 = vmatpush1.bf16.msra.mxu0 %v542
        %565 = vmatprep.subr.bf16.mxu0 0
        %566 = vmatpush1.bf16.msra.mxu0 %v543
        %567 = vmatprep.subr.bf16.mxu0 0
        %568 = vmatpush1.bf16.msra.mxu0 %v544
        %569 = vmatprep.subr.bf16.mxu0 0
        %570 = vmatpush1.bf16.msra.mxu0 0
        %571 = vmatprep.subr.bf16.mxu0 0
        %572 = vmatpush1.bf16.msra.mxu0 0
        %573 = vmatprep.subr.bf16.mxu0 0
        %574 = vmatpush1.bf16.msra.mxu0 0
        %575 = vmatprep.subr.bf16.mxu0 0
        %576 = vmatpush1.bf16.msra.mxu0 0
        %577 = vmatprep.subr.bf16.mxu0 0
        %578 = vmatpush1.bf16.msra.mxu0 0
        %579 = vmatprep.subr.bf16.mxu0 0
        %580 = vmatpush1.bf16.msra.mxu0 0
        %581 = vmatprep.subr.bf16.mxu0 0
        %582 = vmatpush1.bf16.msra.mxu0 0
        %583 = vmatprep.subr.bf16.mxu0 0
        %584 = vmatpush1.bf16.msra.mxu0 0
        %585 = vmatprep.mubr.bf16.mxu0 0
        %586 = vmatmul.mubr.bf16.gmra.mrb[0].mxu0 %v384
        %v587 = vpop.f32.mrb[0].mxu0
        %v588 = vadd.f32 0.0, %v587
        %v589 = vpop.f32.mrb[0].mxu0
        %v590 = vpop.f32.mrb[0].mxu0
        %v591 = vpop.f32.mrb[0].mxu0
        %592 = vdwg.mxu0
        %v593 = vld [vmem:[#allocation10] sm:$0xf]
        %v594 = vld [vmem:[#allocation10 + $0x4] sm:$0xf]
        %v595 = vld [vmem:[#allocation10 + $0x8] sm:$0xf]
        %v596 = vld [vmem:[#allocation10 + $0xc] sm:$0xf]
        %v597 = vld [vmem:[#allocation10 + $0x10] sm:$0xf]
        %v598 = vld [vmem:[#allocation10 + $0x14] sm:$0xf]
        %v599 = vld [vmem:[#allocation10 + $0x18] sm:$0xf]
        %v600 = vld [vmem:[#allocation10 + $0x1c] sm:$0xf]
        %v601 = vld [vmem:[#allocation10 + $0x20] sm:$0xf]
        %v602 = vld [vmem:[#allocation10 + $0x24] sm:$0xf]
        %v603 = vld [vmem:[#allocation10 + $0x28] sm:$0xf]
        %v604 = vld [vmem:[#allocation10 + $0x2c] sm:$0xf]
        %v605 = vld [vmem:[#allocation10 + $0x30] sm:$0xf]
        %v606 = vld [vmem:[#allocation10 + $0x34] sm:$0xf]
        %v607 = vld [vmem:[#allocation10 + $0x38] sm:$0xf]
        %v608 = vld [vmem:[#allocation10 + $0x3c] sm:$0xf]
        %v625 = vunpack.c.l.b16 %v593
        %v626 = vunpack.c.l.b16 %v594
        %v627 = vunpack.c.l.b16 %v595
        %v628 = vunpack.c.l.b16 %v596
        %v629 = vunpack.c.l.b16 %v597
        %v630 = vunpack.c.l.b16 %v598
        %v631 = vunpack.c.l.b16 %v599
        %v632 = vunpack.c.l.b16 %v600
        %v633 = vunpack.c.l.b16 %v601
        %v634 = vunpack.c.l.b16 %v602
        %v635 = vunpack.c.l.b16 %v603
        %v636 = vunpack.c.l.b16 %v604
        %v637 = vunpack.c.l.b16 %v605
        %v638 = vunpack.c.l.b16 %v606
        %v639 = vunpack.c.l.b16 %v607
        %v640 = vunpack.c.l.b16 %v608
        %v641 = vpack.c.b16 %v626, %v625
        %v642 = vpack.c.b16 %v628, %v627
        %v643 = vpack.c.b16 %v630, %v629
        %v644 = vpack.c.b16 %v632, %v631
        %v645 = vpack.c.b16 %v634, %v633
        %v646 = vpack.c.b16 %v636, %v635
        %v647 = vpack.c.b16 %v638, %v637
        %v648 = vpack.c.b16 %v640, %v639
        %657 = vmatprep.subr.bf16.mxu0 0
        %658 = vmatpush1.bf16.msra.mxu0 %v641
        %659 = vmatprep.subr.bf16.mxu0 0
        %660 = vmatpush1.bf16.msra.mxu0 %v642
        %661 = vmatprep.subr.bf16.mxu0 0
        %662 = vmatpush1.bf16.msra.mxu0 %v643
        %663 = vmatprep.subr.bf16.mxu0 0
        %664 = vmatpush1.bf16.msra.mxu0 %v644
        %665 = vmatprep.subr.bf16.mxu0 0
        %666 = vmatpush1.bf16.msra.mxu0 %v645
        %667 = vmatprep.subr.bf16.mxu0 0
        %668 = vmatpush1.bf16.msra.mxu0 %v646
        %669 = vmatprep.subr.bf16.mxu0 0
        %670 = vmatpush1.bf16.msra.mxu0 %v647
        %671 = vmatprep.subr.bf16.mxu0 0
        %672 = vmatpush1.bf16.msra.mxu0 %v648
        %673 = vmatprep.subr.bf16.mxu0 0
        %674 = vmatpush1.bf16.msra.mxu0 0
        %675 = vmatprep.subr.bf16.mxu0 0
        %676 = vmatpush1.bf16.msra.mxu0 0
        %677 = vmatprep.subr.bf16.mxu0 0
        %678 = vmatpush1.bf16.msra.mxu0 0
        %679 = vmatprep.subr.bf16.mxu0 0
        %680 = vmatpush1.bf16.msra.mxu0 0
        %681 = vmatprep.subr.bf16.mxu0 0
        %682 = vmatpush1.bf16.msra.mxu0 0
        %683 = vmatprep.subr.bf16.mxu0 0
        %684 = vmatpush1.bf16.msra.mxu0 0
        %685 = vmatprep.subr.bf16.mxu0 0
        %686 = vmatpush1.bf16.msra.mxu0 0
        %687 = vmatprep.subr.bf16.mxu0 0
        %688 = vmatpush1.bf16.msra.mxu0 0
        %689 = vmatprep.mubr.bf16.mxu0 0
        %690 = vmatmul.mubr.bf16.gmra.mrb[0].mxu0 %v384
        %v691 = vpop.f32.mrb[0].mxu0
        %v692 = vadd.f32 0.0, %v691
        %v693 = vpop.f32.mrb[0].mxu0
        %v694 = vpop.f32.mrb[0].mxu0
        %v695 = vpop.f32.mrb[0].mxu0
        %696 = vdwg.mxu0
        %s697 = sld [smem:[#allocation3 + %s32]]
        %v698 = vlaneseq
        %v699 = vand.u32 %v698, 127
        %v700 = vpack.c.bf16 %v484, %v484
        %v701 = vpack.c.bf16 %v588, %v588
        %v702 = vpack.c.bf16 %v692, %v692
        %vm703 = vcmask 261120
        %v705 = vsel %vm703, %v700, 0
        %v708 = vsel %vm703, %v701, 0
        %710 = vmatprep.subr.bf16.mxu0 0
        %711 = vmatpush1.bf16.xpose.msra.mxu0 %v708
        %712 = vmatprep.subr.bf16.mxu0 0
        %713 = vmatpush1.bf16.xpose.msra.mxu0 0
        %714 = vmatprep.subr.bf16.mxu0 0
        %715 = vmatpush1.bf16.xpose.msra.mxu0 0
        %716 = vmatprep.subr.bf16.mxu0 0
        %717 = vmatpush1.bf16.xpose.msra.mxu0 0
        %718 = vmatprep.subr.bf16.mxu0 0
        %719 = vmatpush1.bf16.xpose.msra.mxu0 0
        %720 = vmatprep.subr.bf16.mxu0 0
        %721 = vmatpush1.bf16.xpose.msra.mxu0 0
        %722 = vmatprep.subr.bf16.mxu0 0
        %723 = vmatpush1.bf16.xpose.msra.mxu0 0
        %724 = vmatprep.subr.bf16.mxu0 0
        %725 = vmatpush1.bf16.xpose.msra.mxu0 0
        %726 = vmatprep.subr.bf16.mxu0 0
        %727 = vmatpush1.bf16.xpose.msra.mxu0 0
        %728 = vmatprep.subr.bf16.mxu0 0
        %729 = vmatpush1.bf16.xpose.msra.mxu0 0
        %730 = vmatprep.subr.bf16.mxu0 0
        %731 = vmatpush1.bf16.xpose.msra.mxu0 0
        %732 = vmatprep.subr.bf16.mxu0 0
        %733 = vmatpush1.bf16.xpose.msra.mxu0 0
        %734 = vmatprep.subr.bf16.mxu0 0
        %735 = vmatpush1.bf16.xpose.msra.mxu0 0
        %736 = vmatprep.subr.bf16.mxu0 0
        %737 = vmatpush1.bf16.xpose.msra.mxu0 0
        %738 = vmatprep.subr.bf16.mxu0 0
        %739 = vmatpush1.bf16.xpose.msra.mxu0 0
        %740 = vmatprep.subr.bf16.mxu0 0
        %741 = vmatpush1.bf16.xpose.msra.mxu0 0
        %742 = vmatprep.mubr.bf16.mxu0 0
        %743 = vmatmul.mubr.bf16.gmra.mrb[0].mxu0 %v705
        %v744 = vpop.f32.mrb[0].mxu0
        %v745 = vadd.f32 0.0, %v744
        %v746 = vpop.f32.mrb[0].mxu0
        %v747 = vpop.f32.mrb[0].mxu0
        %v748 = vpop.f32.mrb[0].mxu0
        %749 = vdwg.mxu0
        %v750 = vmul.f32 %v745, 0.17677669
        %v751 = vstv %s697
        %vm752 = vcmp.lt.s32.totalorder %v699, %v751
        %v753 = vsel %vm752, %v750, -1000000.0
        %vm754 = vcmask 64512
        %v755 = vsel %vm754, %v753, -inf
        %756 = vmax.xlane.f32.xlu0 %v755
        %v757 = vpop.xlane.xlu0 %756
        %v758 = vsub.f32 %v753, %v757
        %v759 = vmul.f32 %v758, 1.442695
        %v760 = vpow.pop %v759
        %v761 = vsel %vm754, %v760, 0.0
        %762 = vadd.xlane.f32.xlu0 %v761
        %v763 = vpop.xlane.xlu0 %762
        %v764 = vrcp.pop %v763
        %v765 = vmul.f32 %v760, %v764
        %v766 = vpack.c.bf16 %v765, %v765
        %v768 = vsel %vm754, %v766, 0
        %vm770 = vcmask 1043456
        %v772 = vsel %vm770, %v702, 0
        %774 = vmatprep.subr.bf16.mxu0 0
        %775 = vmatpush1.bf16.msra.mxu0 %v772
        %776 = vmatprep.subr.bf16.mxu0 0
        %777 = vmatpush1.bf16.msra.mxu0 0
        %778 = vmatprep.subr.bf16.mxu0 0
        %779 = vmatpush1.bf16.msra.mxu0 0
        %780 = vmatprep.subr.bf16.mxu0 0
        %781 = vmatpush1.bf16.msra.mxu0 0
        %782 = vmatprep.subr.bf16.mxu0 0
        %783 = vmatpush1.bf16.msra.mxu0 0
        %784 = vmatprep.subr.bf16.mxu0 0
        %785 = vmatpush1.bf16.msra.mxu0 0
        %786 = vmatprep.subr.bf16.mxu0 0
        %787 = vmatpush1.bf16.msra.mxu0 0
        %788 = vmatprep.subr.bf16.mxu0 0
        %789 = vmatpush1.bf16.msra.mxu0 0
        %790 = vmatprep.subr.bf16.mxu0 0
        %791 = vmatpush1.bf16.msra.mxu0 0
        %792 = vmatprep.subr.bf16.mxu0 0
        %793 = vmatpush1.bf16.msra.mxu0 0
        %794 = vmatprep.subr.bf16.mxu0 0
        %795 = vmatpush1.bf16.msra.mxu0 0
        %796 = vmatprep.subr.bf16.mxu0 0
        %797 = vmatpush1.bf16.msra.mxu0 0
        %798 = vmatprep.subr.bf16.mxu0 0
        %799 = vmatpush1.bf16.msra.mxu0 0
        %800 = vmatprep.subr.bf16.mxu0 0
        %801 = vmatpush1.bf16.msra.mxu0 0
        %802 = vmatprep.subr.bf16.mxu0 0
        %803 = vmatpush1.bf16.msra.mxu0 0
        %804 = vmatprep.subr.bf16.mxu0 0
        %805 = vmatpush1.bf16.msra.mxu0 0
        %806 = vmatprep.mubr.bf16.mxu0 0
        %807 = vmatmul.mubr.bf16.gmra.mrb[0].mxu0 %v768
        %v808 = vpop.f32.mrb[0].mxu0
        %v809 = vadd.f32 0.0, %v808
        %v810 = vpop.f32.mrb[0].mxu0
        %v811 = vpop.f32.mrb[0].mxu0
        %v812 = vpop.f32.mrb[0].mxu0
        %813 = vdwg.mxu0
        %v814 = vpack.c.bf16 %v809, %v809
        %v815 = vld [vmem:[#allocation12] sm:$0xf]
        %v816 = vld [vmem:[#allocation12 + $0x4] sm:$0xf]
        %v817 = vld [vmem:[#allocation12 + $0x8] sm:$0xf]
        %v818 = vld [vmem:[#allocation12 + $0xc] sm:$0xf]
        %820 = vrot.lane.b32.xlu0 %v700, 96
        %v821 = vpop.permute.xlu0 %820
        %823 = vrot.lane.b32.xlu0 %v701, 96
        %v824 = vpop.permute.xlu0 %823
        %v826 = vsel %vm703, %v821, 0
        %v829 = vsel %vm703, %v824, 0
        %831 = vmatprep.subr.bf16.mxu0 0
        %832 = vmatpush1.bf16.xpose.msra.mxu0 %v829
        %833 = vmatprep.subr.bf16.mxu0 0
        %834 = vmatpush1.bf16.xpose.msra.mxu0 0
        %835 = vmatprep.subr.bf16.mxu0 0
        %836 = vmatpush1.bf16.xpose.msra.mxu0 0
        %837 = vmatprep.subr.bf16.mxu0 0
        %838 = vmatpush1.bf16.xpose.msra.mxu0 0
        %839 = vmatprep.subr.bf16.mxu0 0
        %840 = vmatpush1.bf16.xpose.msra.mxu0 0
        %841 = vmatprep.subr.bf16.mxu0 0
        %842 = vmatpush1.bf16.xpose.msra.mxu0 0
        %843 = vmatprep.subr.bf16.mxu0 0
        %844 = vmatpush1.bf16.xpose.msra.mxu0 0
        %845 = vmatprep.subr.bf16.mxu0 0
        %846 = vmatpush1.bf16.xpose.msra.mxu0 0
        %847 = vmatprep.subr.bf16.mxu0 0
        %848 = vmatpush1.bf16.xpose.msra.mxu0 0
        %849 = vmatprep.subr.bf16.mxu0 0
        %850 = vmatpush1.bf16.xpose.msra.mxu0 0
        %851 = vmatprep.subr.bf16.mxu0 0
        %852 = vmatpush1.bf16.xpose.msra.mxu0 0
        %853 = vmatprep.subr.bf16.mxu0 0
        %854 = vmatpush1.bf16.xpose.msra.mxu0 0
        %855 = vmatprep.subr.bf16.mxu0 0
        %856 = vmatpush1.bf16.xpose.msra.mxu0 0
        %857 = vmatprep.subr.bf16.mxu0 0
        %858 = vmatpush1.bf16.xpose.msra.mxu0 0
        %859 = vmatprep.subr.bf16.mxu0 0
        %860 = vmatpush1.bf16.xpose.msra.mxu0 0
        %861 = vmatprep.subr.bf16.mxu0 0
        %862 = vmatpush1.bf16.xpose.msra.mxu0 0
        %863 = vmatprep.mubr.bf16.mxu0 0
        %864 = vmatmul.mubr.bf16.gmra.mrb[0].mxu0 %v826
        %v865 = vpop.f32.mrb[0].mxu0
        %v866 = vadd.f32 0.0, %v865
        %v867 = vpop.f32.mrb[0].mxu0
        %v868 = vpop.f32.mrb[0].mxu0
        %v869 = vpop.f32.mrb[0].mxu0
        %870 = vdwg.mxu0
        %v871 = vmul.f32 %v866, 0.17677669
        %v872 = vsel %vm752, %v871, -1000000.0
        %v873 = vsel %vm754, %v872, -inf
        %874 = vmax.xlane.f32.xlu0 %v873
        %v875 = vpop.xlane.xlu0 %874
        %v876 = vsub.f32 %v872, %v875
        %v877 = vmul.f32 %v876, 1.442695
        %v878 = vpow.pop %v877
        %v879 = vsel %vm754, %v878, 0.0
        %880 = vadd.xlane.f32.xlu0 %v879
        %v881 = vpop.xlane.xlu0 %880
        %v882 = vrcp.pop %v881
        %v883 = vmul.f32 %v878, %v882
        %v884 = vpack.c.bf16 %v883, %v883
        %886 = vrot.lane.b32.xlu0 %v702, 96
        %v887 = vpop.permute.xlu0 %886
        %v889 = vsel %vm754, %v884, 0
        %v892 = vsel %vm770, %v887, 0
        %894 = vmatprep.subr.bf16.mxu0 0
        %895 = vmatpush1.bf16.msra.mxu0 %v892
        %896 = vmatprep.subr.bf16.mxu0 0
        %897 = vmatpush1.bf16.msra.mxu0 0
        %898 = vmatprep.subr.bf16.mxu0 0
        %899 = vmatpush1.bf16.msra.mxu0 0
        %900 = vmatprep.subr.bf16.mxu0 0
        %901 = vmatpush1.bf16.msra.mxu0 0
        %902 = vmatprep.subr.bf16.mxu0 0
        %903 = vmatpush1.bf16.msra.mxu0 0
        %904 = vmatprep.subr.bf16.mxu0 0
        %905 = vmatpush1.bf16.msra.mxu0 0
        %906 = vmatprep.subr.bf16.mxu0 0
        %907 = vmatpush1.bf16.msra.mxu0 0
        %908 = vmatprep.subr.bf16.mxu0 0
        %909 = vmatpush1.bf16.msra.mxu0 0
        %910 = vmatprep.subr.bf16.mxu0 0
        %911 = vmatpush1.bf16.msra.mxu0 0
        %912 = vmatprep.subr.bf16.mxu0 0
        %913 = vmatpush1.bf16.msra.mxu0 0
        %914 = vmatprep.subr.bf16.mxu0 0
        %915 = vmatpush1.bf16.msra.mxu0 0
        %916 = vmatprep.subr.bf16.mxu0 0
        %917 = vmatpush1.bf16.msra.mxu0 0
        %918 = vmatprep.subr.bf16.mxu0 0
        %919 = vmatpush1.bf16.msra.mxu0 0
        %920 = vmatprep.subr.bf16.mxu0 0
        %921 = vmatpush1.bf16.msra.mxu0 0
        %922 = vmatprep.subr.bf16.mxu0 0
        %923 = vmatpush1.bf16.msra.mxu0 0
        %924 = vmatprep.subr.bf16.mxu0 0
        %925 = vmatpush1.bf16.msra.mxu0 0
        %926 = vmatprep.mubr.bf16.mxu0 0
        %927 = vmatmul.mubr.bf16.gmra.mrb[0].mxu0 %v889
        %v928 = vpop.f32.mrb[0].mxu0
        %v929 = vadd.f32 0.0, %v928
        %v930 = vpop.f32.mrb[0].mxu0
        %v931 = vpop.f32.mrb[0].mxu0
        %v932 = vpop.f32.mrb[0].mxu0
        %933 = vdwg.mxu0
        %v934 = vpack.c.bf16 %v929, %v929
        %v935 = vld [vmem:[#allocation12 + $0x10] sm:$0xf]
        %v936 = vld [vmem:[#allocation12 + $0x14] sm:$0xf]
        %v937 = vld [vmem:[#allocation12 + $0x18] sm:$0xf]
        %v938 = vld [vmem:[#allocation12 + $0x1c] sm:$0xf]
        %v943 = vunpack.c.l.b16 %v935
        %v944 = vunpack.c.l.b16 %v936
        %v945 = vunpack.c.l.b16 %v937
        %v946 = vunpack.c.l.b16 %v938
        %v947 = vpack.c.b16 %v944, %v943
        %v948 = vpack.c.b16 %v946, %v945
        %v952 = vsel %vm703, %v934, 0
        %954 = vmatprep.subr.bf16.mxu0 0
        %955 = vmatpush1.bf16.msra.mxu0 %v947
        %956 = vmatprep.subr.bf16.mxu0 0
        %957 = vmatpush1.bf16.msra.mxu0 %v948
        %958 = vmatprep.subr.bf16.mxu0 0
        %959 = vmatpush1.bf16.msra.mxu0 0
        %960 = vmatprep.subr.bf16.mxu0 0
        %961 = vmatpush1.bf16.msra.mxu0 0
        %962 = vmatprep.subr.bf16.mxu0 0
        %963 = vmatpush1.bf16.msra.mxu0 0
        %964 = vmatprep.subr.bf16.mxu0 0
        %965 = vmatpush1.bf16.msra.mxu0 0
        %966 = vmatprep.subr.bf16.mxu0 0
        %967 = vmatpush1.bf16.msra.mxu0 0
        %968 = vmatprep.subr.bf16.mxu0 0
        %969 = vmatpush1.bf16.msra.mxu0 0
        %970 = vmatprep.subr.bf16.mxu0 0
        %971 = vmatpush1.bf16.msra.mxu0 0
        %972 = vmatprep.subr.bf16.mxu0 0
        %973 = vmatpush1.bf16.msra.mxu0 0
        %974 = vmatprep.subr.bf16.mxu0 0
        %975 = vmatpush1.bf16.msra.mxu0 0
        %976 = vmatprep.subr.bf16.mxu0 0
        %977 = vmatpush1.bf16.msra.mxu0 0
        %978 = vmatprep.subr.bf16.mxu0 0
        %979 = vmatpush1.bf16.msra.mxu0 0
        %980 = vmatprep.subr.bf16.mxu0 0
        %981 = vmatpush1.bf16.msra.mxu0 0
        %982 = vmatprep.subr.bf16.mxu0 0
        %983 = vmatpush1.bf16.msra.mxu0 0
        %984 = vmatprep.subr.bf16.mxu0 0
        %985 = vmatpush1.bf16.msra.mxu0 0
        %986 = vmatprep.mubr.bf16.mxu0 0
        %987 = vmatmul.mubr.bf16.gmra.mrb[0].mxu0 %v952
        %v988 = vpop.f32.mrb[0].mxu0
        %v989 = vadd.f32 0.0, %v988
        %v990 = vpop.f32.mrb[0].mxu0
        %v991 = vpop.f32.mrb[0].mxu0
        %v992 = vpop.f32.mrb[0].mxu0
        %993 = vdwg.mxu0
        %v998 = vunpack.c.l.b16 %v815
        %v999 = vunpack.c.l.b16 %v816
        %v1000 = vunpack.c.l.b16 %v817
        %v1001 = vunpack.c.l.b16 %v818
        %v1002 = vpack.c.b16 %v999, %v998
        %v1003 = vpack.c.b16 %v1001, %v1000
        %v1007 = vsel %vm703, %v814, 0
        %1009 = vmatprep.subr.bf16.mxu0 0
        %1010 = vmatpush1.bf16.msra.mxu0 %v1002
        %1011 = vmatprep.subr.bf16.mxu0 0
        %1012 = vmatpush1.bf16.msra.mxu0 %v1003
        %1013 = vmatprep.subr.bf16.mxu0 0
        %1014 = vmatpush1.bf16.msra.mxu0 0
        %1015 = vmatprep.subr.bf16.mxu0 0
        %1016 = vmatpush1.bf16.msra.mxu0 0
        %1017 = vmatprep.subr.bf16.mxu0 0
        %1018 = vmatpush1.bf16.msra.mxu0 0
        %1019 = vmatprep.subr.bf16.mxu0 0
        %1020 = vmatpush1.bf16.msra.mxu0 0
        %1021 = vmatprep.subr.bf16.mxu0 0
        %1022 = vmatpush1.bf16.msra.mxu0 0
        %1023 = vmatprep.subr.bf16.mxu0 0
        %1024 = vmatpush1.bf16.msra.mxu0 0
        %1025 = vmatprep.subr.bf16.mxu0 0
        %1026 = vmatpush1.bf16.msra.mxu0 0
        %1027 = vmatprep.subr.bf16.mxu0 0
        %1028 = vmatpush1.bf16.msra.mxu0 0
        %1029 = vmatprep.subr.bf16.mxu0 0
        %1030 = vmatpush1.bf16.msra.mxu0 0
        %1031 = vmatprep.subr.bf16.mxu0 0
        %1032 = vmatpush1.bf16.msra.mxu0 0
        %1033 = vmatprep.subr.bf16.mxu0 0
        %1034 = vmatpush1.bf16.msra.mxu0 0
        %1035 = vmatprep.subr.bf16.mxu0 0
        %1036 = vmatpush1.bf16.msra.mxu0 0
        %1037 = vmatprep.subr.bf16.mxu0 0
        %1038 = vmatpush1.bf16.msra.mxu0 0
        %1039 = vmatprep.subr.bf16.mxu0 0
        %1040 = vmatpush1.bf16.msra.mxu0 0
        %1041 = vmatprep.mubr.bf16.mxu0 0
        %1042 = vmatmul.mubr.bf16.gmra.mrb[0].mxu0 %v1007
        %v1043 = vpop.f32.mrb[0].mxu0
        %v1044 = vadd.f32 %v989, %v1043
        %v1045 = vpop.f32.mrb[0].mxu0
        %v1046 = vpop.f32.mrb[0].mxu0
        %v1047 = vpop.f32.mrb[0].mxu0
        %1048 = vdwg.mxu0
        %1049 = vrot.lane.b32.xlu0 %v700, 64
        %v1050 = vpop.permute.xlu0 %1049
        %1051 = vrot.lane.b32.xlu0 %v701, 64
        %v1052 = vpop.permute.xlu0 %1051
        %v1054 = vsel %vm703, %v1050, 0
        %v1057 = vsel %vm703, %v1052, 0
        %1059 = vmatprep.subr.bf16.mxu0 0
        %1060 = vmatpush1.bf16.xpose.msra.mxu0 %v1057
        %1061 = vmatprep.subr.bf16.mxu0 0
        %1062 = vmatpush1.bf16.xpose.msra.mxu0 0
        %1063 = vmatprep.subr.bf16.mxu0 0
        %1064 = vmatpush1.bf16.xpose.msra.mxu0 0
        %1065 = vmatprep.subr.bf16.mxu0 0
        %1066 = vmatpush1.bf16.xpose.msra.mxu0 0
        %1067 = vmatprep.subr.bf16.mxu0 0
        %1068 = vmatpush1.bf16.xpose.msra.mxu0 0
        %1069 = vmatprep.subr.bf16.mxu0 0
        %1070 = vmatpush1.bf16.xpose.msra.mxu0 0
        %1071 = vmatprep.subr.bf16.mxu0 0
        %1072 = vmatpush1.bf16.xpose.msra.mxu0 0
        %1073 = vmatprep.subr.bf16.mxu0 0
        %1074 = vmatpush1.bf16.xpose.msra.mxu0 0
        %1075 = vmatprep.subr.bf16.mxu0 0
        %1076 = vmatpush1.bf16.xpose.msra.mxu0 0
        %1077 = vmatprep.subr.bf16.mxu0 0
        %1078 = vmatpush1.bf16.xpose.msra.mxu0 0
        %1079 = vmatprep.subr.bf16.mxu0 0
        %1080 = vmatpush1.bf16.xpose.msra.mxu0 0
        %1081 = vmatprep.subr.bf16.mxu0 0
        %1082 = vmatpush1.bf16.xpose.msra.mxu0 0
        %1083 = vmatprep.subr.bf16.mxu0 0
        %1084 = vmatpush1.bf16.xpose.msra.mxu0 0
        %1085 = vmatprep.subr.bf16.mxu0 0
        %1086 = vmatpush1.bf16.xpose.msra.mxu0 0
        %1087 = vmatprep.subr.bf16.mxu0 0
        %1088 = vmatpush1.bf16.xpose.msra.mxu0 0
        %1089 = vmatprep.subr.bf16.mxu0 0
        %1090 = vmatpush1.bf16.xpose.msra.mxu0 0
        %1091 = vmatprep.mubr.bf16.mxu0 0
        %1092 = vmatmul.mubr.bf16.gmra.mrb[0].mxu0 %v1054
        %v1093 = vpop.f32.mrb[0].mxu0
        %v1094 = vadd.f32 0.0, %v1093
        %v1095 = vpop.f32.mrb[0].mxu0
        %v1096 = vpop.f32.mrb[0].mxu0
        %v1097 = vpop.f32.mrb[0].mxu0
        %1098 = vdwg.mxu0
        %v1099 = vmul.f32 %v1094, 0.17677669
        %v1100 = vsel %vm752, %v1099, -1000000.0
        %v1101 = vsel %vm754, %v1100, -inf
        %1102 = vmax.xlane.f32.xlu0 %v1101
        %v1103 = vpop.xlane.xlu0 %1102
        %v1104 = vsub.f32 %v1100, %v1103
        %v1105 = vmul.f32 %v1104, 1.442695
        %v1106 = vpow.pop %v1105
        %v1107 = vsel %vm754, %v1106, 0.0
        %1108 = vadd.xlane.f32.xlu0 %v1107
        %v1109 = vpop.xlane.xlu0 %1108
        %v1110 = vrcp.pop %v1109
        %v1111 = vmul.f32 %v1106, %v1110
        %v1112 = vpack.c.bf16 %v1111, %v1111
        %1113 = vrot.lane.b32.xlu0 %v702, 64
        %v1114 = vpop.permute.xlu0 %1113
        %v1116 = vsel %vm754, %v1112, 0
        %v1119 = vsel %vm770, %v1114, 0
        %1121 = vmatprep.subr.bf16.mxu0 0
        %1122 = vmatpush1.bf16.msra.mxu0 %v1119
        %1123 = vmatprep.subr.bf16.mxu0 0
        %1124 = vmatpush1.bf16.msra.mxu0 0
        %1125 = vmatprep.subr.bf16.mxu0 0
        %1126 = vmatpush1.bf16.msra.mxu0 0
        %1127 = vmatprep.subr.bf16.mxu0 0
        %1128 = vmatpush1.bf16.msra.mxu0 0
        %1129 = vmatprep.subr.bf16.mxu0 0
        %1130 = vmatpush1.bf16.msra.mxu0 0
        %1131 = vmatprep.subr.bf16.mxu0 0
        %1132 = vmatpush1.bf16.msra.mxu0 0
        %1133 = vmatprep.subr.bf16.mxu0 0
        %1134 = vmatpush1.bf16.msra.mxu0 0
        %1135 = vmatprep.subr.bf16.mxu0 0
        %1136 = vmatpush1.bf16.msra.mxu0 0
        %1137 = vmatprep.subr.bf16.mxu0 0
        %1138 = vmatpush1.bf16.msra.mxu0 0
        %1139 = vmatprep.subr.bf16.mxu0 0
        %1140 = vmatpush1.bf16.msra.mxu0 0
        %1141 = vmatprep.subr.bf16.mxu0 0
        %1142 = vmatpush1.bf16.msra.mxu0 0
        %1143 = vmatprep.subr.bf16.mxu0 0
        %1144 = vmatpush1.bf16.msra.mxu0 0
        %1145 = vmatprep.subr.bf16.mxu0 0
        %1146 = vmatpush1.bf16.msra.mxu0 0
        %1147 = vmatprep.subr.bf16.mxu0 0
        %1148 = vmatpush1.bf16.msra.mxu0 0
        %1149 = vmatprep.subr.bf16.mxu0 0
        %1150 = vmatpush1.bf16.msra.mxu0 0
        %1151 = vmatprep.subr.bf16.mxu0 0
        %1152 = vmatpush1.bf16.msra.mxu0 0
        %1153 = vmatprep.mubr.bf16.mxu0 0
        %1154 = vmatmul.mubr.bf16.gmra.mrb[0].mxu0 %v1116
        %v1155 = vpop.f32.mrb[0].mxu0
        %v1156 = vadd.f32 0.0, %v1155
        %v1157 = vpop.f32.mrb[0].mxu0
        %v1158 = vpop.f32.mrb[0].mxu0
        %v1159 = vpop.f32.mrb[0].mxu0
        %1160 = vdwg.mxu0
        %v1161 = vpack.c.bf16 %v1156, %v1156
        %v1162 = vld [vmem:[#allocation12 + $0x20] sm:$0xf]
        %v1163 = vld [vmem:[#allocation12 + $0x24] sm:$0xf]
        %v1164 = vld [vmem:[#allocation12 + $0x28] sm:$0xf]
        %v1165 = vld [vmem:[#allocation12 + $0x2c] sm:$0xf]
        %v1170 = vunpack.c.l.b16 %v1162
        %v1171 = vunpack.c.l.b16 %v1163
        %v1172 = vunpack.c.l.b16 %v1164
        %v1173 = vunpack.c.l.b16 %v1165
        %v1174 = vpack.c.b16 %v1171, %v1170
        %v1175 = vpack.c.b16 %v1173, %v1172
        %v1179 = vsel %vm703, %v1161, 0
        %1181 = vmatprep.subr.bf16.mxu0 0
        %1182 = vmatpush1.bf16.msra.mxu0 %v1174
        %1183 = vmatprep.subr.bf16.mxu0 0
        %1184 = vmatpush1.bf16.msra.mxu0 %v1175
        %1185 = vmatprep.subr.bf16.mxu0 0
        %1186 = vmatpush1.bf16.msra.mxu0 0
        %1187 = vmatprep.subr.bf16.mxu0 0
        %1188 = vmatpush1.bf16.msra.mxu0 0
        %1189 = vmatprep.subr.bf16.mxu0 0
        %1190 = vmatpush1.bf16.msra.mxu0 0
        %1191 = vmatprep.subr.bf16.mxu0 0
        %1192 = vmatpush1.bf16.msra.mxu0 0
        %1193 = vmatprep.subr.bf16.mxu0 0
        %1194 = vmatpush1.bf16.msra.mxu0 0
        %1195 = vmatprep.subr.bf16.mxu0 0
        %1196 = vmatpush1.bf16.msra.mxu0 0
        %1197 = vmatprep.subr.bf16.mxu0 0
        %1198 = vmatpush1.bf16.msra.mxu0 0
        %1199 = vmatprep.subr.bf16.mxu0 0
        %1200 = vmatpush1.bf16.msra.mxu0 0
        %1201 = vmatprep.subr.bf16.mxu0 0
        %1202 = vmatpush1.bf16.msra.mxu0 0
        %1203 = vmatprep.subr.bf16.mxu0 0
        %1204 = vmatpush1.bf16.msra.mxu0 0
        %1205 = vmatprep.subr.bf16.mxu0 0
        %1206 = vmatpush1.bf16.msra.mxu0 0
        %1207 = vmatprep.subr.bf16.mxu0 0
        %1208 = vmatpush1.bf16.msra.mxu0 0
        %1209 = vmatprep.subr.bf16.mxu0 0
        %1210 = vmatpush1.bf16.msra.mxu0 0
        %1211 = vmatprep.subr.bf16.mxu0 0
        %1212 = vmatpush1.bf16.msra.mxu0 0
        %1213 = vmatprep.mubr.bf16.mxu0 0
        %1214 = vmatmul.mubr.bf16.gmra.mrb[0].mxu0 %v1179
        %v1215 = vpop.f32.mrb[0].mxu0
        %v1216 = vadd.f32 0.0, %v1215
        %v1217 = vpop.f32.mrb[0].mxu0
        %v1218 = vpop.f32.mrb[0].mxu0
        %v1219 = vpop.f32.mrb[0].mxu0
        %1220 = vdwg.mxu0
        %v1221 = vadd.f32 %v1044, %v1216
        %1222 = vrot.lane.b32.xlu0 %v700, 32
        %v1223 = vpop.permute.xlu0 %1222
        %1224 = vrot.lane.b32.xlu0 %v701, 32
        %v1225 = vpop.permute.xlu0 %1224
        %v1227 = vsel %vm703, %v1223, 0
        %v1230 = vsel %vm703, %v1225, 0
        %1232 = vmatprep.subr.bf16.mxu0 0
        %1233 = vmatpush1.bf16.xpose.msra.mxu0 %v1230
        %1234 = vmatprep.subr.bf16.mxu0 0
        %1235 = vmatpush1.bf16.xpose.msra.mxu0 0
        %1236 = vmatprep.subr.bf16.mxu0 0
        %1237 = vmatpush1.bf16.xpose.msra.mxu0 0
        %1238 = vmatprep.subr.bf16.mxu0 0
        %1239 = vmatpush1.bf16.xpose.msra.mxu0 0
        %1240 = vmatprep.subr.bf16.mxu0 0
        %1241 = vmatpush1.bf16.xpose.msra.mxu0 0
        %1242 = vmatprep.subr.bf16.mxu0 0
        %1243 = vmatpush1.bf16.xpose.msra.mxu0 0
        %1244 = vmatprep.subr.bf16.mxu0 0
        %1245 = vmatpush1.bf16.xpose.msra.mxu0 0
        %1246 = vmatprep.subr.bf16.mxu0 0
        %1247 = vmatpush1.bf16.xpose.msra.mxu0 0
        %1248 = vmatprep.subr.bf16.mxu0 0
        %1249 = vmatpush1.bf16.xpose.msra.mxu0 0
        %1250 = vmatprep.subr.bf16.mxu0 0
        %1251 = vmatpush1.bf16.xpose.msra.mxu0 0
        %1252 = vmatprep.subr.bf16.mxu0 0
        %1253 = vmatpush1.bf16.xpose.msra.mxu0 0
        %1254 = vmatprep.subr.bf16.mxu0 0
        %1255 = vmatpush1.bf16.xpose.msra.mxu0 0
        %1256 = vmatprep.subr.bf16.mxu0 0
        %1257 = vmatpush1.bf16.xpose.msra.mxu0 0
        %1258 = vmatprep.subr.bf16.mxu0 0
        %1259 = vmatpush1.bf16.xpose.msra.mxu0 0
        %1260 = vmatprep.subr.bf16.mxu0 0
        %1261 = vmatpush1.bf16.xpose.msra.mxu0 0
        %1262 = vmatprep.subr.bf16.mxu0 0
        %1263 = vmatpush1.bf16.xpose.msra.mxu0 0
        %1264 = vmatprep.mubr.bf16.mxu0 0
        %1265 = vmatmul.mubr.bf16.gmra.mrb[0].mxu0 %v1227
        %v1266 = vpop.f32.mrb[0].mxu0
        %v1267 = vadd.f32 0.0, %v1266
        %v1268 = vpop.f32.mrb[0].mxu0
        %v1269 = vpop.f32.mrb[0].mxu0
        %v1270 = vpop.f32.mrb[0].mxu0
        %1271 = vdwg.mxu0
        %v1272 = vmul.f32 %v1267, 0.17677669
        %v1273 = vsel %vm752, %v1272, -1000000.0
        %v1274 = vsel %vm754, %v1273, -inf
        %1275 = vmax.xlane.f32.xlu0 %v1274
        %v1276 = vpop.xlane.xlu0 %1275
        %v1277 = vsub.f32 %v1273, %v1276
        %v1278 = vmul.f32 %v1277, 1.442695
        %v1279 = vpow.pop %v1278
        %v1280 = vsel %vm754, %v1279, 0.0
        %1281 = vadd.xlane.f32.xlu0 %v1280
        %v1282 = vpop.xlane.xlu0 %1281
        %v1283 = vrcp.pop %v1282
        %v1284 = vmul.f32 %v1279, %v1283
        %v1285 = vpack.c.bf16 %v1284, %v1284
        %1286 = vrot.lane.b32.xlu0 %v702, 32
        %v1287 = vpop.permute.xlu0 %1286
        %v1289 = vsel %vm754, %v1285, 0
        %v1292 = vsel %vm770, %v1287, 0
        %1294 = vmatprep.subr.bf16.mxu0 0
        %1295 = vmatpush1.bf16.msra.mxu0 %v1292
        %1296 = vmatprep.subr.bf16.mxu0 0
        %1297 = vmatpush1.bf16.msra.mxu0 0
        %1298 = vmatprep.subr.bf16.mxu0 0
        %1299 = vmatpush1.bf16.msra.mxu0 0
        %1300 = vmatprep.subr.bf16.mxu0 0
        %1301 = vmatpush1.bf16.msra.mxu0 0
        %1302 = vmatprep.subr.bf16.mxu0 0
        %1303 = vmatpush1.bf16.msra.mxu0 0
        %1304 = vmatprep.subr.bf16.mxu0 0
        %1305 = vmatpush1.bf16.msra.mxu0 0
        %1306 = vmatprep.subr.bf16.mxu0 0
        %1307 = vmatpush1.bf16.msra.mxu0 0
        %1308 = vmatprep.subr.bf16.mxu0 0
        %1309 = vmatpush1.bf16.msra.mxu0 0
        %1310 = vmatprep.subr.bf16.mxu0 0
        %1311 = vmatpush1.bf16.msra.mxu0 0
        %1312 = vmatprep.subr.bf16.mxu0 0
        %1313 = vmatpush1.bf16.msra.mxu0 0
        %1314 = vmatprep.subr.bf16.mxu0 0
        %1315 = vmatpush1.bf16.msra.mxu0 0
        %1316 = vmatprep.subr.bf16.mxu0 0
        %1317 = vmatpush1.bf16.msra.mxu0 0
        %1318 = vmatprep.subr.bf16.mxu0 0
        %1319 = vmatpush1.bf16.msra.mxu0 0
        %1320 = vmatprep.subr.bf16.mxu0 0
        %1321 = vmatpush1.bf16.msra.mxu0 0
        %1322 = vmatprep.subr.bf16.mxu0 0
        %1323 = vmatpush1.bf16.msra.mxu0 0
        %1324 = vmatprep.subr.bf16.mxu0 0
        %1325 = vmatpush1.bf16.msra.mxu0 0
        %1326 = vmatprep.mubr.bf16.mxu0 0
        %1327 = vmatmul.mubr.bf16.gmra.mrb[0].mxu0 %v1289
        %v1328 = vpop.f32.mrb[0].mxu0
        %v1329 = vadd.f32 0.0, %v1328
        %v1330 = vpop.f32.mrb[0].mxu0
        %v1331 = vpop.f32.mrb[0].mxu0
        %v1332 = vpop.f32.mrb[0].mxu0
        %1333 = vdwg.mxu0
        %v1334 = vpack.c.bf16 %v1329, %v1329
        %v1335 = vld [vmem:[#allocation12 + $0x30] sm:$0xf]
        %v1336 = vld [vmem:[#allocation12 + $0x34] sm:$0xf]
        %v1337 = vld [vmem:[#allocation12 + $0x38] sm:$0xf]
        %v1338 = vld [vmem:[#allocation12 + $0x3c] sm:$0xf]
        %v1343 = vunpack.c.l.b16 %v1335
        %v1344 = vunpack.c.l.b16 %v1336
        %v1345 = vunpack.c.l.b16 %v1337
        %v1346 = vunpack.c.l.b16 %v1338
        %v1347 = vpack.c.b16 %v1344, %v1343
        %v1348 = vpack.c.b16 %v1346, %v1345
        %v1352 = vsel %vm703, %v1334, 0
        %1354 = vmatprep.subr.bf16.mxu0 0
        %1355 = vmatpush1.bf16.msra.mxu0 %v1347
        %1356 = vmatprep.subr.bf16.mxu0 0
        %1357 = vmatpush1.bf16.msra.mxu0 %v1348
        %1358 = vmatprep.subr.bf16.mxu0 0
        %1359 = vmatpush1.bf16.msra.mxu0 0
        %1360 = vmatprep.subr.bf16.mxu0 0
        %1361 = vmatpush1.bf16.msra.mxu0 0
        %1362 = vmatprep.subr.bf16.mxu0 0
        %1363 = vmatpush1.bf16.msra.mxu0 0
        %1364 = vmatprep.subr.bf16.mxu0 0
        %1365 = vmatpush1.bf16.msra.mxu0 0
        %1366 = vmatprep.subr.bf16.mxu0 0
        %1367 = vmatpush1.bf16.msra.mxu0 0
        %1368 = vmatprep.subr.bf16.mxu0 0
        %1369 = vmatpush1.bf16.msra.mxu0 0
        %1370 = vmatprep.subr.bf16.mxu0 0
        %1371 = vmatpush1.bf16.msra.mxu0 0
        %1372 = vmatprep.subr.bf16.mxu0 0
        %1373 = vmatpush1.bf16.msra.mxu0 0
        %1374 = vmatprep.subr.bf16.mxu0 0
        %1375 = vmatpush1.bf16.msra.mxu0 0
        %1376 = vmatprep.subr.bf16.mxu0 0
        %1377 = vmatpush1.bf16.msra.mxu0 0
        %1378 = vmatprep.subr.bf16.mxu0 0
        %1379 = vmatpush1.bf16.msra.mxu0 0
        %1380 = vmatprep.subr.bf16.mxu0 0
        %1381 = vmatpush1.bf16.msra.mxu0 0
        %1382 = vmatprep.subr.bf16.mxu0 0
        %1383 = vmatpush1.bf16.msra.mxu0 0
        %1384 = vmatprep.subr.bf16.mxu0 0
        %1385 = vmatpush1.bf16.msra.mxu0 0
        %1386 = vmatprep.mubr.bf16.mxu0 0
        %1387 = vmatmul.mubr.bf16.gmra.mrb[0].mxu0 %v1352
        %v1388 = vpop.f32.mrb[0].mxu0
        %v1389 = vadd.f32 0.0, %v1388
        %v1390 = vpop.f32.mrb[0].mxu0
        %v1391 = vpop.f32.mrb[0].mxu0
        %v1392 = vpop.f32.mrb[0].mxu0
        %1393 = vdwg.mxu0
        %v1394 = vadd.f32 %v1221, %v1389
        %v1395 = vadd.f32 %v383, %v1394
        %v1396 = vld [vmem:[#allocation13] sm:$0x1]
        %v1397 = vld [vmem:[#allocation15] sm:$0x1]
        %1398 = vadd.xlane.f32.xlu0 %v1395
        %v1399 = vpop.xlane.xlu0 %1398
        %v1400 = vrcp.pop 128.0
        %v1401 = vmul.f32 %v1399, %v1400
        %v1402 = vsub.f32 %v1395, %v1401
        %v1403 = vmul.f32 %v1402, %v1402
        %1404 = vadd.xlane.f32.xlu0 %v1403
        %v1405 = vpop.xlane.xlu0 %1404
        %v1406 = vmul.f32 %v1405, %v1400
        %v1407 = vadd.f32 %v1406, 1e-05
        %v1408 = vrsqrt.pop %v1407
        %v1409 = vmul.f32 %v1402, %v1408
        %v1411 = vlaneseq
        %v1412 = vshrl.u32 %v1411, 7
        %v1413 = vsub.s32 0, %v1412
        %v1414 = vrot.slane %v1396, %v1413
        %v1416 = vmul.f32 %v1409, %v1414
        %v1418 = vlaneseq
        %v1419 = vshrl.u32 %v1418, 7
        %v1420 = vsub.s32 0, %v1419
        %v1421 = vrot.slane %v1397, %v1420
        %v1423 = vadd.f32 %v1416, %v1421
        %1424 = vst [vmem:[%s381] sm:$0xff] %v1423
        %s1425 = sand.u32 %s192, 1
        %s1426 = scalar_lea.sflag [#allocation6], %s1425
        %s1427 = sand.u32 %s192, 1
        %s1428 = smul.addr %s1427, 8
        %s1429 = scalar_lea.vmem [#allocation16], %s1428
        // Predicated region
        $region77: #{tpu_custom_call.1} parent=47 // pred_check
          %p1430 = pneg %p202
        $region78: #{tpu_custom_call.1} parent=47 // pred_check_branch
          %1432 = sbr.rel (%p1430) target = $region80
        $region79: #{tpu_custom_call.1} parent=47 // pred_region
          %s1434 = ssub.s32 128, 128
          %1435 = vsyncadd %s1426, %s1434
          %s1436 = smul.addr %s32, 128
          %s1437 = scalar_lea.hbm %s8, %s1436
          %s1439 = sshll.u32 %s1429, 4
          %s1440 = int_to_ptr.vmem [resolvable:$true] %s1439
          %1442 = dma.vmem_to_hbm [thread:$0]  %s1440, 128, %s1437, %s1426
        $region80: #{tpu_custom_call.1} parent=47 // pred_fallthru
          _
      $region48: #{tpu_custom_call.1} parent=5 // pred_fallthru
        _
      %p1443 = scmp.le.s32.totalorder 2, %s27
      // Predicated region
      $region81: #{tpu_custom_call.1} parent=5 // pred_check
        %p1444 = pneg %p1443
      $region82: #{tpu_custom_call.1} parent=5 // pred_check_branch
        %1446 = sbr.rel (%p1444) target = $region84
      $region83: #{tpu_custom_call.1} parent=5 // pred_region
        %s1447 = ssub.s32 %s27, 2
        // Predicated region
        $region85: #{tpu_custom_call.1} parent=83 // pred_check
          %p1448 = pneg %p208
        $region86: #{tpu_custom_call.1} parent=83 // pred_check_branch
          %1450 = sbr.rel (%p1448) target = $region88
        $region87: #{tpu_custom_call.1} parent=83 // pred_region
          %s1451 = sand.u32 %s193, 1
          %s1452 = scalar_lea.sflag [#allocation6], %s1451
          %s1453 = sand.u32 %s193, 1
          %s1454 = smul.addr %s1453, 8
          %s1455 = scalar_lea.vmem [#allocation16], %s1454
          %1456 = dma.done %s1452, 128
        $region88: #{tpu_custom_call.1} parent=83 // pred_fallthru
          _
      $region84: #{tpu_custom_call.1} parent=5 // pred_fallthru
        _
    $region6: #{tpu_custom_call.1} parent=1 // loop_footer
      %s31 = sadd.s32 1, %s27
    $region7: #{tpu_custom_call.1} parent=1 // loop_footer_branch
      %26 = sbr.rel target = $region3
    $region8: #{tpu_custom_call.1} parent=1 // loop_exit
      _
    %1457 = vsyncpa [#allocation5], 1
    %s1458 = scalar_lea.sflag [#allocation5], 1
    %1459 = vsyncpa %s1458, 1
    %1460 = vsyncpa [#allocation8], 1
    %1461 = vsyncpa [#allocation11], 1
    %1462 = vsyncpa [#allocation14], 1
    %1463 = vsyncpa [#allocation6], 1
    %s1464 = scalar_lea.sflag [#allocation6], 1
    %1465 = vsyncpa %s1464, 1

</llo_original>
